<compile_context>
chip_gen: v5e
topology: v5e:2x2
jax: 0.10.0
libtpu: 0.0.40
codegen_flags: <defaults>
</compile_context>

<pallas_src>
import jax
import jax.numpy as jnp
from jax import lax
from jax.experimental import pallas as pl
from jax.experimental.pallas import tpu as pltpu


def _lstm_kernel(x_ref,                     # (T, Bp, I)   time-major input
                 wih0_ref,                  # (I,  4*Hp)   layer-0 input weights
                 whh0_ref,                  # (Hp, 4*Hp)   layer-0 hidden weights
                 b0_ref,                    # (1,  4*Hp)   layer-0 bias (ih+hh)
                 w1_ref,                    # (2*Hp, 4*Hp) layer-1 [ih; hh] weights
                 b1_ref,                    # (1,  4*Hp)   layer-1 bias (ih+hh)
                 wfc_ref,                   # (Hp, Op)     fc weight (col 0 valid)
                 bfc_ref,                   # (1,  Op)     fc bias   (col 0 valid)
                 out_ref):                  # (Bp, Op)
    T, Bp, I = x_ref.shape
    Hp = whh0_ref.shape[0]
    G = 4 * Hp

    # Hoist weight loads and bias broadcasts out of the time loop
    # (JAX does not CSE broadcast_in_dim inside the loop).
    w_ih0 = wih0_ref[...]
    w_hh0 = whh0_ref[...]
    w_1 = w1_ref[...]
    b0 = jnp.broadcast_to(b0_ref[...], (Bp, G))
    b1 = jnp.broadcast_to(b1_ref[...], (Bp, G))

    def act(gates, c_prev):
        # static, 128-aligned lane slices per gate (PyTorch order i, f, g, o)
        i = jax.nn.sigmoid(gates[:, 0 * Hp:1 * Hp])
        f = jax.nn.sigmoid(gates[:, 1 * Hp:2 * Hp])
        g = jnp.tanh(gates[:, 2 * Hp:3 * Hp])
        o = jax.nn.sigmoid(gates[:, 3 * Hp:4 * Hp])
        c_new = f * c_prev + i * g
        h_new = o * jnp.tanh(c_new)
        return h_new, c_new

    def step(t, carry):
        h0, c0, h1, c1 = carry
        x_t = x_ref[t]                                        # (Bp, I)

        # ---- layer 0: one fused matmul over the hidden path -------------
        if I == 1:
            # degenerate K=1 contraction -> VPU outer product, skip the MXU
            in0 = x_t * w_ih0                                 # (Bp,1)*(1,G) -> (Bp,G)
        else:
            in0 = jnp.dot(x_t, w_ih0, preferred_element_type=jnp.float32)
        gates0 = in0 + jnp.dot(h0, w_hh0,
                               preferred_element_type=jnp.float32) + b0
        h0n, c0n = act(gates0, c0)

        # ---- layer 1: single matmul over fused [ih ; hh] inputs ----------
        # (eval mode: dropout between layers is a no-op)
        hcat = jnp.concatenate([h0n, h1], axis=1)             # (Bp, 2*Hp), 128-aligned
        gates1 = jnp.dot(hcat, w_1,
                         preferred_element_type=jnp.float32) + b1
        h1n, c1n = act(gates1, c1)

        return h0n, c0n, h1n, c1n

    z = jnp.zeros((Bp, Hp), jnp.float32)
    unroll = True if T <= 16 else 4
    _, _, h1_last, _ = lax.fori_loop(0, T, step, (z, z, z, z), unroll=unroll)

    # FC head: one-time epilogue on the last hidden state.
    out_ref[...] = (jnp.dot(h1_last, wfc_ref[...],
                            preferred_element_type=jnp.float32)
                    + bfc_ref[...])


def lstm_model_forward(x, packed):
    """x: (B, T, I) float32 (batch_first).  Returns (B, 1) float32."""
    B, T, I = x.shape
    Hp = packed["whh0"].shape[0]
    Op = packed["wfc"].shape[1]

    # pad batch to a full 8-sublane tile and go time-major for x_ref[t]
    Bp = max(8, ((B + 7) // 8) * 8)
    x_p = jnp.zeros((Bp, T, I), jnp.float32).at[:B].set(x)
    x_tm = jnp.transpose(x_p, (1, 0, 2))                      # (T, Bp, I)

    out = pl.pallas_call(
        _lstm_kernel,
        out_shape=jax.ShapeDtypeStruct((Bp, Op), jnp.float32),
    )(x_tm,
      packed["wih0"], packed["whh0"], packed["b0"],
      packed["w1"], packed["b1"],
      packed["wfc"], packed["bfc"])

    return out[:B, :1]


# ---------------------------------------------------------------------------
# Parameter construction (PyTorch-style raw weights) and packing
# ---------------------------------------------------------------------------
def init_raw_params(key, input_size=1, hidden_size=50):
    """PyTorch-shaped weights, U(-1/sqrt(H), 1/sqrt(H)) init like nn.LSTM."""
    H = hidden_size
    bound = 1.0 / jnp.sqrt(jnp.float32(H))
    ks = jax.random.split(key, 10)
    u = lambda k, s: jax.random.uniform(k, s, jnp.float32, -bound, bound)
    return {
        "w_ih_l0": u(ks[0], (4 * H, input_size)),
        "w_hh_l0": u(ks[1], (4 * H, H)),
        "b_ih_l0": u(ks[2], (4 * H,)),
        "b_hh_l0": u(ks[3], (4 * H,)),
        "w_ih_l1": u(ks[4], (4 * H, H)),
        "w_hh_l1": u(ks[5], (4 * H, H)),
        "b_ih_l1": u(ks[6], (4 * H,)),
        "b_hh_l1": u(ks[7], (4 * H,)),
        "fc_w": u(ks[8], (1, H)),
        "fc_b": u(ks[9], (1,)),
    }


def pack_params(raw, hp=128, op=128):
    """Repack PyTorch weights into 128-lane-per-gate, MXU-friendly layout."""
    H = raw["w_hh_l0"].shape[1]
    I = raw["w_ih_l0"].shape[1]

    def pack_gates(w, in_dim, rows):
        # w: (4H, in_dim) in PyTorch gate order [i,f,g,o] -> (rows, 4*hp)
        out = jnp.zeros((rows, 4 * hp), jnp.float32)
        for k in range(4):
            blk = w[k * H:(k + 1) * H, :].T                   # (in_dim, H)
            out = out.at[:in_dim, k * hp:k * hp + H].set(blk)
        return out

    def pack_bias(b_ih, b_hh):
        out = jnp.zeros((1, 4 * hp), jnp.float32)
        s = b_ih + b_hh
        for k in range(4):
            out = out.at[0, k * hp:k * hp + H].set(s[k * H:(k + 1) * H])
        return out

    wih0 = pack_gates(raw["w_ih_l0"], I, I)                   # (I,  4hp)
    whh0 = pack_gates(raw["w_hh_l0"], H, hp)                  # (hp, 4hp)
    b0 = pack_bias(raw["b_ih_l0"], raw["b_hh_l0"])

    w1_ih = pack_gates(raw["w_ih_l1"], H, hp)                 # (hp, 4hp)
    w1_hh = pack_gates(raw["w_hh_l1"], H, hp)                 # (hp, 4hp)
    w1 = jnp.concatenate([w1_ih, w1_hh], axis=0)              # (2hp, 4hp)
    b1 = pack_bias(raw["b_ih_l1"], raw["b_hh_l1"])

    wfc = jnp.zeros((hp, op), jnp.float32).at[:H, 0].set(raw["fc_w"][0])
    bfc = jnp.zeros((1, op), jnp.float32).at[0, 0].set(raw["fc_b"][0])

    return {"wih0": wih0, "whh0": whh0, "b0": b0,
            "w1": w1, "b1": b1, "wfc": wfc, "bfc": bfc}


# ---------------------------------------------------------------------------
# Pure-JAX reference of the PyTorch forward (eval mode)
# ---------------------------------------------------------------------------
def reference_forward(x, raw):
    B, T, I = x.shape
    H = raw["w_hh_l0"].shape[1]

    def cell(x_t, h, c, w_ih, w_hh, b_ih, b_hh):
        gates = x_t @ w_ih.T + h @ w_hh.T + b_ih + b_hh       # (B, 4H)
        i = jax.nn.sigmoid(gates[:, 0:H])
        f = jax.nn.sigmoid(gates[:, H:2 * H])
        g = jnp.tanh(gates[:, 2 * H:3 * H])
        o = jax.nn.sigmoid(gates[:, 3 * H:4 * H])
        c_new = f * c + i * g
        h_new = o * jnp.tanh(c_new)
        return h_new, c_new

    h0 = c0 = h1 = c1 = jnp.zeros((B, H), jnp.float32)
    for t in range(T):
        h0, c0 = cell(x[:, t, :], h0, c0, raw["w_ih_l0"], raw["w_hh_l0"],
                      raw["b_ih_l0"], raw["b_hh_l0"])
        h1, c1 = cell(h0, h1, c1, raw["w_ih_l1"], raw["w_hh_l1"],
                      raw["b_ih_l1"], raw["b_hh_l1"])
    return h1 @ raw["fc_w"].T + raw["fc_b"]


if __name__ == "__main__":
    B, T, I, H = 2, 8, 1, 50

    key = jax.random.PRNGKey(0)
    k_x, k_p = jax.random.split(key)
    x = jax.random.normal(k_x, (B, T, I), jnp.float32)

    raw = init_raw_params(k_p, input_size=I, hidden_size=H)
    packed = pack_params(raw)

    out = lstm_model_forward(x, packed)
    out = jax.block_until_ready(out)

    ref = reference_forward(x, raw)
    assert out.shape == (B, 1), out.shape
    assert jnp.allclose(out, ref, atol=1e-5, rtol=1e-5), (out, ref)

    print("KERNEL_OK")
</pallas_src>

<mosaic_0001>
module attributes {stable_mosaic.version = 11 : i64} {
  func.func @_lstm_kernel(%arg0: memref<8x8x1xf32, #tpu.memory_space<vmem>>, %arg1: memref<1x512xf32, #tpu.memory_space<vmem>>, %arg2: memref<128x512xf32, #tpu.memory_space<vmem>>, %arg3: memref<1x512xf32, #tpu.memory_space<vmem>>, %arg4: memref<256x512xf32, #tpu.memory_space<vmem>>, %arg5: memref<1x512xf32, #tpu.memory_space<vmem>>, %arg6: memref<128x128xf32, #tpu.memory_space<vmem>>, %arg7: memref<1x128xf32, #tpu.memory_space<vmem>>, %arg8: memref<8x128xf32, #tpu.memory_space<vmem>>) attributes {dimension_semantics = [], scalar_prefetch = 0 : i64, scratch_operands = 0 : i64, tpu.core_type = #tpu.core_type<tc>} {
    %c0 = arith.constant 0 : index
    %c0_0 = arith.constant 0 : index
    %0 = vector.load %arg1[%c0, %c0_0] : memref<1x512xf32, #tpu.memory_space<vmem>>, vector<1x512xf32>
    %c0_1 = arith.constant 0 : index
    %c0_2 = arith.constant 0 : index
    %1 = vector.load %arg2[%c0_1, %c0_2] : memref<128x512xf32, #tpu.memory_space<vmem>>, vector<128x512xf32>
    %c0_3 = arith.constant 0 : index
    %c0_4 = arith.constant 0 : index
    %2 = vector.load %arg4[%c0_3, %c0_4] : memref<256x512xf32, #tpu.memory_space<vmem>>, vector<256x512xf32>
    %c0_5 = arith.constant 0 : index
    %c0_6 = arith.constant 0 : index
    %3 = vector.load %arg3[%c0_5, %c0_6] : memref<1x512xf32, #tpu.memory_space<vmem>>, vector<1x512xf32>
    %4 = vector.shape_cast %3 : vector<1x512xf32> to vector<1x512xf32>
    %5 = vector.broadcast %4 : vector<1x512xf32> to vector<8x512xf32>
    %c0_7 = arith.constant 0 : index
    %c0_8 = arith.constant 0 : index
    %6 = vector.load %arg5[%c0_7, %c0_8] : memref<1x512xf32, #tpu.memory_space<vmem>>, vector<1x512xf32>
    %7 = vector.shape_cast %6 : vector<1x512xf32> to vector<1x512xf32>
    %8 = vector.broadcast %7 : vector<1x512xf32> to vector<8x512xf32>
    %cst = arith.constant 0.000000e+00 : f32
    %9 = vector.broadcast %cst : f32 to vector<8x128xf32>
    %c0_i32 = arith.constant 0 : i32
    %10 = arith.index_cast %c0_i32 : i32 to index
    %c0_9 = arith.constant 0 : index
    %c0_10 = arith.constant 0 : index
    %11 = vector.load %arg0[%10, %c0_9, %c0_10] : memref<8x8x1xf32, #tpu.memory_space<vmem>>, vector<1x8x1xf32>
    %12 = vector.shape_cast %11 : vector<1x8x1xf32> to vector<8x1xf32>
    %13 = vector.broadcast %12 : vector<8x1xf32> to vector<8x512xf32>
    %14 = vector.broadcast %0 : vector<1x512xf32> to vector<8x512xf32>
    %15 = arith.mulf %13, %14 : vector<8x512xf32>
    %cst_11 = arith.constant dense<0.000000e+00> : vector<8x512xf32>
    %16 = tpu.matmul %9, %1, %cst_11 {dimension_numbers = #tpu.dot_dimension_numbers<[1], [0], [0], [1], [0, 0, 1, 1], [], []>} : vector<8x128xf32>, vector<128x512xf32>, vector<8x512xf32> -> vector<8x512xf32>
    %17 = arith.addf %15, %16 : vector<8x512xf32>
    %18 = arith.addf %17, %5 : vector<8x512xf32>
    %19 = vector.extract_strided_slice %18 {offsets = [0, 0], sizes = [8, 128], strides = [1, 1]} : vector<8x512xf32> to vector<8x128xf32>
    %20 = arith.negf %19 : vector<8x128xf32>
    %21 = math.exp %20 : vector<8x128xf32>
    %cst_12 = arith.constant 1.000000e+00 : f32
    %22 = vector.broadcast %cst_12 : f32 to vector<8x128xf32>
    %23 = arith.addf %22, %21 : vector<8x128xf32>
    %24 = arith.divf %22, %23 : vector<8x128xf32>
    %25 = vector.extract_strided_slice %18 {offsets = [0, 128], sizes = [8, 128], strides = [1, 1]} : vector<8x512xf32> to vector<8x128xf32>
    %26 = arith.negf %25 : vector<8x128xf32>
    %27 = math.exp %26 : vector<8x128xf32>
    %cst_13 = arith.constant 1.000000e+00 : f32
    %28 = vector.broadcast %cst_13 : f32 to vector<8x128xf32>
    %29 = arith.addf %28, %27 : vector<8x128xf32>
    %30 = arith.divf %28, %29 : vector<8x128xf32>
    %31 = vector.extract_strided_slice %18 {offsets = [0, 256], sizes = [8, 128], strides = [1, 1]} : vector<8x512xf32> to vector<8x128xf32>
    %32 = math.tanh %31 : vector<8x128xf32>
    %33 = vector.extract_strided_slice %18 {offsets = [0, 384], sizes = [8, 128], strides = [1, 1]} : vector<8x512xf32> to vector<8x128xf32>
    %34 = arith.negf %33 : vector<8x128xf32>
    %35 = math.exp %34 : vector<8x128xf32>
    %cst_14 = arith.constant 1.000000e+00 : f32
    %36 = vector.broadcast %cst_14 : f32 to vector<8x128xf32>
    %37 = arith.addf %36, %35 : vector<8x128xf32>
    %38 = arith.divf %36, %37 : vector<8x128xf32>
    %39 = arith.mulf %30, %9 : vector<8x128xf32>
    %40 = arith.mulf %24, %32 : vector<8x128xf32>
    %41 = arith.addf %39, %40 : vector<8x128xf32>
    %42 = math.tanh %41 : vector<8x128xf32>
    %43 = arith.mulf %38, %42 : vector<8x128xf32>
    %44 = tpu.concatenate %43, %9 in 1 : vector<8x128xf32>, vector<8x128xf32> -> vector<8x256xf32>
    %cst_15 = arith.constant dense<0.000000e+00> : vector<8x512xf32>
    %45 = tpu.matmul %44, %2, %cst_15 {dimension_numbers = #tpu.dot_dimension_numbers<[1], [0], [0], [1], [0, 0, 1, 1], [], []>} : vector<8x256xf32>, vector<256x512xf32>, vector<8x512xf32> -> vector<8x512xf32>
    %46 = arith.addf %45, %8 : vector<8x512xf32>
    %47 = vector.extract_strided_slice %46 {offsets = [0, 0], sizes = [8, 128], strides = [1, 1]} : vector<8x512xf32> to vector<8x128xf32>
    %48 = arith.negf %47 : vector<8x128xf32>
    %49 = math.exp %48 : vector<8x128xf32>
    %cst_16 = arith.constant 1.000000e+00 : f32
    %50 = vector.broadcast %cst_16 : f32 to vector<8x128xf32>
    %51 = arith.addf %50, %49 : vector<8x128xf32>
    %52 = arith.divf %50, %51 : vector<8x128xf32>
    %53 = vector.extract_strided_slice %46 {offsets = [0, 128], sizes = [8, 128], strides = [1, 1]} : vector<8x512xf32> to vector<8x128xf32>
    %54 = arith.negf %53 : vector<8x128xf32>
    %55 = math.exp %54 : vector<8x128xf32>
    %cst_17 = arith.constant 1.000000e+00 : f32
    %56 = vector.broadcast %cst_17 : f32 to vector<8x128xf32>
    %57 = arith.addf %56, %55 : vector<8x128xf32>
    %58 = arith.divf %56, %57 : vector<8x128xf32>
    %59 = vector.extract_strided_slice %46 {offsets = [0, 256], sizes = [8, 128], strides = [1, 1]} : vector<8x512xf32> to vector<8x128xf32>
    %60 = math.tanh %59 : vector<8x128xf32>
    %61 = vector.extract_strided_slice %46 {offsets = [0, 384], sizes = [8, 128], strides = [1, 1]} : vector<8x512xf32> to vector<8x128xf32>
    %62 = arith.negf %61 : vector<8x128xf32>
    %63 = math.exp %62 : vector<8x128xf32>
    %cst_18 = arith.constant 1.000000e+00 : f32
    %64 = vector.broadcast %cst_18 : f32 to vector<8x128xf32>
    %65 = arith.addf %64, %63 : vector<8x128xf32>
    %66 = arith.divf %64, %65 : vector<8x128xf32>
    %67 = arith.mulf %58, %9 : vector<8x128xf32>
    %68 = arith.mulf %52, %60 : vector<8x128xf32>
    %69 = arith.addf %67, %68 : vector<8x128xf32>
    %70 = math.tanh %69 : vector<8x128xf32>
    %71 = arith.mulf %66, %70 : vector<8x128xf32>
    %c1_i32 = arith.constant 1 : i32
    %72 = arith.index_cast %c1_i32 : i32 to index
    %c0_19 = arith.constant 0 : index
    %c0_20 = arith.constant 0 : index
    %73 = vector.load %arg0[%72, %c0_19, %c0_20] : memref<8x8x1xf32, #tpu.memory_space<vmem>>, vector<1x8x1xf32>
    %74 = vector.shape_cast %73 : vector<1x8x1xf32> to vector<8x1xf32>
    %75 = vector.broadcast %74 : vector<8x1xf32> to vector<8x512xf32>
    %76 = vector.broadcast %0 : vector<1x512xf32> to vector<8x512xf32>
    %77 = arith.mulf %75, %76 : vector<8x512xf32>
    %cst_21 = arith.constant dense<0.000000e+00> : vector<8x512xf32>
    %78 = tpu.matmul %43, %1, %cst_21 {dimension_numbers = #tpu.dot_dimension_numbers<[1], [0], [0], [1], [0, 0, 1, 1], [], []>} : vector<8x128xf32>, vector<128x512xf32>, vector<8x512xf32> -> vector<8x512xf32>
    %79 = arith.addf %77, %78 : vector<8x512xf32>
    %80 = arith.addf %79, %5 : vector<8x512xf32>
    %81 = vector.extract_strided_slice %80 {offsets = [0, 0], sizes = [8, 128], strides = [1, 1]} : vector<8x512xf32> to vector<8x128xf32>
    %82 = arith.negf %81 : vector<8x128xf32>
    %83 = math.exp %82 : vector<8x128xf32>
    %cst_22 = arith.constant 1.000000e+00 : f32
    %84 = vector.broadcast %cst_22 : f32 to vector<8x128xf32>
    %85 = arith.addf %84, %83 : vector<8x128xf32>
    %86 = arith.divf %84, %85 : vector<8x128xf32>
    %87 = vector.extract_strided_slice %80 {offsets = [0, 128], sizes = [8, 128], strides = [1, 1]} : vector<8x512xf32> to vector<8x128xf32>
    %88 = arith.negf %87 : vector<8x128xf32>
    %89 = math.exp %88 : vector<8x128xf32>
    %cst_23 = arith.constant 1.000000e+00 : f32
    %90 = vector.broadcast %cst_23 : f32 to vector<8x128xf32>
    %91 = arith.addf %90, %89 : vector<8x128xf32>
    %92 = arith.divf %90, %91 : vector<8x128xf32>
    %93 = vector.extract_strided_slice %80 {offsets = [0, 256], sizes = [8, 128], strides = [1, 1]} : vector<8x512xf32> to vector<8x128xf32>
    %94 = math.tanh %93 : vector<8x128xf32>
    %95 = vector.extract_strided_slice %80 {offsets = [0, 384], sizes = [8, 128], strides = [1, 1]} : vector<8x512xf32> to vector<8x128xf32>
    %96 = arith.negf %95 : vector<8x128xf32>
    %97 = math.exp %96 : vector<8x128xf32>
    %cst_24 = arith.constant 1.000000e+00 : f32
    %98 = vector.broadcast %cst_24 : f32 to vector<8x128xf32>
    %99 = arith.addf %98, %97 : vector<8x128xf32>
    %100 = arith.divf %98, %99 : vector<8x128xf32>
    %101 = arith.mulf %92, %41 : vector<8x128xf32>
    %102 = arith.mulf %86, %94 : vector<8x128xf32>
    %103 = arith.addf %101, %102 : vector<8x128xf32>
    %104 = math.tanh %103 : vector<8x128xf32>
    %105 = arith.mulf %100, %104 : vector<8x128xf32>
    %106 = tpu.concatenate %105, %71 in 1 : vector<8x128xf32>, vector<8x128xf32> -> vector<8x256xf32>
    %cst_25 = arith.constant dense<0.000000e+00> : vector<8x512xf32>
    %107 = tpu.matmul %106, %2, %cst_25 {dimension_numbers = #tpu.dot_dimension_numbers<[1], [0], [0], [1], [0, 0, 1, 1], [], []>} : vector<8x256xf32>, vector<256x512xf32>, vector<8x512xf32> -> vector<8x512xf32>
    %108 = arith.addf %107, %8 : vector<8x512xf32>
    %109 = vector.extract_strided_slice %108 {offsets = [0, 0], sizes = [8, 128], strides = [1, 1]} : vector<8x512xf32> to vector<8x128xf32>
    %110 = arith.negf %109 : vector<8x128xf32>
    %111 = math.exp %110 : vector<8x128xf32>
    %cst_26 = arith.constant 1.000000e+00 : f32
    %112 = vector.broadcast %cst_26 : f32 to vector<8x128xf32>
    %113 = arith.addf %112, %111 : vector<8x128xf32>
    %114 = arith.divf %112, %113 : vector<8x128xf32>
    %115 = vector.extract_strided_slice %108 {offsets = [0, 128], sizes = [8, 128], strides = [1, 1]} : vector<8x512xf32> to vector<8x128xf32>
    %116 = arith.negf %115 : vector<8x128xf32>
    %117 = math.exp %116 : vector<8x128xf32>
    %cst_27 = arith.constant 1.000000e+00 : f32
    %118 = vector.broadcast %cst_27 : f32 to vector<8x128xf32>
    %119 = arith.addf %118, %117 : vector<8x128xf32>
    %120 = arith.divf %118, %119 : vector<8x128xf32>
    %121 = vector.extract_strided_slice %108 {offsets = [0, 256], sizes = [8, 128], strides = [1, 1]} : vector<8x512xf32> to vector<8x128xf32>
    %122 = math.tanh %121 : vector<8x128xf32>
    %123 = vector.extract_strided_slice %108 {offsets = [0, 384], sizes = [8, 128], strides = [1, 1]} : vector<8x512xf32> to vector<8x128xf32>
    %124 = arith.negf %123 : vector<8x128xf32>
    %125 = math.exp %124 : vector<8x128xf32>
    %cst_28 = arith.constant 1.000000e+00 : f32
    %126 = vector.broadcast %cst_28 : f32 to vector<8x128xf32>
    %127 = arith.addf %126, %125 : vector<8x128xf32>
    %128 = arith.divf %126, %127 : vector<8x128xf32>
    %129 = arith.mulf %120, %69 : vector<8x128xf32>
    %130 = arith.mulf %114, %122 : vector<8x128xf32>
    %131 = arith.addf %129, %130 : vector<8x128xf32>
    %132 = math.tanh %131 : vector<8x128xf32>
    %133 = arith.mulf %128, %132 : vector<8x128xf32>
    %c2_i32 = arith.constant 2 : i32
    %134 = arith.index_cast %c2_i32 : i32 to index
    %c0_29 = arith.constant 0 : index
    %c0_30 = arith.constant 0 : index
    %135 = vector.load %arg0[%134, %c0_29, %c0_30] : memref<8x8x1xf32, #tpu.memory_space<vmem>>, vector<1x8x1xf32>
    %136 = vector.shape_cast %135 : vector<1x8x1xf32> to vector<8x1xf32>
    %137 = vector.broadcast %136 : vector<8x1xf32> to vector<8x512xf32>
    %138 = vector.broadcast %0 : vector<1x512xf32> to vector<8x512xf32>
    %139 = arith.mulf %137, %138 : vector<8x512xf32>
    %cst_31 = arith.constant dense<0.000000e+00> : vector<8x512xf32>
    %140 = tpu.matmul %105, %1, %cst_31 {dimension_numbers = #tpu.dot_dimension_numbers<[1], [0], [0], [1], [0, 0, 1, 1], [], []>} : vector<8x128xf32>, vector<128x512xf32>, vector<8x512xf32> -> vector<8x512xf32>
    %141 = arith.addf %139, %140 : vector<8x512xf32>
    %142 = arith.addf %141, %5 : vector<8x512xf32>
    %143 = vector.extract_strided_slice %142 {offsets = [0, 0], sizes = [8, 128], strides = [1, 1]} : vector<8x512xf32> to vector<8x128xf32>
    %144 = arith.negf %143 : vector<8x128xf32>
    %145 = math.exp %144 : vector<8x128xf32>
    %cst_32 = arith.constant 1.000000e+00 : f32
    %146 = vector.broadcast %cst_32 : f32 to vector<8x128xf32>
    %147 = arith.addf %146, %145 : vector<8x128xf32>
    %148 = arith.divf %146, %147 : vector<8x128xf32>
    %149 = vector.extract_strided_slice %142 {offsets = [0, 128], sizes = [8, 128], strides = [1, 1]} : vector<8x512xf32> to vector<8x128xf32>
    %150 = arith.negf %149 : vector<8x128xf32>
    %151 = math.exp %150 : vector<8x128xf32>
    %cst_33 = arith.constant 1.000000e+00 : f32
    %152 = vector.broadcast %cst_33 : f32 to vector<8x128xf32>
    %153 = arith.addf %152, %151 : vector<8x128xf32>
    %154 = arith.divf %152, %153 : vector<8x128xf32>
    %155 = vector.extract_strided_slice %142 {offsets = [0, 256], sizes = [8, 128], strides = [1, 1]} : vector<8x512xf32> to vector<8x128xf32>
    %156 = math.tanh %155 : vector<8x128xf32>
    %157 = vector.extract_strided_slice %142 {offsets = [0, 384], sizes = [8, 128], strides = [1, 1]} : vector<8x512xf32> to vector<8x128xf32>
    %158 = arith.negf %157 : vector<8x128xf32>
    %159 = math.exp %158 : vector<8x128xf32>
    %cst_34 = arith.constant 1.000000e+00 : f32
    %160 = vector.broadcast %cst_34 : f32 to vector<8x128xf32>
    %161 = arith.addf %160, %159 : vector<8x128xf32>
    %162 = arith.divf %160, %161 : vector<8x128xf32>
    %163 = arith.mulf %154, %103 : vector<8x128xf32>
    %164 = arith.mulf %148, %156 : vector<8x128xf32>
    %165 = arith.addf %163, %164 : vector<8x128xf32>
    %166 = math.tanh %165 : vector<8x128xf32>
    %167 = arith.mulf %162, %166 : vector<8x128xf32>
    %168 = tpu.concatenate %167, %133 in 1 : vector<8x128xf32>, vector<8x128xf32> -> vector<8x256xf32>
    %cst_35 = arith.constant dense<0.000000e+00> : vector<8x512xf32>
    %169 = tpu.matmul %168, %2, %cst_35 {dimension_numbers = #tpu.dot_dimension_numbers<[1], [0], [0], [1], [0, 0, 1, 1], [], []>} : vector<8x256xf32>, vector<256x512xf32>, vector<8x512xf32> -> vector<8x512xf32>
    %170 = arith.addf %169, %8 : vector<8x512xf32>
    %171 = vector.extract_strided_slice %170 {offsets = [0, 0], sizes = [8, 128], strides = [1, 1]} : vector<8x512xf32> to vector<8x128xf32>
    %172 = arith.negf %171 : vector<8x128xf32>
    %173 = math.exp %172 : vector<8x128xf32>
    %cst_36 = arith.constant 1.000000e+00 : f32
    %174 = vector.broadcast %cst_36 : f32 to vector<8x128xf32>
    %175 = arith.addf %174, %173 : vector<8x128xf32>
    %176 = arith.divf %174, %175 : vector<8x128xf32>
    %177 = vector.extract_strided_slice %170 {offsets = [0, 128], sizes = [8, 128], strides = [1, 1]} : vector<8x512xf32> to vector<8x128xf32>
    %178 = arith.negf %177 : vector<8x128xf32>
    %179 = math.exp %178 : vector<8x128xf32>
    %cst_37 = arith.constant 1.000000e+00 : f32
    %180 = vector.broadcast %cst_37 : f32 to vector<8x128xf32>
    %181 = arith.addf %180, %179 : vector<8x128xf32>
    %182 = arith.divf %180, %181 : vector<8x128xf32>
    %183 = vector.extract_strided_slice %170 {offsets = [0, 256], sizes = [8, 128], strides = [1, 1]} : vector<8x512xf32> to vector<8x128xf32>
    %184 = math.tanh %183 : vector<8x128xf32>
    %185 = vector.extract_strided_slice %170 {offsets = [0, 384], sizes = [8, 128], strides = [1, 1]} : vector<8x512xf32> to vector<8x128xf32>
    %186 = arith.negf %185 : vector<8x128xf32>
    %187 = math.exp %186 : vector<8x128xf32>
    %cst_38 = arith.constant 1.000000e+00 : f32
    %188 = vector.broadcast %cst_38 : f32 to vector<8x128xf32>
    %189 = arith.addf %188, %187 : vector<8x128xf32>
    %190 = arith.divf %188, %189 : vector<8x128xf32>
    %191 = arith.mulf %182, %131 : vector<8x128xf32>
    %192 = arith.mulf %176, %184 : vector<8x128xf32>
    %193 = arith.addf %191, %192 : vector<8x128xf32>
    %194 = math.tanh %193 : vector<8x128xf32>
    %195 = arith.mulf %190, %194 : vector<8x128xf32>
    %c3_i32 = arith.constant 3 : i32
    %196 = arith.index_cast %c3_i32 : i32 to index
    %c0_39 = arith.constant 0 : index
    %c0_40 = arith.constant 0 : index
    %197 = vector.load %arg0[%196, %c0_39, %c0_40] : memref<8x8x1xf32, #tpu.memory_space<vmem>>, vector<1x8x1xf32>
    %198 = vector.shape_cast %197 : vector<1x8x1xf32> to vector<8x1xf32>
    %199 = vector.broadcast %198 : vector<8x1xf32> to vector<8x512xf32>
    %200 = vector.broadcast %0 : vector<1x512xf32> to vector<8x512xf32>
    %201 = arith.mulf %199, %200 : vector<8x512xf32>
    %cst_41 = arith.constant dense<0.000000e+00> : vector<8x512xf32>
    %202 = tpu.matmul %167, %1, %cst_41 {dimension_numbers = #tpu.dot_dimension_numbers<[1], [0], [0], [1], [0, 0, 1, 1], [], []>} : vector<8x128xf32>, vector<128x512xf32>, vector<8x512xf32> -> vector<8x512xf32>
    %203 = arith.addf %201, %202 : vector<8x512xf32>
    %204 = arith.addf %203, %5 : vector<8x512xf32>
    %205 = vector.extract_strided_slice %204 {offsets = [0, 0], sizes = [8, 128], strides = [1, 1]} : vector<8x512xf32> to vector<8x128xf32>
    %206 = arith.negf %205 : vector<8x128xf32>
    %207 = math.exp %206 : vector<8x128xf32>
    %cst_42 = arith.constant 1.000000e+00 : f32
    %208 = vector.broadcast %cst_42 : f32 to vector<8x128xf32>
    %209 = arith.addf %208, %207 : vector<8x128xf32>
    %210 = arith.divf %208, %209 : vector<8x128xf32>
    %211 = vector.extract_strided_slice %204 {offsets = [0, 128], sizes = [8, 128], strides = [1, 1]} : vector<8x512xf32> to vector<8x128xf32>
    %212 = arith.negf %211 : vector<8x128xf32>
    %213 = math.exp %212 : vector<8x128xf32>
    %cst_43 = arith.constant 1.000000e+00 : f32
    %214 = vector.broadcast %cst_43 : f32 to vector<8x128xf32>
    %215 = arith.addf %214, %213 : vector<8x128xf32>
    %216 = arith.divf %214, %215 : vector<8x128xf32>
    %217 = vector.extract_strided_slice %204 {offsets = [0, 256], sizes = [8, 128], strides = [1, 1]} : vector<8x512xf32> to vector<8x128xf32>
    %218 = math.tanh %217 : vector<8x128xf32>
    %219 = vector.extract_strided_slice %204 {offsets = [0, 384], sizes = [8, 128], strides = [1, 1]} : vector<8x512xf32> to vector<8x128xf32>
    %220 = arith.negf %219 : vector<8x128xf32>
    %221 = math.exp %220 : vector<8x128xf32>
    %cst_44 = arith.constant 1.000000e+00 : f32
    %222 = vector.broadcast %cst_44 : f32 to vector<8x128xf32>
    %223 = arith.addf %222, %221 : vector<8x128xf32>
    %224 = arith.divf %222, %223 : vector<8x128xf32>
    %225 = arith.mulf %216, %165 : vector<8x128xf32>
    %226 = arith.mulf %210, %218 : vector<8x128xf32>
    %227 = arith.addf %225, %226 : vector<8x128xf32>
    %228 = math.tanh %227 : vector<8x128xf32>
    %229 = arith.mulf %224, %228 : vector<8x128xf32>
    %230 = tpu.concatenate %229, %195 in 1 : vector<8x128xf32>, vector<8x128xf32> -> vector<8x256xf32>
    %cst_45 = arith.constant dense<0.000000e+00> : vector<8x512xf32>
    %231 = tpu.matmul %230, %2, %cst_45 {dimension_numbers = #tpu.dot_dimension_numbers<[1], [0], [0], [1], [0, 0, 1, 1], [], []>} : vector<8x256xf32>, vector<256x512xf32>, vector<8x512xf32> -> vector<8x512xf32>
    %232 = arith.addf %231, %8 : vector<8x512xf32>
    %233 = vector.extract_strided_slice %232 {offsets = [0, 0], sizes = [8, 128], strides = [1, 1]} : vector<8x512xf32> to vector<8x128xf32>
    %234 = arith.negf %233 : vector<8x128xf32>
    %235 = math.exp %234 : vector<8x128xf32>
    %cst_46 = arith.constant 1.000000e+00 : f32
    %236 = vector.broadcast %cst_46 : f32 to vector<8x128xf32>
    %237 = arith.addf %236, %235 : vector<8x128xf32>
    %238 = arith.divf %236, %237 : vector<8x128xf32>
    %239 = vector.extract_strided_slice %232 {offsets = [0, 128], sizes = [8, 128], strides = [1, 1]} : vector<8x512xf32> to vector<8x128xf32>
    %240 = arith.negf %239 : vector<8x128xf32>
    %241 = math.exp %240 : vector<8x128xf32>
    %cst_47 = arith.constant 1.000000e+00 : f32
    %242 = vector.broadcast %cst_47 : f32 to vector<8x128xf32>
    %243 = arith.addf %242, %241 : vector<8x128xf32>
    %244 = arith.divf %242, %243 : vector<8x128xf32>
    %245 = vector.extract_strided_slice %232 {offsets = [0, 256], sizes = [8, 128], strides = [1, 1]} : vector<8x512xf32> to vector<8x128xf32>
    %246 = math.tanh %245 : vector<8x128xf32>
    %247 = vector.extract_strided_slice %232 {offsets = [0, 384], sizes = [8, 128], strides = [1, 1]} : vector<8x512xf32> to vector<8x128xf32>
    %248 = arith.negf %247 : vector<8x128xf32>
    %249 = math.exp %248 : vector<8x128xf32>
    %cst_48 = arith.constant 1.000000e+00 : f32
    %250 = vector.broadcast %cst_48 : f32 to vector<8x128xf32>
    %251 = arith.addf %250, %249 : vector<8x128xf32>
    %252 = arith.divf %250, %251 : vector<8x128xf32>
    %253 = arith.mulf %244, %193 : vector<8x128xf32>
    %254 = arith.mulf %238, %246 : vector<8x128xf32>
    %255 = arith.addf %253, %254 : vector<8x128xf32>
    %256 = math.tanh %255 : vector<8x128xf32>
    %257 = arith.mulf %252, %256 : vector<8x128xf32>
    %c4_i32 = arith.constant 4 : i32
    %258 = arith.index_cast %c4_i32 : i32 to index
    %c0_49 = arith.constant 0 : index
    %c0_50 = arith.constant 0 : index
    %259 = vector.load %arg0[%258, %c0_49, %c0_50] : memref<8x8x1xf32, #tpu.memory_space<vmem>>, vector<1x8x1xf32>
    %260 = vector.shape_cast %259 : vector<1x8x1xf32> to vector<8x1xf32>
    %261 = vector.broadcast %260 : vector<8x1xf32> to vector<8x512xf32>
    %262 = vector.broadcast %0 : vector<1x512xf32> to vector<8x512xf32>
    %263 = arith.mulf %261, %262 : vector<8x512xf32>
    %cst_51 = arith.constant dense<0.000000e+00> : vector<8x512xf32>
    %264 = tpu.matmul %229, %1, %cst_51 {dimension_numbers = #tpu.dot_dimension_numbers<[1], [0], [0], [1], [0, 0, 1, 1], [], []>} : vector<8x128xf32>, vector<128x512xf32>, vector<8x512xf32> -> vector<8x512xf32>
    %265 = arith.addf %263, %264 : vector<8x512xf32>
    %266 = arith.addf %265, %5 : vector<8x512xf32>
    %267 = vector.extract_strided_slice %266 {offsets = [0, 0], sizes = [8, 128], strides = [1, 1]} : vector<8x512xf32> to vector<8x128xf32>
    %268 = arith.negf %267 : vector<8x128xf32>
    %269 = math.exp %268 : vector<8x128xf32>
    %cst_52 = arith.constant 1.000000e+00 : f32
    %270 = vector.broadcast %cst_52 : f32 to vector<8x128xf32>
    %271 = arith.addf %270, %269 : vector<8x128xf32>
    %272 = arith.divf %270, %271 : vector<8x128xf32>
    %273 = vector.extract_strided_slice %266 {offsets = [0, 128], sizes = [8, 128], strides = [1, 1]} : vector<8x512xf32> to vector<8x128xf32>
    %274 = arith.negf %273 : vector<8x128xf32>
    %275 = math.exp %274 : vector<8x128xf32>
    %cst_53 = arith.constant 1.000000e+00 : f32
    %276 = vector.broadcast %cst_53 : f32 to vector<8x128xf32>
    %277 = arith.addf %276, %275 : vector<8x128xf32>
    %278 = arith.divf %276, %277 : vector<8x128xf32>
    %279 = vector.extract_strided_slice %266 {offsets = [0, 256], sizes = [8, 128], strides = [1, 1]} : vector<8x512xf32> to vector<8x128xf32>
    %280 = math.tanh %279 : vector<8x128xf32>
    %281 = vector.extract_strided_slice %266 {offsets = [0, 384], sizes = [8, 128], strides = [1, 1]} : vector<8x512xf32> to vector<8x128xf32>
    %282 = arith.negf %281 : vector<8x128xf32>
    %283 = math.exp %282 : vector<8x128xf32>
    %cst_54 = arith.constant 1.000000e+00 : f32
    %284 = vector.broadcast %cst_54 : f32 to vector<8x128xf32>
    %285 = arith.addf %284, %283 : vector<8x128xf32>
    %286 = arith.divf %284, %285 : vector<8x128xf32>
    %287 = arith.mulf %278, %227 : vector<8x128xf32>
    %288 = arith.mulf %272, %280 : vector<8x128xf32>
    %289 = arith.addf %287, %288 : vector<8x128xf32>
    %290 = math.tanh %289 : vector<8x128xf32>
    %291 = arith.mulf %286, %290 : vector<8x128xf32>
    %292 = tpu.concatenate %291, %257 in 1 : vector<8x128xf32>, vector<8x128xf32> -> vector<8x256xf32>
    %cst_55 = arith.constant dense<0.000000e+00> : vector<8x512xf32>
    %293 = tpu.matmul %292, %2, %cst_55 {dimension_numbers = #tpu.dot_dimension_numbers<[1], [0], [0], [1], [0, 0, 1, 1], [], []>} : vector<8x256xf32>, vector<256x512xf32>, vector<8x512xf32> -> vector<8x512xf32>
    %294 = arith.addf %293, %8 : vector<8x512xf32>
    %295 = vector.extract_strided_slice %294 {offsets = [0, 0], sizes = [8, 128], strides = [1, 1]} : vector<8x512xf32> to vector<8x128xf32>
    %296 = arith.negf %295 : vector<8x128xf32>
    %297 = math.exp %296 : vector<8x128xf32>
    %cst_56 = arith.constant 1.000000e+00 : f32
    %298 = vector.broadcast %cst_56 : f32 to vector<8x128xf32>
    %299 = arith.addf %298, %297 : vector<8x128xf32>
    %300 = arith.divf %298, %299 : vector<8x128xf32>
    %301 = vector.extract_strided_slice %294 {offsets = [0, 128], sizes = [8, 128], strides = [1, 1]} : vector<8x512xf32> to vector<8x128xf32>
    %302 = arith.negf %301 : vector<8x128xf32>
    %303 = math.exp %302 : vector<8x128xf32>
    %cst_57 = arith.constant 1.000000e+00 : f32
    %304 = vector.broadcast %cst_57 : f32 to vector<8x128xf32>
    %305 = arith.addf %304, %303 : vector<8x128xf32>
    %306 = arith.divf %304, %305 : vector<8x128xf32>
    %307 = vector.extract_strided_slice %294 {offsets = [0, 256], sizes = [8, 128], strides = [1, 1]} : vector<8x512xf32> to vector<8x128xf32>
    %308 = math.tanh %307 : vector<8x128xf32>
    %309 = vector.extract_strided_slice %294 {offsets = [0, 384], sizes = [8, 128], strides = [1, 1]} : vector<8x512xf32> to vector<8x128xf32>
    %310 = arith.negf %309 : vector<8x128xf32>
    %311 = math.exp %310 : vector<8x128xf32>
    %cst_58 = arith.constant 1.000000e+00 : f32
    %312 = vector.broadcast %cst_58 : f32 to vector<8x128xf32>
    %313 = arith.addf %312, %311 : vector<8x128xf32>
    %314 = arith.divf %312, %313 : vector<8x128xf32>
    %315 = arith.mulf %306, %255 : vector<8x128xf32>
    %316 = arith.mulf %300, %308 : vector<8x128xf32>
    %317 = arith.addf %315, %316 : vector<8x128xf32>
    %318 = math.tanh %317 : vector<8x128xf32>
    %319 = arith.mulf %314, %318 : vector<8x128xf32>
    %c5_i32 = arith.constant 5 : i32
    %320 = arith.index_cast %c5_i32 : i32 to index
    %c0_59 = arith.constant 0 : index
    %c0_60 = arith.constant 0 : index
    %321 = vector.load %arg0[%320, %c0_59, %c0_60] : memref<8x8x1xf32, #tpu.memory_space<vmem>>, vector<1x8x1xf32>
    %322 = vector.shape_cast %321 : vector<1x8x1xf32> to vector<8x1xf32>
    %323 = vector.broadcast %322 : vector<8x1xf32> to vector<8x512xf32>
    %324 = vector.broadcast %0 : vector<1x512xf32> to vector<8x512xf32>
    %325 = arith.mulf %323, %324 : vector<8x512xf32>
    %cst_61 = arith.constant dense<0.000000e+00> : vector<8x512xf32>
    %326 = tpu.matmul %291, %1, %cst_61 {dimension_numbers = #tpu.dot_dimension_numbers<[1], [0], [0], [1], [0, 0, 1, 1], [], []>} : vector<8x128xf32>, vector<128x512xf32>, vector<8x512xf32> -> vector<8x512xf32>
    %327 = arith.addf %325, %326 : vector<8x512xf32>
    %328 = arith.addf %327, %5 : vector<8x512xf32>
    %329 = vector.extract_strided_slice %328 {offsets = [0, 0], sizes = [8, 128], strides = [1, 1]} : vector<8x512xf32> to vector<8x128xf32>
    %330 = arith.negf %329 : vector<8x128xf32>
    %331 = math.exp %330 : vector<8x128xf32>
    %cst_62 = arith.constant 1.000000e+00 : f32
    %332 = vector.broadcast %cst_62 : f32 to vector<8x128xf32>
    %333 = arith.addf %332, %331 : vector<8x128xf32>
    %334 = arith.divf %332, %333 : vector<8x128xf32>
    %335 = vector.extract_strided_slice %328 {offsets = [0, 128], sizes = [8, 128], strides = [1, 1]} : vector<8x512xf32> to vector<8x128xf32>
    %336 = arith.negf %335 : vector<8x128xf32>
    %337 = math.exp %336 : vector<8x128xf32>
    %cst_63 = arith.constant 1.000000e+00 : f32
    %338 = vector.broadcast %cst_63 : f32 to vector<8x128xf32>
    %339 = arith.addf %338, %337 : vector<8x128xf32>
    %340 = arith.divf %338, %339 : vector<8x128xf32>
    %341 = vector.extract_strided_slice %328 {offsets = [0, 256], sizes = [8, 128], strides = [1, 1]} : vector<8x512xf32> to vector<8x128xf32>
    %342 = math.tanh %341 : vector<8x128xf32>
    %343 = vector.extract_strided_slice %328 {offsets = [0, 384], sizes = [8, 128], strides = [1, 1]} : vector<8x512xf32> to vector<8x128xf32>
    %344 = arith.negf %343 : vector<8x128xf32>
    %345 = math.exp %344 : vector<8x128xf32>
    %cst_64 = arith.constant 1.000000e+00 : f32
    %346 = vector.broadcast %cst_64 : f32 to vector<8x128xf32>
    %347 = arith.addf %346, %345 : vector<8x128xf32>
    %348 = arith.divf %346, %347 : vector<8x128xf32>
    %349 = arith.mulf %340, %289 : vector<8x128xf32>
    %350 = arith.mulf %334, %342 : vector<8x128xf32>
    %351 = arith.addf %349, %350 : vector<8x128xf32>
    %352 = math.tanh %351 : vector<8x128xf32>
    %353 = arith.mulf %348, %352 : vector<8x128xf32>
    %354 = tpu.concatenate %353, %319 in 1 : vector<8x128xf32>, vector<8x128xf32> -> vector<8x256xf32>
    %cst_65 = arith.constant dense<0.000000e+00> : vector<8x512xf32>
    %355 = tpu.matmul %354, %2, %cst_65 {dimension_numbers = #tpu.dot_dimension_numbers<[1], [0], [0], [1], [0, 0, 1, 1], [], []>} : vector<8x256xf32>, vector<256x512xf32>, vector<8x512xf32> -> vector<8x512xf32>
    %356 = arith.addf %355, %8 : vector<8x512xf32>
    %357 = vector.extract_strided_slice %356 {offsets = [0, 0], sizes = [8, 128], strides = [1, 1]} : vector<8x512xf32> to vector<8x128xf32>
    %358 = arith.negf %357 : vector<8x128xf32>
    %359 = math.exp %358 : vector<8x128xf32>
    %cst_66 = arith.constant 1.000000e+00 : f32
    %360 = vector.broadcast %cst_66 : f32 to vector<8x128xf32>
    %361 = arith.addf %360, %359 : vector<8x128xf32>
    %362 = arith.divf %360, %361 : vector<8x128xf32>
    %363 = vector.extract_strided_slice %356 {offsets = [0, 128], sizes = [8, 128], strides = [1, 1]} : vector<8x512xf32> to vector<8x128xf32>
    %364 = arith.negf %363 : vector<8x128xf32>
    %365 = math.exp %364 : vector<8x128xf32>
    %cst_67 = arith.constant 1.000000e+00 : f32
    %366 = vector.broadcast %cst_67 : f32 to vector<8x128xf32>
    %367 = arith.addf %366, %365 : vector<8x128xf32>
    %368 = arith.divf %366, %367 : vector<8x128xf32>
    %369 = vector.extract_strided_slice %356 {offsets = [0, 256], sizes = [8, 128], strides = [1, 1]} : vector<8x512xf32> to vector<8x128xf32>
    %370 = math.tanh %369 : vector<8x128xf32>
    %371 = vector.extract_strided_slice %356 {offsets = [0, 384], sizes = [8, 128], strides = [1, 1]} : vector<8x512xf32> to vector<8x128xf32>
    %372 = arith.negf %371 : vector<8x128xf32>
    %373 = math.exp %372 : vector<8x128xf32>
    %cst_68 = arith.constant 1.000000e+00 : f32
    %374 = vector.broadcast %cst_68 : f32 to vector<8x128xf32>
    %375 = arith.addf %374, %373 : vector<8x128xf32>
    %376 = arith.divf %374, %375 : vector<8x128xf32>
    %377 = arith.mulf %368, %317 : vector<8x128xf32>
    %378 = arith.mulf %362, %370 : vector<8x128xf32>
    %379 = arith.addf %377, %378 : vector<8x128xf32>
    %380 = math.tanh %379 : vector<8x128xf32>
    %381 = arith.mulf %376, %380 : vector<8x128xf32>
    %c6_i32 = arith.constant 6 : i32
    %382 = arith.index_cast %c6_i32 : i32 to index
    %c0_69 = arith.constant 0 : index
    %c0_70 = arith.constant 0 : index
    %383 = vector.load %arg0[%382, %c0_69, %c0_70] : memref<8x8x1xf32, #tpu.memory_space<vmem>>, vector<1x8x1xf32>
    %384 = vector.shape_cast %383 : vector<1x8x1xf32> to vector<8x1xf32>
    %385 = vector.broadcast %384 : vector<8x1xf32> to vector<8x512xf32>
    %386 = vector.broadcast %0 : vector<1x512xf32> to vector<8x512xf32>
    %387 = arith.mulf %385, %386 : vector<8x512xf32>
    %cst_71 = arith.constant dense<0.000000e+00> : vector<8x512xf32>
    %388 = tpu.matmul %353, %1, %cst_71 {dimension_numbers = #tpu.dot_dimension_numbers<[1], [0], [0], [1], [0, 0, 1, 1], [], []>} : vector<8x128xf32>, vector<128x512xf32>, vector<8x512xf32> -> vector<8x512xf32>
    %389 = arith.addf %387, %388 : vector<8x512xf32>
    %390 = arith.addf %389, %5 : vector<8x512xf32>
    %391 = vector.extract_strided_slice %390 {offsets = [0, 0], sizes = [8, 128], strides = [1, 1]} : vector<8x512xf32> to vector<8x128xf32>
    %392 = arith.negf %391 : vector<8x128xf32>
    %393 = math.exp %392 : vector<8x128xf32>
    %cst_72 = arith.constant 1.000000e+00 : f32
    %394 = vector.broadcast %cst_72 : f32 to vector<8x128xf32>
    %395 = arith.addf %394, %393 : vector<8x128xf32>
    %396 = arith.divf %394, %395 : vector<8x128xf32>
    %397 = vector.extract_strided_slice %390 {offsets = [0, 128], sizes = [8, 128], strides = [1, 1]} : vector<8x512xf32> to vector<8x128xf32>
    %398 = arith.negf %397 : vector<8x128xf32>
    %399 = math.exp %398 : vector<8x128xf32>
    %cst_73 = arith.constant 1.000000e+00 : f32
    %400 = vector.broadcast %cst_73 : f32 to vector<8x128xf32>
    %401 = arith.addf %400, %399 : vector<8x128xf32>
    %402 = arith.divf %400, %401 : vector<8x128xf32>
    %403 = vector.extract_strided_slice %390 {offsets = [0, 256], sizes = [8, 128], strides = [1, 1]} : vector<8x512xf32> to vector<8x128xf32>
    %404 = math.tanh %403 : vector<8x128xf32>
    %405 = vector.extract_strided_slice %390 {offsets = [0, 384], sizes = [8, 128], strides = [1, 1]} : vector<8x512xf32> to vector<8x128xf32>
    %406 = arith.negf %405 : vector<8x128xf32>
    %407 = math.exp %406 : vector<8x128xf32>
    %cst_74 = arith.constant 1.000000e+00 : f32
    %408 = vector.broadcast %cst_74 : f32 to vector<8x128xf32>
    %409 = arith.addf %408, %407 : vector<8x128xf32>
    %410 = arith.divf %408, %409 : vector<8x128xf32>
    %411 = arith.mulf %402, %351 : vector<8x128xf32>
    %412 = arith.mulf %396, %404 : vector<8x128xf32>
    %413 = arith.addf %411, %412 : vector<8x128xf32>
    %414 = math.tanh %413 : vector<8x128xf32>
    %415 = arith.mulf %410, %414 : vector<8x128xf32>
    %416 = tpu.concatenate %415, %381 in 1 : vector<8x128xf32>, vector<8x128xf32> -> vector<8x256xf32>
    %cst_75 = arith.constant dense<0.000000e+00> : vector<8x512xf32>
    %417 = tpu.matmul %416, %2, %cst_75 {dimension_numbers = #tpu.dot_dimension_numbers<[1], [0], [0], [1], [0, 0, 1, 1], [], []>} : vector<8x256xf32>, vector<256x512xf32>, vector<8x512xf32> -> vector<8x512xf32>
    %418 = arith.addf %417, %8 : vector<8x512xf32>
    %419 = vector.extract_strided_slice %418 {offsets = [0, 0], sizes = [8, 128], strides = [1, 1]} : vector<8x512xf32> to vector<8x128xf32>
    %420 = arith.negf %419 : vector<8x128xf32>
    %421 = math.exp %420 : vector<8x128xf32>
    %cst_76 = arith.constant 1.000000e+00 : f32
    %422 = vector.broadcast %cst_76 : f32 to vector<8x128xf32>
    %423 = arith.addf %422, %421 : vector<8x128xf32>
    %424 = arith.divf %422, %423 : vector<8x128xf32>
    %425 = vector.extract_strided_slice %418 {offsets = [0, 128], sizes = [8, 128], strides = [1, 1]} : vector<8x512xf32> to vector<8x128xf32>
    %426 = arith.negf %425 : vector<8x128xf32>
    %427 = math.exp %426 : vector<8x128xf32>
    %cst_77 = arith.constant 1.000000e+00 : f32
    %428 = vector.broadcast %cst_77 : f32 to vector<8x128xf32>
    %429 = arith.addf %428, %427 : vector<8x128xf32>
    %430 = arith.divf %428, %429 : vector<8x128xf32>
    %431 = vector.extract_strided_slice %418 {offsets = [0, 256], sizes = [8, 128], strides = [1, 1]} : vector<8x512xf32> to vector<8x128xf32>
    %432 = math.tanh %431 : vector<8x128xf32>
    %433 = vector.extract_strided_slice %418 {offsets = [0, 384], sizes = [8, 128], strides = [1, 1]} : vector<8x512xf32> to vector<8x128xf32>
    %434 = arith.negf %433 : vector<8x128xf32>
    %435 = math.exp %434 : vector<8x128xf32>
    %cst_78 = arith.constant 1.000000e+00 : f32
    %436 = vector.broadcast %cst_78 : f32 to vector<8x128xf32>
    %437 = arith.addf %436, %435 : vector<8x128xf32>
    %438 = arith.divf %436, %437 : vector<8x128xf32>
    %439 = arith.mulf %430, %379 : vector<8x128xf32>
    %440 = arith.mulf %424, %432 : vector<8x128xf32>
    %441 = arith.addf %439, %440 : vector<8x128xf32>
    %442 = math.tanh %441 : vector<8x128xf32>
    %443 = arith.mulf %438, %442 : vector<8x128xf32>
    %c7_i32 = arith.constant 7 : i32
    %444 = arith.index_cast %c7_i32 : i32 to index
    %c0_79 = arith.constant 0 : index
    %c0_80 = arith.constant 0 : index
    %445 = vector.load %arg0[%444, %c0_79, %c0_80] : memref<8x8x1xf32, #tpu.memory_space<vmem>>, vector<1x8x1xf32>
    %446 = vector.shape_cast %445 : vector<1x8x1xf32> to vector<8x1xf32>
    %447 = vector.broadcast %446 : vector<8x1xf32> to vector<8x512xf32>
    %448 = vector.broadcast %0 : vector<1x512xf32> to vector<8x512xf32>
    %449 = arith.mulf %447, %448 : vector<8x512xf32>
    %cst_81 = arith.constant dense<0.000000e+00> : vector<8x512xf32>
    %450 = tpu.matmul %415, %1, %cst_81 {dimension_numbers = #tpu.dot_dimension_numbers<[1], [0], [0], [1], [0, 0, 1, 1], [], []>} : vector<8x128xf32>, vector<128x512xf32>, vector<8x512xf32> -> vector<8x512xf32>
    %451 = arith.addf %449, %450 : vector<8x512xf32>
    %452 = arith.addf %451, %5 : vector<8x512xf32>
    %453 = vector.extract_strided_slice %452 {offsets = [0, 0], sizes = [8, 128], strides = [1, 1]} : vector<8x512xf32> to vector<8x128xf32>
    %454 = arith.negf %453 : vector<8x128xf32>
    %455 = math.exp %454 : vector<8x128xf32>
    %cst_82 = arith.constant 1.000000e+00 : f32
    %456 = vector.broadcast %cst_82 : f32 to vector<8x128xf32>
    %457 = arith.addf %456, %455 : vector<8x128xf32>
    %458 = arith.divf %456, %457 : vector<8x128xf32>
    %459 = vector.extract_strided_slice %452 {offsets = [0, 128], sizes = [8, 128], strides = [1, 1]} : vector<8x512xf32> to vector<8x128xf32>
    %460 = arith.negf %459 : vector<8x128xf32>
    %461 = math.exp %460 : vector<8x128xf32>
    %cst_83 = arith.constant 1.000000e+00 : f32
    %462 = vector.broadcast %cst_83 : f32 to vector<8x128xf32>
    %463 = arith.addf %462, %461 : vector<8x128xf32>
    %464 = arith.divf %462, %463 : vector<8x128xf32>
    %465 = vector.extract_strided_slice %452 {offsets = [0, 256], sizes = [8, 128], strides = [1, 1]} : vector<8x512xf32> to vector<8x128xf32>
    %466 = math.tanh %465 : vector<8x128xf32>
    %467 = vector.extract_strided_slice %452 {offsets = [0, 384], sizes = [8, 128], strides = [1, 1]} : vector<8x512xf32> to vector<8x128xf32>
    %468 = arith.negf %467 : vector<8x128xf32>
    %469 = math.exp %468 : vector<8x128xf32>
    %cst_84 = arith.constant 1.000000e+00 : f32
    %470 = vector.broadcast %cst_84 : f32 to vector<8x128xf32>
    %471 = arith.addf %470, %469 : vector<8x128xf32>
    %472 = arith.divf %470, %471 : vector<8x128xf32>
    %473 = arith.mulf %464, %413 : vector<8x128xf32>
    %474 = arith.mulf %458, %466 : vector<8x128xf32>
    %475 = arith.addf %473, %474 : vector<8x128xf32>
    %476 = math.tanh %475 : vector<8x128xf32>
    %477 = arith.mulf %472, %476 : vector<8x128xf32>
    %478 = tpu.concatenate %477, %443 in 1 : vector<8x128xf32>, vector<8x128xf32> -> vector<8x256xf32>
    %cst_85 = arith.constant dense<0.000000e+00> : vector<8x512xf32>
    %479 = tpu.matmul %478, %2, %cst_85 {dimension_numbers = #tpu.dot_dimension_numbers<[1], [0], [0], [1], [0, 0, 1, 1], [], []>} : vector<8x256xf32>, vector<256x512xf32>, vector<8x512xf32> -> vector<8x512xf32>
    %480 = arith.addf %479, %8 : vector<8x512xf32>
    %481 = vector.extract_strided_slice %480 {offsets = [0, 0], sizes = [8, 128], strides = [1, 1]} : vector<8x512xf32> to vector<8x128xf32>
    %482 = arith.negf %481 : vector<8x128xf32>
    %483 = math.exp %482 : vector<8x128xf32>
    %cst_86 = arith.constant 1.000000e+00 : f32
    %484 = vector.broadcast %cst_86 : f32 to vector<8x128xf32>
    %485 = arith.addf %484, %483 : vector<8x128xf32>
    %486 = arith.divf %484, %485 : vector<8x128xf32>
    %487 = vector.extract_strided_slice %480 {offsets = [0, 128], sizes = [8, 128], strides = [1, 1]} : vector<8x512xf32> to vector<8x128xf32>
    %488 = arith.negf %487 : vector<8x128xf32>
    %489 = math.exp %488 : vector<8x128xf32>
    %cst_87 = arith.constant 1.000000e+00 : f32
    %490 = vector.broadcast %cst_87 : f32 to vector<8x128xf32>
    %491 = arith.addf %490, %489 : vector<8x128xf32>
    %492 = arith.divf %490, %491 : vector<8x128xf32>
    %493 = vector.extract_strided_slice %480 {offsets = [0, 256], sizes = [8, 128], strides = [1, 1]} : vector<8x512xf32> to vector<8x128xf32>
    %494 = math.tanh %493 : vector<8x128xf32>
    %495 = vector.extract_strided_slice %480 {offsets = [0, 384], sizes = [8, 128], strides = [1, 1]} : vector<8x512xf32> to vector<8x128xf32>
    %496 = arith.negf %495 : vector<8x128xf32>
    %497 = math.exp %496 : vector<8x128xf32>
    %cst_88 = arith.constant 1.000000e+00 : f32
    %498 = vector.broadcast %cst_88 : f32 to vector<8x128xf32>
    %499 = arith.addf %498, %497 : vector<8x128xf32>
    %500 = arith.divf %498, %499 : vector<8x128xf32>
    %501 = arith.mulf %492, %441 : vector<8x128xf32>
    %502 = arith.mulf %486, %494 : vector<8x128xf32>
    %503 = arith.addf %501, %502 : vector<8x128xf32>
    %504 = math.tanh %503 : vector<8x128xf32>
    %505 = arith.mulf %500, %504 : vector<8x128xf32>
    %c8_i32 = arith.constant 8 : i32
    %c0_89 = arith.constant 0 : index
    %c0_90 = arith.constant 0 : index
    %506 = vector.load %arg6[%c0_89, %c0_90] : memref<128x128xf32, #tpu.memory_space<vmem>>, vector<128x128xf32>
    %cst_91 = arith.constant dense<0.000000e+00> : vector<8x128xf32>
    %507 = tpu.matmul %505, %506, %cst_91 {dimension_numbers = #tpu.dot_dimension_numbers<[1], [0], [0], [1], [0, 0, 1, 1], [], []>} : vector<8x128xf32>, vector<128x128xf32>, vector<8x128xf32> -> vector<8x128xf32>
    %c0_92 = arith.constant 0 : index
    %c0_93 = arith.constant 0 : index
    %508 = vector.load %arg7[%c0_92, %c0_93] : memref<1x128xf32, #tpu.memory_space<vmem>>, vector<1x128xf32>
    %509 = vector.broadcast %508 : vector<1x128xf32> to vector<8x128xf32>
    %510 = arith.addf %507, %509 : vector<8x128xf32>
    %c0_94 = arith.constant 0 : index
    %c0_95 = arith.constant 0 : index
    %511 = vector.load %arg8[%c0_94, %c0_95] : memref<8x128xf32, #tpu.memory_space<vmem>>, vector<8x128xf32>
    tpu.vector_store %arg8[%c0_94, %c0_95], %510 {strides = array<i32>} : memref<8x128xf32, #tpu.memory_space<vmem>>, vector<8x128xf32>,
    return
  }
}

</mosaic_0001>

<llo_original>
// kernel: tpu_custom_call.1
$region0: #{tpu_custom_call.1}
  #allocation0 [shape = 'u32[]', space=smem, size = 0x4, offset = 0x4, fixed_abs, tag = 'smem constant byte address 0x4 - core index']
  #allocation1 [shape = 'u32[72,128]{1,0:T(1,128)}', space=vmem, size = 0x9000, scoped, tag = 'internal scratch']
  %s0 = inlined_call_operand.vmem [shape: f32[8,8,1], index: 0, kind: input, shape index: {}]
  %s1 = inlined_call_operand.vmem [shape: f32[1,512], index: 1, kind: input, shape index: {}]
  %s2 = inlined_call_operand.hbm [shape: f32[128,512], index: 2, kind: input, shape index: {}]
  %s3 = inlined_call_operand.vmem [shape: f32[1,512], index: 3, kind: input, shape index: {}]
  %s4 = inlined_call_operand.hbm [shape: f32[256,512], index: 4, kind: input, shape index: {}]
  %s5 = inlined_call_operand.vmem [shape: f32[1,512], index: 5, kind: input, shape index: {}]
  %s6 = inlined_call_operand.hbm [shape: f32[128,128], index: 6, kind: input, shape index: {}]
  %s7 = inlined_call_operand.vmem [shape: f32[1,128], index: 7, kind: input, shape index: {}]
  %s8 = inlined_call_operand.hbm [shape: f32[8,128], index: 8, kind: output, shape index: {}]
  %s9 = sld [smem:[#allocation0]]
  $region54: #{tpu_custom_call.1} parent=0
    _
  %s11 = ssub.s32 1, %s9
  %s12 = scalar_select 0, %s11, %s9
  $region1: #{tpu_custom_call.1} parent=0
    #allocation2 [shape = 'u8[262144]{0}', space=vmem, size = 0x40000, scoped, tag = 'input window, operand 2, single buffered']
    #allocation3 [shape = 's32[1]{0}', space=sflag, size = 0x4, scoped, tag = 'scoped memory for tpu_custom_call.1']
    #allocation4 [shape = 's32[1]{0}', space=sflag, size = 0x4, scoped, tag = 'scoped memory for tpu_custom_call.1']
    #allocation5 [shape = 'u8[524288]{0}', space=vmem, size = 0x80000, scoped, tag = 'input window, operand 4, single buffered']
    #allocation6 [shape = 's32[1]{0}', space=sflag, size = 0x4, scoped, tag = 'scoped memory for tpu_custom_call.1']
    #allocation7 [shape = 'u8[65536]{0}', space=vmem, size = 0x10000, scoped, tag = 'input window, operand 6, single buffered']
    #allocation8 [shape = 'u8[4096]{0}', space=vmem, size = 0x1000, scoped, tag = 'output window, operand 0, single buffered']
    %13 = vsyncpa [#allocation3], 0
    %14 = vsyncpa [#allocation6], 0
    %15 = vsyncpa [#allocation4], 0
    // Predicated region
    $region2: #{tpu_custom_call.1} parent=1 // pred_check
      _
    $region3: #{tpu_custom_call.1} parent=1 // pred_check_branch
      %17 = sbr.rel (0) target = $region5
    $region4: #{tpu_custom_call.1} parent=1 // pred_region
      _
    $region5: #{tpu_custom_call.1} parent=1 // pred_fallthru
      _
    // Predicated region
    $region6: #{tpu_custom_call.1} parent=1 // pred_check
      _
    $region7: #{tpu_custom_call.1} parent=1 // pred_check_branch
      %19 = sbr.rel (0) target = $region9
    $region8: #{tpu_custom_call.1} parent=1 // pred_region
      _
    $region9: #{tpu_custom_call.1} parent=1 // pred_fallthru
      _
    // Predicated region
    $region10: #{tpu_custom_call.1} parent=1 // pred_check
      _
    $region11: #{tpu_custom_call.1} parent=1 // pred_check_branch
      %21 = sbr.rel (0) target = $region13
    $region12: #{tpu_custom_call.1} parent=1 // pred_region
      %23 = vsyncadd [#allocation3], 0
      %s24 = sshll.u32 %s2, 4
      %s25 = int_to_ptr.hbm [resolvable:$true] %s24
      %s26 = sshll.u32 [#allocation2], 4
      %s27 = int_to_ptr.vmem [resolvable:$true] %s26
      %32 = dma.hbm_to_vmem [thread:$0]  %s25, 8192, %s27, [#allocation3], 512, 512, 32
    $region13: #{tpu_custom_call.1} parent=1 // pred_fallthru
      _
    // Predicated region
    $region14: #{tpu_custom_call.1} parent=1 // pred_check
      _
    $region15: #{tpu_custom_call.1} parent=1 // pred_check_branch
      %34 = sbr.rel (0) target = $region17
    $region16: #{tpu_custom_call.1} parent=1 // pred_region
      _
    $region17: #{tpu_custom_call.1} parent=1 // pred_fallthru
      _
    // Predicated region
    $region18: #{tpu_custom_call.1} parent=1 // pred_check
      _
    $region19: #{tpu_custom_call.1} parent=1 // pred_check_branch
      %36 = sbr.rel (0) target = $region21
    $region20: #{tpu_custom_call.1} parent=1 // pred_region
      %38 = vsyncadd [#allocation6], 0
      %s39 = sshll.u32 %s4, 4
      %s40 = int_to_ptr.hbm [resolvable:$true] %s39
      %s41 = sshll.u32 [#allocation5], 4
      %s42 = int_to_ptr.vmem [resolvable:$true] %s41
      %47 = dma.hbm_to_vmem [thread:$0]  %s40, 16384, %s42, [#allocation6], 512, 512, 32
    $region21: #{tpu_custom_call.1} parent=1 // pred_fallthru
      _
    // Predicated region
    $region22: #{tpu_custom_call.1} parent=1 // pred_check
      _
    $region23: #{tpu_custom_call.1} parent=1 // pred_check_branch
      %49 = sbr.rel (0) target = $region25
    $region24: #{tpu_custom_call.1} parent=1 // pred_region
      _
    $region25: #{tpu_custom_call.1} parent=1 // pred_fallthru
      _
    // Predicated region
    $region26: #{tpu_custom_call.1} parent=1 // pred_check
      _
    $region27: #{tpu_custom_call.1} parent=1 // pred_check_branch
      %51 = sbr.rel (0) target = $region29
    $region28: #{tpu_custom_call.1} parent=1 // pred_region
      %53 = vsyncadd [#allocation6], 0
      %s54 = sshll.u32 %s6, 4
      %s55 = int_to_ptr.hbm [resolvable:$true] %s54
      %s56 = sshll.u32 [#allocation7], 4
      %s57 = int_to_ptr.vmem [resolvable:$true] %s56
      %62 = dma.hbm_to_vmem [thread:$0]  %s55, 2048, %s57, [#allocation6], 128, 128, 8
    $region29: #{tpu_custom_call.1} parent=1 // pred_fallthru
      _
    // Predicated region
    $region30: #{tpu_custom_call.1} parent=1 // pred_check
      _
    $region31: #{tpu_custom_call.1} parent=1 // pred_check_branch
      %64 = sbr.rel (0) target = $region33
    $region32: #{tpu_custom_call.1} parent=1 // pred_region
      _
    $region33: #{tpu_custom_call.1} parent=1 // pred_fallthru
      _
    // Predicated region
    $region34: #{tpu_custom_call.1} parent=1 // pred_check
      _
    $region35: #{tpu_custom_call.1} parent=1 // pred_check_branch
      %66 = sbr.rel (0) target = $region37
    $region36: #{tpu_custom_call.1} parent=1 // pred_region
      %68 = dma.done [#allocation3], 8192
    $region37: #{tpu_custom_call.1} parent=1 // pred_fallthru
      _
    // Predicated region
    $region38: #{tpu_custom_call.1} parent=1 // pred_check
      _
    $region39: #{tpu_custom_call.1} parent=1 // pred_check_branch
      %70 = sbr.rel (0) target = $region41
    $region40: #{tpu_custom_call.1} parent=1 // pred_region
      %72 = dma.done [#allocation6], 16384
    $region41: #{tpu_custom_call.1} parent=1 // pred_fallthru
      _
    // Predicated region
    $region42: #{tpu_custom_call.1} parent=1 // pred_check
      _
    $region43: #{tpu_custom_call.1} parent=1 // pred_check_branch
      %74 = sbr.rel (0) target = $region45
    $region44: #{tpu_custom_call.1} parent=1 // pred_region
      %76 = dma.done [#allocation6], 2048
    $region45: #{tpu_custom_call.1} parent=1 // pred_fallthru
      _
    %v77 = vld [vmem:[%s1] sm:$0xf]
    %v78 = vld [vmem:[#allocation2] sm:$0xff]
    %v79 = vld [vmem:[#allocation2 + $0x8] sm:$0xff]
    %v80 = vld [vmem:[#allocation2 + $0x10] sm:$0xff]
    %v81 = vld [vmem:[#allocation2 + $0x18] sm:$0xff]
    %v82 = vld [vmem:[#allocation2 + $0x20] sm:$0xff]
    %v83 = vld [vmem:[#allocation2 + $0x28] sm:$0xff]
    %v84 = vld [vmem:[#allocation2 + $0x30] sm:$0xff]
    %v85 = vld [vmem:[#allocation2 + $0x38] sm:$0xff]
    %v86 = vld [vmem:[#allocation2 + $0x40] sm:$0xff]
    %v87 = vld [vmem:[#allocation2 + $0x48] sm:$0xff]
    %v88 = vld [vmem:[#allocation2 + $0x50] sm:$0xff]
    %v89 = vld [vmem:[#allocation2 + $0x58] sm:$0xff]
    %v90 = vld [vmem:[#allocation2 + $0x60] sm:$0xff]
    %v91 = vld [vmem:[#allocation2 + $0x68] sm:$0xff]
    %v92 = vld [vmem:[#allocation2 + $0x70] sm:$0xff]
    %v93 = vld [vmem:[#allocation2 + $0x78] sm:$0xff]
    %v94 = vld [vmem:[#allocation2 + $0x80] sm:$0xff]
    %v95 = vld [vmem:[#allocation2 + $0x88] sm:$0xff]
    %v96 = vld [vmem:[#allocation2 + $0x90] sm:$0xff]
    %v97 = vld [vmem:[#allocation2 + $0x98] sm:$0xff]
    %v98 = vld [vmem:[#allocation2 + $0xa0] sm:$0xff]
    %v99 = vld [vmem:[#allocation2 + $0xa8] sm:$0xff]
    %v100 = vld [vmem:[#allocation2 + $0xb0] sm:$0xff]
    %v101 = vld [vmem:[#allocation2 + $0xb8] sm:$0xff]
    %v102 = vld [vmem:[#allocation2 + $0xc0] sm:$0xff]
    %v103 = vld [vmem:[#allocation2 + $0xc8] sm:$0xff]
    %v104 = vld [vmem:[#allocation2 + $0xd0] sm:$0xff]
    %v105 = vld [vmem:[#allocation2 + $0xd8] sm:$0xff]
    %v106 = vld [vmem:[#allocation2 + $0xe0] sm:$0xff]
    %v107 = vld [vmem:[#allocation2 + $0xe8] sm:$0xff]
    %v108 = vld [vmem:[#allocation2 + $0xf0] sm:$0xff]
    %v109 = vld [vmem:[#allocation2 + $0xf8] sm:$0xff]
    %v110 = vld [vmem:[#allocation2 + $0x100] sm:$0xff]
    %v111 = vld [vmem:[#allocation2 + $0x108] sm:$0xff]
    %v112 = vld [vmem:[#allocation2 + $0x110] sm:$0xff]
    %v113 = vld [vmem:[#allocation2 + $0x118] sm:$0xff]
    %v114 = vld [vmem:[#allocation2 + $0x120] sm:$0xff]
    %v115 = vld [vmem:[#allocation2 + $0x128] sm:$0xff]
    %v116 = vld [vmem:[#allocation2 + $0x130] sm:$0xff]
    %v117 = vld [vmem:[#allocation2 + $0x138] sm:$0xff]
    %v118 = vld [vmem:[#allocation2 + $0x140] sm:$0xff]
    %v119 = vld [vmem:[#allocation2 + $0x148] sm:$0xff]
    %v120 = vld [vmem:[#allocation2 + $0x150] sm:$0xff]
    %v121 = vld [vmem:[#allocation2 + $0x158] sm:$0xff]
    %v122 = vld [vmem:[#allocation2 + $0x160] sm:$0xff]
    %v123 = vld [vmem:[#allocation2 + $0x168] sm:$0xff]
    %v124 = vld [vmem:[#allocation2 + $0x170] sm:$0xff]
    %v125 = vld [vmem:[#allocation2 + $0x178] sm:$0xff]
    %v126 = vld [vmem:[#allocation2 + $0x180] sm:$0xff]
    %v127 = vld [vmem:[#allocation2 + $0x188] sm:$0xff]
    %v128 = vld [vmem:[#allocation2 + $0x190] sm:$0xff]
    %v129 = vld [vmem:[#allocation2 + $0x198] sm:$0xff]
    %v130 = vld [vmem:[#allocation2 + $0x1a0] sm:$0xff]
    %v131 = vld [vmem:[#allocation2 + $0x1a8] sm:$0xff]
    %v132 = vld [vmem:[#allocation2 + $0x1b0] sm:$0xff]
    %v133 = vld [vmem:[#allocation2 + $0x1b8] sm:$0xff]
    %v134 = vld [vmem:[#allocation2 + $0x1c0] sm:$0xff]
    %v135 = vld [vmem:[#allocation2 + $0x1c8] sm:$0xff]
    %v136 = vld [vmem:[#allocation2 + $0x1d0] sm:$0xff]
    %v137 = vld [vmem:[#allocation2 + $0x1d8] sm:$0xff]
    %v138 = vld [vmem:[#allocation2 + $0x1e0] sm:$0xff]
    %v139 = vld [vmem:[#allocation2 + $0x1e8] sm:$0xff]
    %v140 = vld [vmem:[#allocation2 + $0x1f0] sm:$0xff]
    %v141 = vld [vmem:[#allocation2 + $0x1f8] sm:$0xff]
    %v142 = vld [vmem:[#allocation5] sm:$0xff]
    %v143 = vld [vmem:[#allocation5 + $0x8] sm:$0xff]
    %v144 = vld [vmem:[#allocation5 + $0x10] sm:$0xff]
    %v145 = vld [vmem:[#allocation5 + $0x18] sm:$0xff]
    %v146 = vld [vmem:[#allocation5 + $0x20] sm:$0xff]
    %v147 = vld [vmem:[#allocation5 + $0x28] sm:$0xff]
    %v148 = vld [vmem:[#allocation5 + $0x30] sm:$0xff]
    %v149 = vld [vmem:[#allocation5 + $0x38] sm:$0xff]
    %v150 = vld [vmem:[#allocation5 + $0x40] sm:$0xff]
    %v151 = vld [vmem:[#allocation5 + $0x48] sm:$0xff]
    %v152 = vld [vmem:[#allocation5 + $0x50] sm:$0xff]
    %v153 = vld [vmem:[#allocation5 + $0x58] sm:$0xff]
    %v154 = vld [vmem:[#allocation5 + $0x60] sm:$0xff]
    %v155 = vld [vmem:[#allocation5 + $0x68] sm:$0xff]
    %v156 = vld [vmem:[#allocation5 + $0x70] sm:$0xff]
    %v157 = vld [vmem:[#allocation5 + $0x78] sm:$0xff]
    %v158 = vld [vmem:[#allocation5 + $0x80] sm:$0xff]
    %v159 = vld [vmem:[#allocation5 + $0x88] sm:$0xff]
    %v160 = vld [vmem:[#allocation5 + $0x90] sm:$0xff]
    %v161 = vld [vmem:[#allocation5 + $0x98] sm:$0xff]
    %v162 = vld [vmem:[#allocation5 + $0xa0] sm:$0xff]
    %v163 = vld [vmem:[#allocation5 + $0xa8] sm:$0xff]
    %v164 = vld [vmem:[#allocation5 + $0xb0] sm:$0xff]
    %v165 = vld [vmem:[#allocation5 + $0xb8] sm:$0xff]
    %v166 = vld [vmem:[#allocation5 + $0xc0] sm:$0xff]
    %v167 = vld [vmem:[#allocation5 + $0xc8] sm:$0xff]
    %v168 = vld [vmem:[#allocation5 + $0xd0] sm:$0xff]
    %v169 = vld [vmem:[#allocation5 + $0xd8] sm:$0xff]
    %v170 = vld [vmem:[#allocation5 + $0xe0] sm:$0xff]
    %v171 = vld [vmem:[#allocation5 + $0xe8] sm:$0xff]
    %v172 = vld [vmem:[#allocation5 + $0xf0] sm:$0xff]
    %v173 = vld [vmem:[#allocation5 + $0xf8] sm:$0xff]
    %v174 = vld [vmem:[#allocation5 + $0x100] sm:$0xff]
    %v175 = vld [vmem:[#allocation5 + $0x108] sm:$0xff]
    %v176 = vld [vmem:[#allocation5 + $0x110] sm:$0xff]
    %v177 = vld [vmem:[#allocation5 + $0x118] sm:$0xff]
    %v178 = vld [vmem:[#allocation5 + $0x120] sm:$0xff]
    %v179 = vld [vmem:[#allocation5 + $0x128] sm:$0xff]
    %v180 = vld [vmem:[#allocation5 + $0x130] sm:$0xff]
    %v181 = vld [vmem:[#allocation5 + $0x138] sm:$0xff]
    %v182 = vld [vmem:[#allocation5 + $0x140] sm:$0xff]
    %v183 = vld [vmem:[#allocation5 + $0x148] sm:$0xff]
    %v184 = vld [vmem:[#allocation5 + $0x150] sm:$0xff]
    %v185 = vld [vmem:[#allocation5 + $0x158] sm:$0xff]
    %v186 = vld [vmem:[#allocation5 + $0x160] sm:$0xff]
    %v187 = vld [vmem:[#allocation5 + $0x168] sm:$0xff]
    %v188 = vld [vmem:[#allocation5 + $0x170] sm:$0xff]
    %v189 = vld [vmem:[#allocation5 + $0x178] sm:$0xff]
    %v190 = vld [vmem:[#allocation5 + $0x180] sm:$0xff]
    %v191 = vld [vmem:[#allocation5 + $0x188] sm:$0xff]
    %v192 = vld [vmem:[#allocation5 + $0x190] sm:$0xff]
    %v193 = vld [vmem:[#allocation5 + $0x198] sm:$0xff]
    %v194 = vld [vmem:[#allocation5 + $0x1a0] sm:$0xff]
    %v195 = vld [vmem:[#allocation5 + $0x1a8] sm:$0xff]
    %v196 = vld [vmem:[#allocation5 + $0x1b0] sm:$0xff]
    %v197 = vld [vmem:[#allocation5 + $0x1b8] sm:$0xff]
    %v198 = vld [vmem:[#allocation5 + $0x1c0] sm:$0xff]
    %v199 = vld [vmem:[#allocation5 + $0x1c8] sm:$0xff]
    %v200 = vld [vmem:[#allocation5 + $0x1d0] sm:$0xff]
    %v201 = vld [vmem:[#allocation5 + $0x1d8] sm:$0xff]
    %v202 = vld [vmem:[#allocation5 + $0x1e0] sm:$0xff]
    %v203 = vld [vmem:[#allocation5 + $0x1e8] sm:$0xff]
    %v204 = vld [vmem:[#allocation5 + $0x1f0] sm:$0xff]
    %v205 = vld [vmem:[#allocation5 + $0x1f8] sm:$0xff]
    %v206 = vld [vmem:[#allocation5 + $0x200] sm:$0xff]
    %v207 = vld [vmem:[#allocation5 + $0x208] sm:$0xff]
    %v208 = vld [vmem:[#allocation5 + $0x210] sm:$0xff]
    %v209 = vld [vmem:[#allocation5 + $0x218] sm:$0xff]
    %v210 = vld [vmem:[#allocation5 + $0x220] sm:$0xff]
    %v211 = vld [vmem:[#allocation5 + $0x228] sm:$0xff]
    %v212 = vld [vmem:[#allocation5 + $0x230] sm:$0xff]
    %v213 = vld [vmem:[#allocation5 + $0x238] sm:$0xff]
    %v214 = vld [vmem:[#allocation5 + $0x240] sm:$0xff]
    %v215 = vld [vmem:[#allocation5 + $0x248] sm:$0xff]
    %v216 = vld [vmem:[#allocation5 + $0x250] sm:$0xff]
    %v217 = vld [vmem:[#allocation5 + $0x258] sm:$0xff]
    %v218 = vld [vmem:[#allocation5 + $0x260] sm:$0xff]
    %v219 = vld [vmem:[#allocation5 + $0x268] sm:$0xff]
    %v220 = vld [vmem:[#allocation5 + $0x270] sm:$0xff]
    %v221 = vld [vmem:[#allocation5 + $0x278] sm:$0xff]
    %v222 = vld [vmem:[#allocation5 + $0x280] sm:$0xff]
    %v223 = vld [vmem:[#allocation5 + $0x288] sm:$0xff]
    %v224 = vld [vmem:[#allocation5 + $0x290] sm:$0xff]
    %v225 = vld [vmem:[#allocation5 + $0x298] sm:$0xff]
    %v226 = vld [vmem:[#allocation5 + $0x2a0] sm:$0xff]
    %v227 = vld [vmem:[#allocation5 + $0x2a8] sm:$0xff]
    %v228 = vld [vmem:[#allocation5 + $0x2b0] sm:$0xff]
    %v229 = vld [vmem:[#allocation5 + $0x2b8] sm:$0xff]
    %v230 = vld [vmem:[#allocation5 + $0x2c0] sm:$0xff]
    %v231 = vld [vmem:[#allocation5 + $0x2c8] sm:$0xff]
    %v232 = vld [vmem:[#allocation5 + $0x2d0] sm:$0xff]
    %v233 = vld [vmem:[#allocation5 + $0x2d8] sm:$0xff]
    %v234 = vld [vmem:[#allocation5 + $0x2e0] sm:$0xff]
    %v235 = vld [vmem:[#allocation5 + $0x2e8] sm:$0xff]
    %v236 = vld [vmem:[#allocation5 + $0x2f0] sm:$0xff]
    %v237 = vld [vmem:[#allocation5 + $0x2f8] sm:$0xff]
    %v238 = vld [vmem:[#allocation5 + $0x300] sm:$0xff]
    %v239 = vld [vmem:[#allocation5 + $0x308] sm:$0xff]
    %v240 = vld [vmem:[#allocation5 + $0x310] sm:$0xff]
    %v241 = vld [vmem:[#allocation5 + $0x318] sm:$0xff]
    %v242 = vld [vmem:[#allocation5 + $0x320] sm:$0xff]
    %v243 = vld [vmem:[#allocation5 + $0x328] sm:$0xff]
    %v244 = vld [vmem:[#allocation5 + $0x330] sm:$0xff]
    %v245 = vld [vmem:[#allocation5 + $0x338] sm:$0xff]
    %v246 = vld [vmem:[#allocation5 + $0x340] sm:$0xff]
    %v247 = vld [vmem:[#allocation5 + $0x348] sm:$0xff]
    %v248 = vld [vmem:[#allocation5 + $0x350] sm:$0xff]
    %v249 = vld [vmem:[#allocation5 + $0x358] sm:$0xff]
    %v250 = vld [vmem:[#allocation5 + $0x360] sm:$0xff]
    %v251 = vld [vmem:[#allocation5 + $0x368] sm:$0xff]
    %v252 = vld [vmem:[#allocation5 + $0x370] sm:$0xff]
    %v253 = vld [vmem:[#allocation5 + $0x378] sm:$0xff]
    %v254 = vld [vmem:[#allocation5 + $0x380] sm:$0xff]
    %v255 = vld [vmem:[#allocation5 + $0x388] sm:$0xff]
    %v256 = vld [vmem:[#allocation5 + $0x390] sm:$0xff]
    %v257 = vld [vmem:[#allocation5 + $0x398] sm:$0xff]
    %v258 = vld [vmem:[#allocation5 + $0x3a0] sm:$0xff]
    %v259 = vld [vmem:[#allocation5 + $0x3a8] sm:$0xff]
    %v260 = vld [vmem:[#allocation5 + $0x3b0] sm:$0xff]
    %v261 = vld [vmem:[#allocation5 + $0x3b8] sm:$0xff]
    %v262 = vld [vmem:[#allocation5 + $0x3c0] sm:$0xff]
    %v263 = vld [vmem:[#allocation5 + $0x3c8] sm:$0xff]
    %v264 = vld [vmem:[#allocation5 + $0x3d0] sm:$0xff]
    %v265 = vld [vmem:[#allocation5 + $0x3d8] sm:$0xff]
    %v266 = vld [vmem:[#allocation5 + $0x3e0] sm:$0xff]
    %v267 = vld [vmem:[#allocation5 + $0x3e8] sm:$0xff]
    %v268 = vld [vmem:[#allocation5 + $0x3f0] sm:$0xff]
    %v269 = vld [vmem:[#allocation5 + $0x3f8] sm:$0xff]
    %v270 = vld [vmem:[%s3] sm:$0xf]
    %v272 = vperm.slane %v270, 0
    %v273 = vperm.slane %v270, 1
    %v274 = vperm.slane %v270, 2
    %v275 = vperm.slane %v270, 3
    %v280 = vld [vmem:[%s5] sm:$0xf]
    %v282 = vperm.slane %v280, 0
    %v283 = vperm.slane %v280, 1
    %v284 = vperm.slane %v280, 2
    %v285 = vperm.slane %v280, 3
    %v290 = vld [vmem:[%s0] sm:$0xff]
    %292 = vset.pattern.permute.xlu0 0
    %293 = vperm.xlu0 %292, %v290
    %v294 = vpop.permute.xlu0 %293
    %v297 = vperm.slane %v77, 0
    %v298 = vperm.slane %v77, 1
    %v299 = vperm.slane %v77, 2
    %v300 = vperm.slane %v77, 3
    %v305 = vmul.f32 %v294, %v297
    %v306 = vmul.f32 %v294, %v298
    %v307 = vmul.f32 %v294, %v299
    %v308 = vmul.f32 %v294, %v300
    %309 = vmatpush.msra.mxu0 %v138
    %310 = vmatpush.msra.mxu0 %v134
    %311 = vmatpush.msra.mxu0 %v130
    %312 = vmatpush.msra.mxu0 %v126
    %313 = vmatpush.msra.mxu0 %v122
    %314 = vmatpush.msra.mxu0 %v118
    %315 = vmatpush.msra.mxu0 %v114
    %316 = vmatpush.msra.mxu0 %v110
    %317 = vmatpush.msra.mxu0 %v106
    %318 = vmatpush.msra.mxu0 %v102
    %319 = vmatpush.msra.mxu0 %v98
    %320 = vmatpush.msra.mxu0 %v94
    %321 = vmatpush.msra.mxu0 %v90
    %322 = vmatpush.msra.mxu0 %v86
    %323 = vmatpush.msra.mxu0 %v82
    %324 = vmatpush.msra.mxu0 %v78
    %325 = vmatmul.f32.gmra.mxu0 0.0
    %v326 = vpop.f32.mrf.mxu0
    %v327 = vadd.f32 0.0, %v326
    %328 = vdwg.mxu0
    %329 = vmatpush.msra.mxu0 %v139
    %330 = vmatpush.msra.mxu0 %v135
    %331 = vmatpush.msra.mxu0 %v131
    %332 = vmatpush.msra.mxu0 %v127
    %333 = vmatpush.msra.mxu0 %v123
    %334 = vmatpush.msra.mxu0 %v119
    %335 = vmatpush.msra.mxu0 %v115
    %336 = vmatpush.msra.mxu0 %v111
    %337 = vmatpush.msra.mxu0 %v107
    %338 = vmatpush.msra.mxu0 %v103
    %339 = vmatpush.msra.mxu0 %v99
    %340 = vmatpush.msra.mxu0 %v95
    %341 = vmatpush.msra.mxu0 %v91
    %342 = vmatpush.msra.mxu0 %v87
    %343 = vmatpush.msra.mxu0 %v83
    %344 = vmatpush.msra.mxu0 %v79
    %345 = vmatmul.f32.gmra.mxu0 0.0
    %v346 = vpop.f32.mrf.mxu0
    %v347 = vadd.f32 0.0, %v346
    %348 = vdwg.mxu0
    %349 = vmatpush.msra.mxu0 %v140
    %350 = vmatpush.msra.mxu0 %v136
    %351 = vmatpush.msra.mxu0 %v132
    %352 = vmatpush.msra.mxu0 %v128
    %353 = vmatpush.msra.mxu0 %v124
    %354 = vmatpush.msra.mxu0 %v120
    %355 = vmatpush.msra.mxu0 %v116
    %356 = vmatpush.msra.mxu0 %v112
    %357 = vmatpush.msra.mxu0 %v108
    %358 = vmatpush.msra.mxu0 %v104
    %359 = vmatpush.msra.mxu0 %v100
    %360 = vmatpush.msra.mxu0 %v96
    %361 = vmatpush.msra.mxu0 %v92
    %362 = vmatpush.msra.mxu0 %v88
    %363 = vmatpush.msra.mxu0 %v84
    %364 = vmatpush.msra.mxu0 %v80
    %365 = vmatmul.f32.gmra.mxu0 0.0
    %v366 = vpop.f32.mrf.mxu0
    %v367 = vadd.f32 0.0, %v366
    %368 = vdwg.mxu0
    %369 = vmatpush.msra.mxu0 %v141
    %370 = vmatpush.msra.mxu0 %v137
    %371 = vmatpush.msra.mxu0 %v133
    %372 = vmatpush.msra.mxu0 %v129
    %373 = vmatpush.msra.mxu0 %v125
    %374 = vmatpush.msra.mxu0 %v121
    %375 = vmatpush.msra.mxu0 %v117
    %376 = vmatpush.msra.mxu0 %v113
    %377 = vmatpush.msra.mxu0 %v109
    %378 = vmatpush.msra.mxu0 %v105
    %379 = vmatpush.msra.mxu0 %v101
    %380 = vmatpush.msra.mxu0 %v97
    %381 = vmatpush.msra.mxu0 %v93
    %382 = vmatpush.msra.mxu0 %v89
    %383 = vmatpush.msra.mxu0 %v85
    %384 = vmatpush.msra.mxu0 %v81
    %385 = vmatmul.f32.gmra.mxu0 0.0
    %v386 = vpop.f32.mrf.mxu0
    %v387 = vadd.f32 0.0, %v386
    %388 = vdwg.mxu0
    %v389 = vadd.f32 %v305, %v327
    %v390 = vadd.f32 %v306, %v347
    %v391 = vadd.f32 %v307, %v367
    %v392 = vadd.f32 %v308, %v387
    %v393 = vadd.f32 %v389, %v272
    %v394 = vadd.f32 %v390, %v273
    %v395 = vadd.f32 %v391, %v274
    %v396 = vadd.f32 %v392, %v275
    %v397 = vxor.u32 %v393, 2147483648
    %v398 = vmul.f32 %v397, 1.442695
    %v399 = vpow.pop %v398
    %v400 = vadd.f32 %v399, 1.0
    %v401 = vrcp.pop %v400
    %v402 = vmul.f32 %v400, %v401
    %v403 = vsub.f32 1.0, %v402
    %v404 = vmul.f32 %v401, %v403
    %v405 = vadd.f32 %v401, %v404
    %vm406 = vweird.f32 %v400
    %vm407 = vweird.f32 %v401
    %vm408 = vmor %vm406, %vm407
    %v409 = vsel %vm408, %v401, %v405
    %v410 = vand.u32 2147483647, %v400
    %vm411 = vcmp.eq.f32.partialorder %v410, 8.507059e+37
    %v412 = vand.u32 %v400, 2147483648
    %v413 = vor.u32 1.1754944e-38, %v412
    %v414 = vsel %vm411, %v413, %v409
    %v415 = vmul.f32 1.0, %v414
    %v416 = vxor.u32 %v394, 2147483648
    %v417 = vmul.f32 %v416, 1.442695
    %v418 = vpow.pop %v417
    %v419 = vadd.f32 %v418, 1.0
    %v420 = vrcp.pop %v419
    %v421 = vmul.f32 %v419, %v420
    %v422 = vsub.f32 1.0, %v421
    %v423 = vmul.f32 %v420, %v422
    %v424 = vadd.f32 %v420, %v423
    %vm425 = vweird.f32 %v419
    %vm426 = vweird.f32 %v420
    %vm427 = vmor %vm425, %vm426
    %v428 = vsel %vm427, %v420, %v424
    %v429 = vand.u32 2147483647, %v419
    %vm430 = vcmp.eq.f32.partialorder %v429, 8.507059e+37
    %v431 = vand.u32 %v419, 2147483648
    %v432 = vor.u32 1.1754944e-38, %v431
    %v433 = vsel %vm430, %v432, %v428
    %v434 = vmul.f32 1.0, %v433
    %v435 = vtanh.pop %v395
    %v436 = vxor.u32 %v396, 2147483648
    %v437 = vmul.f32 %v436, 1.442695
    %v438 = vpow.pop %v437
    %v439 = vadd.f32 %v438, 1.0
    %v440 = vrcp.pop %v439
    %v441 = vmul.f32 %v439, %v440
    %v442 = vsub.f32 1.0, %v441
    %v443 = vmul.f32 %v440, %v442
    %v444 = vadd.f32 %v440, %v443
    %vm445 = vweird.f32 %v439
    %vm446 = vweird.f32 %v440
    %vm447 = vmor %vm445, %vm446
    %v448 = vsel %vm447, %v440, %v444
    %v449 = vand.u32 2147483647, %v439
    %vm450 = vcmp.eq.f32.partialorder %v449, 8.507059e+37
    %v451 = vand.u32 %v439, 2147483648
    %v452 = vor.u32 1.1754944e-38, %v451
    %v453 = vsel %vm450, %v452, %v448
    %v454 = vmul.f32 1.0, %v453
    %v455 = vmul.f32 %v434, 0.0
    %v456 = vmul.f32 %v415, %v435
    %v457 = vadd.f32 %v455, %v456
    %v458 = vtanh.pop %v457
    %v459 = vmul.f32 %v454, %v458
    %460 = vmatpush.msra.mxu0 %v202
    %461 = vmatpush.msra.mxu0 %v198
    %462 = vmatpush.msra.mxu0 %v194
    %463 = vmatpush.msra.mxu0 %v190
    %464 = vmatpush.msra.mxu0 %v186
    %465 = vmatpush.msra.mxu0 %v182
    %466 = vmatpush.msra.mxu0 %v178
    %467 = vmatpush.msra.mxu0 %v174
    %468 = vmatpush.msra.mxu0 %v170
    %469 = vmatpush.msra.mxu0 %v166
    %470 = vmatpush.msra.mxu0 %v162
    %471 = vmatpush.msra.mxu0 %v158
    %472 = vmatpush.msra.mxu0 %v154
    %473 = vmatpush.msra.mxu0 %v150
    %474 = vmatpush.msra.mxu0 %v146
    %475 = vmatpush.msra.mxu0 %v142
    %476 = vmatmul.f32.gmra.mxu0 %v459
    %v477 = vpop.f32.mrf.mxu0
    %v478 = vadd.f32 %v282, %v477
    %479 = vdwg.mxu0
    %480 = vmatpush.msra.mxu0 %v266
    %481 = vmatpush.msra.mxu0 %v262
    %482 = vmatpush.msra.mxu0 %v258
    %483 = vmatpush.msra.mxu0 %v254
    %484 = vmatpush.msra.mxu0 %v250
    %485 = vmatpush.msra.mxu0 %v246
    %486 = vmatpush.msra.mxu0 %v242
    %487 = vmatpush.msra.mxu0 %v238
    %488 = vmatpush.msra.mxu0 %v234
    %489 = vmatpush.msra.mxu0 %v230
    %490 = vmatpush.msra.mxu0 %v226
    %491 = vmatpush.msra.mxu0 %v222
    %492 = vmatpush.msra.mxu0 %v218
    %493 = vmatpush.msra.mxu0 %v214
    %494 = vmatpush.msra.mxu0 %v210
    %495 = vmatpush.msra.mxu0 %v206
    %496 = vmatmul.f32.gmra.mxu0 0.0
    %v497 = vpop.f32.mrf.mxu0
    %v498 = vadd.f32 %v478, %v497
    %499 = vdwg.mxu0
    %500 = vmatpush.msra.mxu0 %v203
    %501 = vmatpush.msra.mxu0 %v199
    %502 = vmatpush.msra.mxu0 %v195
    %503 = vmatpush.msra.mxu0 %v191
    %504 = vmatpush.msra.mxu0 %v187
    %505 = vmatpush.msra.mxu0 %v183
    %506 = vmatpush.msra.mxu0 %v179
    %507 = vmatpush.msra.mxu0 %v175
    %508 = vmatpush.msra.mxu0 %v171
    %509 = vmatpush.msra.mxu0 %v167
    %510 = vmatpush.msra.mxu0 %v163
    %511 = vmatpush.msra.mxu0 %v159
    %512 = vmatpush.msra.mxu0 %v155
    %513 = vmatpush.msra.mxu0 %v151
    %514 = vmatpush.msra.mxu0 %v147
    %515 = vmatpush.msra.mxu0 %v143
    %516 = vmatmul.f32.gmra.mxu0 %v459
    %v517 = vpop.f32.mrf.mxu0
    %v518 = vadd.f32 %v283, %v517
    %519 = vdwg.mxu0
    %520 = vmatpush.msra.mxu0 %v267
    %521 = vmatpush.msra.mxu0 %v263
    %522 = vmatpush.msra.mxu0 %v259
    %523 = vmatpush.msra.mxu0 %v255
    %524 = vmatpush.msra.mxu0 %v251
    %525 = vmatpush.msra.mxu0 %v247
    %526 = vmatpush.msra.mxu0 %v243
    %527 = vmatpush.msra.mxu0 %v239
    %528 = vmatpush.msra.mxu0 %v235
    %529 = vmatpush.msra.mxu0 %v231
    %530 = vmatpush.msra.mxu0 %v227
    %531 = vmatpush.msra.mxu0 %v223
    %532 = vmatpush.msra.mxu0 %v219
    %533 = vmatpush.msra.mxu0 %v215
    %534 = vmatpush.msra.mxu0 %v211
    %535 = vmatpush.msra.mxu0 %v207
    %536 = vmatmul.f32.gmra.mxu0 0.0
    %v537 = vpop.f32.mrf.mxu0
    %v538 = vadd.f32 %v518, %v537
    %539 = vdwg.mxu0
    %540 = vmatpush.msra.mxu0 %v204
    %541 = vmatpush.msra.mxu0 %v200
    %542 = vmatpush.msra.mxu0 %v196
    %543 = vmatpush.msra.mxu0 %v192
    %544 = vmatpush.msra.mxu0 %v188
    %545 = vmatpush.msra.mxu0 %v184
    %546 = vmatpush.msra.mxu0 %v180
    %547 = vmatpush.msra.mxu0 %v176
    %548 = vmatpush.msra.mxu0 %v172
    %549 = vmatpush.msra.mxu0 %v168
    %550 = vmatpush.msra.mxu0 %v164
    %551 = vmatpush.msra.mxu0 %v160
    %552 = vmatpush.msra.mxu0 %v156
    %553 = vmatpush.msra.mxu0 %v152
    %554 = vmatpush.msra.mxu0 %v148
    %555 = vmatpush.msra.mxu0 %v144
    %556 = vmatmul.f32.gmra.mxu0 %v459
    %v557 = vpop.f32.mrf.mxu0
    %v558 = vadd.f32 %v284, %v557
    %559 = vdwg.mxu0
    %560 = vmatpush.msra.mxu0 %v268
    %561 = vmatpush.msra.mxu0 %v264
    %562 = vmatpush.msra.mxu0 %v260
    %563 = vmatpush.msra.mxu0 %v256
    %564 = vmatpush.msra.mxu0 %v252
    %565 = vmatpush.msra.mxu0 %v248
    %566 = vmatpush.msra.mxu0 %v244
    %567 = vmatpush.msra.mxu0 %v240
    %568 = vmatpush.msra.mxu0 %v236
    %569 = vmatpush.msra.mxu0 %v232
    %570 = vmatpush.msra.mxu0 %v228
    %571 = vmatpush.msra.mxu0 %v224
    %572 = vmatpush.msra.mxu0 %v220
    %573 = vmatpush.msra.mxu0 %v216
    %574 = vmatpush.msra.mxu0 %v212
    %575 = vmatpush.msra.mxu0 %v208
    %576 = vmatmul.f32.gmra.mxu0 0.0
    %v577 = vpop.f32.mrf.mxu0
    %v578 = vadd.f32 %v558, %v577
    %579 = vdwg.mxu0
    %580 = vmatpush.msra.mxu0 %v205
    %581 = vmatpush.msra.mxu0 %v201
    %582 = vmatpush.msra.mxu0 %v197
    %583 = vmatpush.msra.mxu0 %v193
    %584 = vmatpush.msra.mxu0 %v189
    %585 = vmatpush.msra.mxu0 %v185
    %586 = vmatpush.msra.mxu0 %v181
    %587 = vmatpush.msra.mxu0 %v177
    %588 = vmatpush.msra.mxu0 %v173
    %589 = vmatpush.msra.mxu0 %v169
    %590 = vmatpush.msra.mxu0 %v165
    %591 = vmatpush.msra.mxu0 %v161
    %592 = vmatpush.msra.mxu0 %v157
    %593 = vmatpush.msra.mxu0 %v153
    %594 = vmatpush.msra.mxu0 %v149
    %595 = vmatpush.msra.mxu0 %v145
    %596 = vmatmul.f32.gmra.mxu0 %v459
    %v597 = vpop.f32.mrf.mxu0
    %v598 = vadd.f32 %v285, %v597
    %599 = vdwg.mxu0
    %600 = vmatpush.msra.mxu0 %v269
    %601 = vmatpush.msra.mxu0 %v265
    %602 = vmatpush.msra.mxu0 %v261
    %603 = vmatpush.msra.mxu0 %v257
    %604 = vmatpush.msra.mxu0 %v253
    %605 = vmatpush.msra.mxu0 %v249
    %606 = vmatpush.msra.mxu0 %v245
    %607 = vmatpush.msra.mxu0 %v241
    %608 = vmatpush.msra.mxu0 %v237
    %609 = vmatpush.msra.mxu0 %v233
    %610 = vmatpush.msra.mxu0 %v229
    %611 = vmatpush.msra.mxu0 %v225
    %612 = vmatpush.msra.mxu0 %v221
    %613 = vmatpush.msra.mxu0 %v217
    %614 = vmatpush.msra.mxu0 %v213
    %615 = vmatpush.msra.mxu0 %v209
    %616 = vmatmul.f32.gmra.mxu0 0.0
    %v617 = vpop.f32.mrf.mxu0
    %v618 = vadd.f32 %v598, %v617
    %619 = vdwg.mxu0
    %v620 = vxor.u32 %v498, 2147483648
    %v621 = vmul.f32 %v620, 1.442695
    %v622 = vpow.pop %v621
    %v623 = vadd.f32 %v622, 1.0
    %v624 = vrcp.pop %v623
    %v625 = vmul.f32 %v623, %v624
    %v626 = vsub.f32 1.0, %v625
    %v627 = vmul.f32 %v624, %v626
    %v628 = vadd.f32 %v624, %v627
    %vm629 = vweird.f32 %v623
    %vm630 = vweird.f32 %v624
    %vm631 = vmor %vm629, %vm630
    %v632 = vsel %vm631, %v624, %v628
    %v633 = vand.u32 2147483647, %v623
    %vm634 = vcmp.eq.f32.partialorder %v633, 8.507059e+37
    %v635 = vand.u32 %v623, 2147483648
    %v636 = vor.u32 1.1754944e-38, %v635
    %v637 = vsel %vm634, %v636, %v632
    %v638 = vmul.f32 1.0, %v637
    %v639 = vxor.u32 %v538, 2147483648
    %v640 = vmul.f32 %v639, 1.442695
    %v641 = vpow.pop %v640
    %v642 = vadd.f32 %v641, 1.0
    %v643 = vrcp.pop %v642
    %v644 = vmul.f32 %v642, %v643
    %v645 = vsub.f32 1.0, %v644
    %v646 = vmul.f32 %v643, %v645
    %v647 = vadd.f32 %v643, %v646
    %vm648 = vweird.f32 %v642
    %vm649 = vweird.f32 %v643
    %vm650 = vmor %vm648, %vm649
    %v651 = vsel %vm650, %v643, %v647
    %v652 = vand.u32 2147483647, %v642
    %vm653 = vcmp.eq.f32.partialorder %v652, 8.507059e+37
    %v654 = vand.u32 %v642, 2147483648
    %v655 = vor.u32 1.1754944e-38, %v654
    %v656 = vsel %vm653, %v655, %v651
    %v657 = vmul.f32 1.0, %v656
    %v658 = vtanh.pop %v578
    %v659 = vxor.u32 %v618, 2147483648
    %v660 = vmul.f32 %v659, 1.442695
    %v661 = vpow.pop %v660
    %v662 = vadd.f32 %v661, 1.0
    %v663 = vrcp.pop %v662
    %v664 = vmul.f32 %v662, %v663
    %v665 = vsub.f32 1.0, %v664
    %v666 = vmul.f32 %v663, %v665
    %v667 = vadd.f32 %v663, %v666
    %vm668 = vweird.f32 %v662
    %vm669 = vweird.f32 %v663
    %vm670 = vmor %vm668, %vm669
    %v671 = vsel %vm670, %v663, %v667
    %v672 = vand.u32 2147483647, %v662
    %vm673 = vcmp.eq.f32.partialorder %v672, 8.507059e+37
    %v674 = vand.u32 %v662, 2147483648
    %v675 = vor.u32 1.1754944e-38, %v674
    %v676 = vsel %vm673, %v675, %v671
    %v677 = vmul.f32 1.0, %v676
    %v678 = vmul.f32 %v657, 0.0
    %v679 = vmul.f32 %v638, %v658
    %v680 = vadd.f32 %v678, %v679
    %v681 = vtanh.pop %v680
    %v682 = vmul.f32 %v677, %v681
    %s683 = scalar_lea.vmem %s0, 8
    %v684 = vld [vmem:[%s683] sm:$0xff]
    %686 = vset.pattern.permute.xlu0 0
    %687 = vperm.xlu0 %686, %v684
    %v688 = vpop.permute.xlu0 %687
    %v690 = vmul.f32 %v688, %v297
    %v691 = vmul.f32 %v688, %v298
    %v692 = vmul.f32 %v688, %v299
    %v693 = vmul.f32 %v688, %v300
    %694 = vmatpush.msra.mxu0 %v138
    %695 = vmatpush.msra.mxu0 %v134
    %696 = vmatpush.msra.mxu0 %v130
    %697 = vmatpush.msra.mxu0 %v126
    %698 = vmatpush.msra.mxu0 %v122
    %699 = vmatpush.msra.mxu0 %v118
    %700 = vmatpush.msra.mxu0 %v114
    %701 = vmatpush.msra.mxu0 %v110
    %702 = vmatpush.msra.mxu0 %v106
    %703 = vmatpush.msra.mxu0 %v102
    %704 = vmatpush.msra.mxu0 %v98
    %705 = vmatpush.msra.mxu0 %v94
    %706 = vmatpush.msra.mxu0 %v90
    %707 = vmatpush.msra.mxu0 %v86
    %708 = vmatpush.msra.mxu0 %v82
    %709 = vmatpush.msra.mxu0 %v78
    %710 = vmatmul.f32.gmra.mxu0 %v459
    %v711 = vpop.f32.mrf.mxu0
    %v712 = vadd.f32 0.0, %v711
    %713 = vdwg.mxu0
    %714 = vmatpush.msra.mxu0 %v139
    %715 = vmatpush.msra.mxu0 %v135
    %716 = vmatpush.msra.mxu0 %v131
    %717 = vmatpush.msra.mxu0 %v127
    %718 = vmatpush.msra.mxu0 %v123
    %719 = vmatpush.msra.mxu0 %v119
    %720 = vmatpush.msra.mxu0 %v115
    %721 = vmatpush.msra.mxu0 %v111
    %722 = vmatpush.msra.mxu0 %v107
    %723 = vmatpush.msra.mxu0 %v103
    %724 = vmatpush.msra.mxu0 %v99
    %725 = vmatpush.msra.mxu0 %v95
    %726 = vmatpush.msra.mxu0 %v91
    %727 = vmatpush.msra.mxu0 %v87
    %728 = vmatpush.msra.mxu0 %v83
    %729 = vmatpush.msra.mxu0 %v79
    %730 = vmatmul.f32.gmra.mxu0 %v459
    %v731 = vpop.f32.mrf.mxu0
    %v732 = vadd.f32 0.0, %v731
    %733 = vdwg.mxu0
    %734 = vmatpush.msra.mxu0 %v140
    %735 = vmatpush.msra.mxu0 %v136
    %736 = vmatpush.msra.mxu0 %v132
    %737 = vmatpush.msra.mxu0 %v128
    %738 = vmatpush.msra.mxu0 %v124
    %739 = vmatpush.msra.mxu0 %v120
    %740 = vmatpush.msra.mxu0 %v116
    %741 = vmatpush.msra.mxu0 %v112
    %742 = vmatpush.msra.mxu0 %v108
    %743 = vmatpush.msra.mxu0 %v104
    %744 = vmatpush.msra.mxu0 %v100
    %745 = vmatpush.msra.mxu0 %v96
    %746 = vmatpush.msra.mxu0 %v92
    %747 = vmatpush.msra.mxu0 %v88
    %748 = vmatpush.msra.mxu0 %v84
    %749 = vmatpush.msra.mxu0 %v80
    %750 = vmatmul.f32.gmra.mxu0 %v459
    %v751 = vpop.f32.mrf.mxu0
    %v752 = vadd.f32 0.0, %v751
    %753 = vdwg.mxu0
    %754 = vmatpush.msra.mxu0 %v141
    %755 = vmatpush.msra.mxu0 %v137
    %756 = vmatpush.msra.mxu0 %v133
    %757 = vmatpush.msra.mxu0 %v129
    %758 = vmatpush.msra.mxu0 %v125
    %759 = vmatpush.msra.mxu0 %v121
    %760 = vmatpush.msra.mxu0 %v117
    %761 = vmatpush.msra.mxu0 %v113
    %762 = vmatpush.msra.mxu0 %v109
    %763 = vmatpush.msra.mxu0 %v105
    %764 = vmatpush.msra.mxu0 %v101
    %765 = vmatpush.msra.mxu0 %v97
    %766 = vmatpush.msra.mxu0 %v93
    %767 = vmatpush.msra.mxu0 %v89
    %768 = vmatpush.msra.mxu0 %v85
    %769 = vmatpush.msra.mxu0 %v81
    %770 = vmatmul.f32.gmra.mxu0 %v459
    %v771 = vpop.f32.mrf.mxu0
    %v772 = vadd.f32 0.0, %v771
    %773 = vdwg.mxu0
    %v774 = vadd.f32 %v690, %v712
    %v775 = vadd.f32 %v691, %v732
    %v776 = vadd.f32 %v692, %v752
    %v777 = vadd.f32 %v693, %v772
    %v778 = vadd.f32 %v774, %v272
    %v779 = vadd.f32 %v775, %v273
    %v780 = vadd.f32 %v776, %v274
    %v781 = vadd.f32 %v777, %v275
    %v782 = vxor.u32 %v778, 2147483648
    %v783 = vmul.f32 %v782, 1.442695
    %v784 = vpow.pop %v783
    %v785 = vadd.f32 %v784, 1.0
    %v786 = vrcp.pop %v785
    %v787 = vmul.f32 %v785, %v786
    %v788 = vsub.f32 1.0, %v787
    %v789 = vmul.f32 %v786, %v788
    %v790 = vadd.f32 %v786, %v789
    %vm791 = vweird.f32 %v785
    %vm792 = vweird.f32 %v786
    %vm793 = vmor %vm791, %vm792
    %v794 = vsel %vm793, %v786, %v790
    %v795 = vand.u32 2147483647, %v785
    %vm796 = vcmp.eq.f32.partialorder %v795, 8.507059e+37
    %v797 = vand.u32 %v785, 2147483648
    %v798 = vor.u32 1.1754944e-38, %v797
    %v799 = vsel %vm796, %v798, %v794
    %v800 = vmul.f32 1.0, %v799
    %v801 = vxor.u32 %v779, 2147483648
    %v802 = vmul.f32 %v801, 1.442695
    %v803 = vpow.pop %v802
    %v804 = vadd.f32 %v803, 1.0
    %v805 = vrcp.pop %v804
    %v806 = vmul.f32 %v804, %v805
    %v807 = vsub.f32 1.0, %v806
    %v808 = vmul.f32 %v805, %v807
    %v809 = vadd.f32 %v805, %v808
    %vm810 = vweird.f32 %v804
    %vm811 = vweird.f32 %v805
    %vm812 = vmor %vm810, %vm811
    %v813 = vsel %vm812, %v805, %v809
    %v814 = vand.u32 2147483647, %v804
    %vm815 = vcmp.eq.f32.partialorder %v814, 8.507059e+37
    %v816 = vand.u32 %v804, 2147483648
    %v817 = vor.u32 1.1754944e-38, %v816
    %v818 = vsel %vm815, %v817, %v813
    %v819 = vmul.f32 1.0, %v818
    %v820 = vtanh.pop %v780
    %v821 = vxor.u32 %v781, 2147483648
    %v822 = vmul.f32 %v821, 1.442695
    %v823 = vpow.pop %v822
    %v824 = vadd.f32 %v823, 1.0
    %v825 = vrcp.pop %v824
    %v826 = vmul.f32 %v824, %v825
    %v827 = vsub.f32 1.0, %v826
    %v828 = vmul.f32 %v825, %v827
    %v829 = vadd.f32 %v825, %v828
    %vm830 = vweird.f32 %v824
    %vm831 = vweird.f32 %v825
    %vm832 = vmor %vm830, %vm831
    %v833 = vsel %vm832, %v825, %v829
    %v834 = vand.u32 2147483647, %v824
    %vm835 = vcmp.eq.f32.partialorder %v834, 8.507059e+37
    %v836 = vand.u32 %v824, 2147483648
    %v837 = vor.u32 1.1754944e-38, %v836
    %v838 = vsel %vm835, %v837, %v833
    %v839 = vmul.f32 1.0, %v838
    %v840 = vmul.f32 %v819, %v457
    %v841 = vmul.f32 %v800, %v820
    %v842 = vadd.f32 %v840, %v841
    %v843 = vtanh.pop %v842
    %v844 = vmul.f32 %v839, %v843
    %845 = vmatpush.msra.mxu0 %v202
    %846 = vmatpush.msra.mxu0 %v198
    %847 = vmatpush.msra.mxu0 %v194
    %848 = vmatpush.msra.mxu0 %v190
    %849 = vmatpush.msra.mxu0 %v186
    %850 = vmatpush.msra.mxu0 %v182
    %851 = vmatpush.msra.mxu0 %v178
    %852 = vmatpush.msra.mxu0 %v174
    %853 = vmatpush.msra.mxu0 %v170
    %854 = vmatpush.msra.mxu0 %v166
    %855 = vmatpush.msra.mxu0 %v162
    %856 = vmatpush.msra.mxu0 %v158
    %857 = vmatpush.msra.mxu0 %v154
    %858 = vmatpush.msra.mxu0 %v150
    %859 = vmatpush.msra.mxu0 %v146
    %860 = vmatpush.msra.mxu0 %v142
    %861 = vmatmul.f32.gmra.mxu0 %v844
    %v862 = vpop.f32.mrf.mxu0
    %v863 = vadd.f32 %v282, %v862
    %864 = vdwg.mxu0
    %865 = vmatpush.msra.mxu0 %v266
    %866 = vmatpush.msra.mxu0 %v262
    %867 = vmatpush.msra.mxu0 %v258
    %868 = vmatpush.msra.mxu0 %v254
    %869 = vmatpush.msra.mxu0 %v250
    %870 = vmatpush.msra.mxu0 %v246
    %871 = vmatpush.msra.mxu0 %v242
    %872 = vmatpush.msra.mxu0 %v238
    %873 = vmatpush.msra.mxu0 %v234
    %874 = vmatpush.msra.mxu0 %v230
    %875 = vmatpush.msra.mxu0 %v226
    %876 = vmatpush.msra.mxu0 %v222
    %877 = vmatpush.msra.mxu0 %v218
    %878 = vmatpush.msra.mxu0 %v214
    %879 = vmatpush.msra.mxu0 %v210
    %880 = vmatpush.msra.mxu0 %v206
    %881 = vmatmul.f32.gmra.mxu0 %v682
    %v882 = vpop.f32.mrf.mxu0
    %v883 = vadd.f32 %v863, %v882
    %884 = vdwg.mxu0
    %885 = vmatpush.msra.mxu0 %v203
    %886 = vmatpush.msra.mxu0 %v199
    %887 = vmatpush.msra.mxu0 %v195
    %888 = vmatpush.msra.mxu0 %v191
    %889 = vmatpush.msra.mxu0 %v187
    %890 = vmatpush.msra.mxu0 %v183
    %891 = vmatpush.msra.mxu0 %v179
    %892 = vmatpush.msra.mxu0 %v175
    %893 = vmatpush.msra.mxu0 %v171
    %894 = vmatpush.msra.mxu0 %v167
    %895 = vmatpush.msra.mxu0 %v163
    %896 = vmatpush.msra.mxu0 %v159
    %897 = vmatpush.msra.mxu0 %v155
    %898 = vmatpush.msra.mxu0 %v151
    %899 = vmatpush.msra.mxu0 %v147
    %900 = vmatpush.msra.mxu0 %v143
    %901 = vmatmul.f32.gmra.mxu0 %v844
    %v902 = vpop.f32.mrf.mxu0
    %v903 = vadd.f32 %v283, %v902
    %904 = vdwg.mxu0
    %905 = vmatpush.msra.mxu0 %v267
    %906 = vmatpush.msra.mxu0 %v263
    %907 = vmatpush.msra.mxu0 %v259
    %908 = vmatpush.msra.mxu0 %v255
    %909 = vmatpush.msra.mxu0 %v251
    %910 = vmatpush.msra.mxu0 %v247
    %911 = vmatpush.msra.mxu0 %v243
    %912 = vmatpush.msra.mxu0 %v239
    %913 = vmatpush.msra.mxu0 %v235
    %914 = vmatpush.msra.mxu0 %v231
    %915 = vmatpush.msra.mxu0 %v227
    %916 = vmatpush.msra.mxu0 %v223
    %917 = vmatpush.msra.mxu0 %v219
    %918 = vmatpush.msra.mxu0 %v215
    %919 = vmatpush.msra.mxu0 %v211
    %920 = vmatpush.msra.mxu0 %v207
    %921 = vmatmul.f32.gmra.mxu0 %v682
    %v922 = vpop.f32.mrf.mxu0
    %v923 = vadd.f32 %v903, %v922
    %924 = vdwg.mxu0
    %925 = vmatpush.msra.mxu0 %v204
    %926 = vmatpush.msra.mxu0 %v200
    %927 = vmatpush.msra.mxu0 %v196
    %928 = vmatpush.msra.mxu0 %v192
    %929 = vmatpush.msra.mxu0 %v188
    %930 = vmatpush.msra.mxu0 %v184
    %931 = vmatpush.msra.mxu0 %v180
    %932 = vmatpush.msra.mxu0 %v176
    %933 = vmatpush.msra.mxu0 %v172
    %934 = vmatpush.msra.mxu0 %v168
    %935 = vmatpush.msra.mxu0 %v164
    %936 = vmatpush.msra.mxu0 %v160
    %937 = vmatpush.msra.mxu0 %v156
    %938 = vmatpush.msra.mxu0 %v152
    %939 = vmatpush.msra.mxu0 %v148
    %940 = vmatpush.msra.mxu0 %v144
    %941 = vmatmul.f32.gmra.mxu0 %v844
    %v942 = vpop.f32.mrf.mxu0
    %v943 = vadd.f32 %v284, %v942
    %944 = vdwg.mxu0
    %945 = vmatpush.msra.mxu0 %v268
    %946 = vmatpush.msra.mxu0 %v264
    %947 = vmatpush.msra.mxu0 %v260
    %948 = vmatpush.msra.mxu0 %v256
    %949 = vmatpush.msra.mxu0 %v252
    %950 = vmatpush.msra.mxu0 %v248
    %951 = vmatpush.msra.mxu0 %v244
    %952 = vmatpush.msra.mxu0 %v240
    %953 = vmatpush.msra.mxu0 %v236
    %954 = vmatpush.msra.mxu0 %v232
    %955 = vmatpush.msra.mxu0 %v228
    %956 = vmatpush.msra.mxu0 %v224
    %957 = vmatpush.msra.mxu0 %v220
    %958 = vmatpush.msra.mxu0 %v216
    %959 = vmatpush.msra.mxu0 %v212
    %960 = vmatpush.msra.mxu0 %v208
    %961 = vmatmul.f32.gmra.mxu0 %v682
    %v962 = vpop.f32.mrf.mxu0
    %v963 = vadd.f32 %v943, %v962
    %964 = vdwg.mxu0
    %965 = vmatpush.msra.mxu0 %v205
    %966 = vmatpush.msra.mxu0 %v201
    %967 = vmatpush.msra.mxu0 %v197
    %968 = vmatpush.msra.mxu0 %v193
    %969 = vmatpush.msra.mxu0 %v189
    %970 = vmatpush.msra.mxu0 %v185
    %971 = vmatpush.msra.mxu0 %v181
    %972 = vmatpush.msra.mxu0 %v177
    %973 = vmatpush.msra.mxu0 %v173
    %974 = vmatpush.msra.mxu0 %v169
    %975 = vmatpush.msra.mxu0 %v165
    %976 = vmatpush.msra.mxu0 %v161
    %977 = vmatpush.msra.mxu0 %v157
    %978 = vmatpush.msra.mxu0 %v153
    %979 = vmatpush.msra.mxu0 %v149
    %980 = vmatpush.msra.mxu0 %v145
    %981 = vmatmul.f32.gmra.mxu0 %v844
    %v982 = vpop.f32.mrf.mxu0
    %v983 = vadd.f32 %v285, %v982
    %984 = vdwg.mxu0
    %985 = vmatpush.msra.mxu0 %v269
    %986 = vmatpush.msra.mxu0 %v265
    %987 = vmatpush.msra.mxu0 %v261
    %988 = vmatpush.msra.mxu0 %v257
    %989 = vmatpush.msra.mxu0 %v253
    %990 = vmatpush.msra.mxu0 %v249
    %991 = vmatpush.msra.mxu0 %v245
    %992 = vmatpush.msra.mxu0 %v241
    %993 = vmatpush.msra.mxu0 %v237
    %994 = vmatpush.msra.mxu0 %v233
    %995 = vmatpush.msra.mxu0 %v229
    %996 = vmatpush.msra.mxu0 %v225
    %997 = vmatpush.msra.mxu0 %v221
    %998 = vmatpush.msra.mxu0 %v217
    %999 = vmatpush.msra.mxu0 %v213
    %1000 = vmatpush.msra.mxu0 %v209
    %1001 = vmatmul.f32.gmra.mxu0 %v682
    %v1002 = vpop.f32.mrf.mxu0
    %v1003 = vadd.f32 %v983, %v1002
    %1004 = vdwg.mxu0
    %v1005 = vxor.u32 %v883, 2147483648
    %v1006 = vmul.f32 %v1005, 1.442695
    %v1007 = vpow.pop %v1006
    %v1008 = vadd.f32 %v1007, 1.0
    %v1009 = vrcp.pop %v1008
    %v1010 = vmul.f32 %v1008, %v1009
    %v1011 = vsub.f32 1.0, %v1010
    %v1012 = vmul.f32 %v1009, %v1011
    %v1013 = vadd.f32 %v1009, %v1012
    %vm1014 = vweird.f32 %v1008
    %vm1015 = vweird.f32 %v1009
    %vm1016 = vmor %vm1014, %vm1015
    %v1017 = vsel %vm1016, %v1009, %v1013
    %v1018 = vand.u32 2147483647, %v1008
    %vm1019 = vcmp.eq.f32.partialorder %v1018, 8.507059e+37
    %v1020 = vand.u32 %v1008, 2147483648
    %v1021 = vor.u32 1.1754944e-38, %v1020
    %v1022 = vsel %vm1019, %v1021, %v1017
    %v1023 = vmul.f32 1.0, %v1022
    %v1024 = vxor.u32 %v923, 2147483648
    %v1025 = vmul.f32 %v1024, 1.442695
    %v1026 = vpow.pop %v1025
    %v1027 = vadd.f32 %v1026, 1.0
    %v1028 = vrcp.pop %v1027
    %v1029 = vmul.f32 %v1027, %v1028
    %v1030 = vsub.f32 1.0, %v1029
    %v1031 = vmul.f32 %v1028, %v1030
    %v1032 = vadd.f32 %v1028, %v1031
    %vm1033 = vweird.f32 %v1027
    %vm1034 = vweird.f32 %v1028
    %vm1035 = vmor %vm1033, %vm1034
    %v1036 = vsel %vm1035, %v1028, %v1032
    %v1037 = vand.u32 2147483647, %v1027
    %vm1038 = vcmp.eq.f32.partialorder %v1037, 8.507059e+37
    %v1039 = vand.u32 %v1027, 2147483648
    %v1040 = vor.u32 1.1754944e-38, %v1039
    %v1041 = vsel %vm1038, %v1040, %v1036
    %v1042 = vmul.f32 1.0, %v1041
    %v1043 = vtanh.pop %v963
    %v1044 = vxor.u32 %v1003, 2147483648
    %v1045 = vmul.f32 %v1044, 1.442695
    %v1046 = vpow.pop %v1045
    %v1047 = vadd.f32 %v1046, 1.0
    %v1048 = vrcp.pop %v1047
    %v1049 = vmul.f32 %v1047, %v1048
    %v1050 = vsub.f32 1.0, %v1049
    %v1051 = vmul.f32 %v1048, %v1050
    %v1052 = vadd.f32 %v1048, %v1051
    %vm1053 = vweird.f32 %v1047
    %vm1054 = vweird.f32 %v1048
    %vm1055 = vmor %vm1053, %vm1054
    %v1056 = vsel %vm1055, %v1048, %v1052
    %v1057 = vand.u32 2147483647, %v1047
    %vm1058 = vcmp.eq.f32.partialorder %v1057, 8.507059e+37
    %v1059 = vand.u32 %v1047, 2147483648
    %v1060 = vor.u32 1.1754944e-38, %v1059
    %v1061 = vsel %vm1058, %v1060, %v1056
    %v1062 = vmul.f32 1.0, %v1061
    %v1063 = vmul.f32 %v1042, %v680
    %v1064 = vmul.f32 %v1023, %v1043
    %v1065 = vadd.f32 %v1063, %v1064
    %v1066 = vtanh.pop %v1065
    %v1067 = vmul.f32 %v1062, %v1066
    %s1068 = scalar_lea.vmem %s0, 16
    %v1069 = vld [vmem:[%s1068] sm:$0xff]
    %1071 = vset.pattern.permute.xlu0 0
    %1072 = vperm.xlu0 %1071, %v1069
    %v1073 = vpop.permute.xlu0 %1072
    %v1075 = vmul.f32 %v1073, %v297
    %v1076 = vmul.f32 %v1073, %v298
    %v1077 = vmul.f32 %v1073, %v299
    %v1078 = vmul.f32 %v1073, %v300
    %1079 = vmatpush.msra.mxu0 %v138
    %1080 = vmatpush.msra.mxu0 %v134
    %1081 = vmatpush.msra.mxu0 %v130
    %1082 = vmatpush.msra.mxu0 %v126
    %1083 = vmatpush.msra.mxu0 %v122
    %1084 = vmatpush.msra.mxu0 %v118
    %1085 = vmatpush.msra.mxu0 %v114
    %1086 = vmatpush.msra.mxu0 %v110
    %1087 = vmatpush.msra.mxu0 %v106
    %1088 = vmatpush.msra.mxu0 %v102
    %1089 = vmatpush.msra.mxu0 %v98
    %1090 = vmatpush.msra.mxu0 %v94
    %1091 = vmatpush.msra.mxu0 %v90
    %1092 = vmatpush.msra.mxu0 %v86
    %1093 = vmatpush.msra.mxu0 %v82
    %1094 = vmatpush.msra.mxu0 %v78
    %1095 = vmatmul.f32.gmra.mxu0 %v844
    %v1096 = vpop.f32.mrf.mxu0
    %v1097 = vadd.f32 0.0, %v1096
    %1098 = vdwg.mxu0
    %1099 = vmatpush.msra.mxu0 %v139
    %1100 = vmatpush.msra.mxu0 %v135
    %1101 = vmatpush.msra.mxu0 %v131
    %1102 = vmatpush.msra.mxu0 %v127
    %1103 = vmatpush.msra.mxu0 %v123
    %1104 = vmatpush.msra.mxu0 %v119
    %1105 = vmatpush.msra.mxu0 %v115
    %1106 = vmatpush.msra.mxu0 %v111
    %1107 = vmatpush.msra.mxu0 %v107
    %1108 = vmatpush.msra.mxu0 %v103
    %1109 = vmatpush.msra.mxu0 %v99
    %1110 = vmatpush.msra.mxu0 %v95
    %1111 = vmatpush.msra.mxu0 %v91
    %1112 = vmatpush.msra.mxu0 %v87
    %1113 = vmatpush.msra.mxu0 %v83
    %1114 = vmatpush.msra.mxu0 %v79
    %1115 = vmatmul.f32.gmra.mxu0 %v844
    %v1116 = vpop.f32.mrf.mxu0
    %v1117 = vadd.f32 0.0, %v1116
    %1118 = vdwg.mxu0
    %1119 = vmatpush.msra.mxu0 %v140
    %1120 = vmatpush.msra.mxu0 %v136
    %1121 = vmatpush.msra.mxu0 %v132
    %1122 = vmatpush.msra.mxu0 %v128
    %1123 = vmatpush.msra.mxu0 %v124
    %1124 = vmatpush.msra.mxu0 %v120
    %1125 = vmatpush.msra.mxu0 %v116
    %1126 = vmatpush.msra.mxu0 %v112
    %1127 = vmatpush.msra.mxu0 %v108
    %1128 = vmatpush.msra.mxu0 %v104
    %1129 = vmatpush.msra.mxu0 %v100
    %1130 = vmatpush.msra.mxu0 %v96
    %1131 = vmatpush.msra.mxu0 %v92
    %1132 = vmatpush.msra.mxu0 %v88
    %1133 = vmatpush.msra.mxu0 %v84
    %1134 = vmatpush.msra.mxu0 %v80
    %1135 = vmatmul.f32.gmra.mxu0 %v844
    %v1136 = vpop.f32.mrf.mxu0
    %v1137 = vadd.f32 0.0, %v1136
    %1138 = vdwg.mxu0
    %1139 = vmatpush.msra.mxu0 %v141
    %1140 = vmatpush.msra.mxu0 %v137
    %1141 = vmatpush.msra.mxu0 %v133
    %1142 = vmatpush.msra.mxu0 %v129
    %1143 = vmatpush.msra.mxu0 %v125
    %1144 = vmatpush.msra.mxu0 %v121
    %1145 = vmatpush.msra.mxu0 %v117
    %1146 = vmatpush.msra.mxu0 %v113
    %1147 = vmatpush.msra.mxu0 %v109
    %1148 = vmatpush.msra.mxu0 %v105
    %1149 = vmatpush.msra.mxu0 %v101
    %1150 = vmatpush.msra.mxu0 %v97
    %1151 = vmatpush.msra.mxu0 %v93
    %1152 = vmatpush.msra.mxu0 %v89
    %1153 = vmatpush.msra.mxu0 %v85
    %1154 = vmatpush.msra.mxu0 %v81
    %1155 = vmatmul.f32.gmra.mxu0 %v844
    %v1156 = vpop.f32.mrf.mxu0
    %v1157 = vadd.f32 0.0, %v1156
    %1158 = vdwg.mxu0
    %v1159 = vadd.f32 %v1075, %v1097
    %v1160 = vadd.f32 %v1076, %v1117
    %v1161 = vadd.f32 %v1077, %v1137
    %v1162 = vadd.f32 %v1078, %v1157
    %v1163 = vadd.f32 %v1159, %v272
    %v1164 = vadd.f32 %v1160, %v273
    %v1165 = vadd.f32 %v1161, %v274
    %v1166 = vadd.f32 %v1162, %v275
    %v1167 = vxor.u32 %v1163, 2147483648
    %v1168 = vmul.f32 %v1167, 1.442695
    %v1169 = vpow.pop %v1168
    %v1170 = vadd.f32 %v1169, 1.0
    %v1171 = vrcp.pop %v1170
    %v1172 = vmul.f32 %v1170, %v1171
    %v1173 = vsub.f32 1.0, %v1172
    %v1174 = vmul.f32 %v1171, %v1173
    %v1175 = vadd.f32 %v1171, %v1174
    %vm1176 = vweird.f32 %v1170
    %vm1177 = vweird.f32 %v1171
    %vm1178 = vmor %vm1176, %vm1177
    %v1179 = vsel %vm1178, %v1171, %v1175
    %v1180 = vand.u32 2147483647, %v1170
    %vm1181 = vcmp.eq.f32.partialorder %v1180, 8.507059e+37
    %v1182 = vand.u32 %v1170, 2147483648
    %v1183 = vor.u32 1.1754944e-38, %v1182
    %v1184 = vsel %vm1181, %v1183, %v1179
    %v1185 = vmul.f32 1.0, %v1184
    %v1186 = vxor.u32 %v1164, 2147483648
    %v1187 = vmul.f32 %v1186, 1.442695
    %v1188 = vpow.pop %v1187
    %v1189 = vadd.f32 %v1188, 1.0
    %v1190 = vrcp.pop %v1189
    %v1191 = vmul.f32 %v1189, %v1190
    %v1192 = vsub.f32 1.0, %v1191
    %v1193 = vmul.f32 %v1190, %v1192
    %v1194 = vadd.f32 %v1190, %v1193
    %vm1195 = vweird.f32 %v1189
    %vm1196 = vweird.f32 %v1190
    %vm1197 = vmor %vm1195, %vm1196
    %v1198 = vsel %vm1197, %v1190, %v1194
    %v1199 = vand.u32 2147483647, %v1189
    %vm1200 = vcmp.eq.f32.partialorder %v1199, 8.507059e+37
    %v1201 = vand.u32 %v1189, 2147483648
    %v1202 = vor.u32 1.1754944e-38, %v1201
    %v1203 = vsel %vm1200, %v1202, %v1198
    %v1204 = vmul.f32 1.0, %v1203
    %v1205 = vtanh.pop %v1165
    %v1206 = vxor.u32 %v1166, 2147483648
    %v1207 = vmul.f32 %v1206, 1.442695
    %v1208 = vpow.pop %v1207
    %v1209 = vadd.f32 %v1208, 1.0
    %v1210 = vrcp.pop %v1209
    %v1211 = vmul.f32 %v1209, %v1210
    %v1212 = vsub.f32 1.0, %v1211
    %v1213 = vmul.f32 %v1210, %v1212
    %v1214 = vadd.f32 %v1210, %v1213
    %vm1215 = vweird.f32 %v1209
    %vm1216 = vweird.f32 %v1210
    %vm1217 = vmor %vm1215, %vm1216
    %v1218 = vsel %vm1217, %v1210, %v1214
    %v1219 = vand.u32 2147483647, %v1209
    %vm1220 = vcmp.eq.f32.partialorder %v1219, 8.507059e+37
    %v1221 = vand.u32 %v1209, 2147483648
    %v1222 = vor.u32 1.1754944e-38, %v1221
    %v1223 = vsel %vm1220, %v1222, %v1218
    %v1224 = vmul.f32 1.0, %v1223
    %v1225 = vmul.f32 %v1204, %v842
    %v1226 = vmul.f32 %v1185, %v1205
    %v1227 = vadd.f32 %v1225, %v1226
    %v1228 = vtanh.pop %v1227
    %v1229 = vmul.f32 %v1224, %v1228
    %1230 = vmatpush.msra.mxu0 %v202
    %1231 = vmatpush.msra.mxu0 %v198
    %1232 = vmatpush.msra.mxu0 %v194
    %1233 = vmatpush.msra.mxu0 %v190
    %1234 = vmatpush.msra.mxu0 %v186
    %1235 = vmatpush.msra.mxu0 %v182
    %1236 = vmatpush.msra.mxu0 %v178
    %1237 = vmatpush.msra.mxu0 %v174
    %1238 = vmatpush.msra.mxu0 %v170
    %1239 = vmatpush.msra.mxu0 %v166
    %1240 = vmatpush.msra.mxu0 %v162
    %1241 = vmatpush.msra.mxu0 %v158
    %1242 = vmatpush.msra.mxu0 %v154
    %1243 = vmatpush.msra.mxu0 %v150
    %1244 = vmatpush.msra.mxu0 %v146
    %1245 = vmatpush.msra.mxu0 %v142
    %1246 = vmatmul.f32.gmra.mxu0 %v1229
    %v1247 = vpop.f32.mrf.mxu0
    %v1248 = vadd.f32 %v282, %v1247
    %1249 = vdwg.mxu0
    %1250 = vmatpush.msra.mxu0 %v266
    %1251 = vmatpush.msra.mxu0 %v262
    %1252 = vmatpush.msra.mxu0 %v258
    %1253 = vmatpush.msra.mxu0 %v254
    %1254 = vmatpush.msra.mxu0 %v250
    %1255 = vmatpush.msra.mxu0 %v246
    %1256 = vmatpush.msra.mxu0 %v242
    %1257 = vmatpush.msra.mxu0 %v238
    %1258 = vmatpush.msra.mxu0 %v234
    %1259 = vmatpush.msra.mxu0 %v230
    %1260 = vmatpush.msra.mxu0 %v226
    %1261 = vmatpush.msra.mxu0 %v222
    %1262 = vmatpush.msra.mxu0 %v218
    %1263 = vmatpush.msra.mxu0 %v214
    %1264 = vmatpush.msra.mxu0 %v210
    %1265 = vmatpush.msra.mxu0 %v206
    %1266 = vmatmul.f32.gmra.mxu0 %v1067
    %v1267 = vpop.f32.mrf.mxu0
    %v1268 = vadd.f32 %v1248, %v1267
    %1269 = vdwg.mxu0
    %1270 = vmatpush.msra.mxu0 %v203
    %1271 = vmatpush.msra.mxu0 %v199
    %1272 = vmatpush.msra.mxu0 %v195
    %1273 = vmatpush.msra.mxu0 %v191
    %1274 = vmatpush.msra.mxu0 %v187
    %1275 = vmatpush.msra.mxu0 %v183
    %1276 = vmatpush.msra.mxu0 %v179
    %1277 = vmatpush.msra.mxu0 %v175
    %1278 = vmatpush.msra.mxu0 %v171
    %1279 = vmatpush.msra.mxu0 %v167
    %1280 = vmatpush.msra.mxu0 %v163
    %1281 = vmatpush.msra.mxu0 %v159
    %1282 = vmatpush.msra.mxu0 %v155
    %1283 = vmatpush.msra.mxu0 %v151
    %1284 = vmatpush.msra.mxu0 %v147
    %1285 = vmatpush.msra.mxu0 %v143
    %1286 = vmatmul.f32.gmra.mxu0 %v1229
    %v1287 = vpop.f32.mrf.mxu0
    %v1288 = vadd.f32 %v283, %v1287
    %1289 = vdwg.mxu0
    %1290 = vmatpush.msra.mxu0 %v267
    %1291 = vmatpush.msra.mxu0 %v263
    %1292 = vmatpush.msra.mxu0 %v259
    %1293 = vmatpush.msra.mxu0 %v255
    %1294 = vmatpush.msra.mxu0 %v251
    %1295 = vmatpush.msra.mxu0 %v247
    %1296 = vmatpush.msra.mxu0 %v243
    %1297 = vmatpush.msra.mxu0 %v239
    %1298 = vmatpush.msra.mxu0 %v235
    %1299 = vmatpush.msra.mxu0 %v231
    %1300 = vmatpush.msra.mxu0 %v227
    %1301 = vmatpush.msra.mxu0 %v223
    %1302 = vmatpush.msra.mxu0 %v219
    %1303 = vmatpush.msra.mxu0 %v215
    %1304 = vmatpush.msra.mxu0 %v211
    %1305 = vmatpush.msra.mxu0 %v207
    %1306 = vmatmul.f32.gmra.mxu0 %v1067
    %v1307 = vpop.f32.mrf.mxu0
    %v1308 = vadd.f32 %v1288, %v1307
    %1309 = vdwg.mxu0
    %1310 = vmatpush.msra.mxu0 %v204
    %1311 = vmatpush.msra.mxu0 %v200
    %1312 = vmatpush.msra.mxu0 %v196
    %1313 = vmatpush.msra.mxu0 %v192
    %1314 = vmatpush.msra.mxu0 %v188
    %1315 = vmatpush.msra.mxu0 %v184
    %1316 = vmatpush.msra.mxu0 %v180
    %1317 = vmatpush.msra.mxu0 %v176
    %1318 = vmatpush.msra.mxu0 %v172
    %1319 = vmatpush.msra.mxu0 %v168
    %1320 = vmatpush.msra.mxu0 %v164
    %1321 = vmatpush.msra.mxu0 %v160
    %1322 = vmatpush.msra.mxu0 %v156
    %1323 = vmatpush.msra.mxu0 %v152
    %1324 = vmatpush.msra.mxu0 %v148
    %1325 = vmatpush.msra.mxu0 %v144
    %1326 = vmatmul.f32.gmra.mxu0 %v1229
    %v1327 = vpop.f32.mrf.mxu0
    %v1328 = vadd.f32 %v284, %v1327
    %1329 = vdwg.mxu0
    %1330 = vmatpush.msra.mxu0 %v268
    %1331 = vmatpush.msra.mxu0 %v264
    %1332 = vmatpush.msra.mxu0 %v260
    %1333 = vmatpush.msra.mxu0 %v256
    %1334 = vmatpush.msra.mxu0 %v252
    %1335 = vmatpush.msra.mxu0 %v248
    %1336 = vmatpush.msra.mxu0 %v244
    %1337 = vmatpush.msra.mxu0 %v240
    %1338 = vmatpush.msra.mxu0 %v236
    %1339 = vmatpush.msra.mxu0 %v232
    %1340 = vmatpush.msra.mxu0 %v228
    %1341 = vmatpush.msra.mxu0 %v224
    %1342 = vmatpush.msra.mxu0 %v220
    %1343 = vmatpush.msra.mxu0 %v216
    %1344 = vmatpush.msra.mxu0 %v212
    %1345 = vmatpush.msra.mxu0 %v208
    %1346 = vmatmul.f32.gmra.mxu0 %v1067
    %v1347 = vpop.f32.mrf.mxu0
    %v1348 = vadd.f32 %v1328, %v1347
    %1349 = vdwg.mxu0
    %1350 = vmatpush.msra.mxu0 %v205
    %1351 = vmatpush.msra.mxu0 %v201
    %1352 = vmatpush.msra.mxu0 %v197
    %1353 = vmatpush.msra.mxu0 %v193
    %1354 = vmatpush.msra.mxu0 %v189
    %1355 = vmatpush.msra.mxu0 %v185
    %1356 = vmatpush.msra.mxu0 %v181
    %1357 = vmatpush.msra.mxu0 %v177
    %1358 = vmatpush.msra.mxu0 %v173
    %1359 = vmatpush.msra.mxu0 %v169
    %1360 = vmatpush.msra.mxu0 %v165
    %1361 = vmatpush.msra.mxu0 %v161
    %1362 = vmatpush.msra.mxu0 %v157
    %1363 = vmatpush.msra.mxu0 %v153
    %1364 = vmatpush.msra.mxu0 %v149
    %1365 = vmatpush.msra.mxu0 %v145
    %1366 = vmatmul.f32.gmra.mxu0 %v1229
    %v1367 = vpop.f32.mrf.mxu0
    %v1368 = vadd.f32 %v285, %v1367
    %1369 = vdwg.mxu0
    %1370 = vmatpush.msra.mxu0 %v269
    %1371 = vmatpush.msra.mxu0 %v265
    %1372 = vmatpush.msra.mxu0 %v261
    %1373 = vmatpush.msra.mxu0 %v257
    %1374 = vmatpush.msra.mxu0 %v253
    %1375 = vmatpush.msra.mxu0 %v249
    %1376 = vmatpush.msra.mxu0 %v245
    %1377 = vmatpush.msra.mxu0 %v241
    %1378 = vmatpush.msra.mxu0 %v237
    %1379 = vmatpush.msra.mxu0 %v233
    %1380 = vmatpush.msra.mxu0 %v229
    %1381 = vmatpush.msra.mxu0 %v225
    %1382 = vmatpush.msra.mxu0 %v221
    %1383 = vmatpush.msra.mxu0 %v217
    %1384 = vmatpush.msra.mxu0 %v213
    %1385 = vmatpush.msra.mxu0 %v209
    %1386 = vmatmul.f32.gmra.mxu0 %v1067
    %v1387 = vpop.f32.mrf.mxu0
    %v1388 = vadd.f32 %v1368, %v1387
    %1389 = vdwg.mxu0
    %v1390 = vxor.u32 %v1268, 2147483648
    %v1391 = vmul.f32 %v1390, 1.442695
    %v1392 = vpow.pop %v1391
    %v1393 = vadd.f32 %v1392, 1.0
    %v1394 = vrcp.pop %v1393
    %v1395 = vmul.f32 %v1393, %v1394
    %v1396 = vsub.f32 1.0, %v1395
    %v1397 = vmul.f32 %v1394, %v1396
    %v1398 = vadd.f32 %v1394, %v1397
    %vm1399 = vweird.f32 %v1393
    %vm1400 = vweird.f32 %v1394
    %vm1401 = vmor %vm1399, %vm1400
    %v1402 = vsel %vm1401, %v1394, %v1398
    %v1403 = vand.u32 2147483647, %v1393
    %vm1404 = vcmp.eq.f32.partialorder %v1403, 8.507059e+37
    %v1405 = vand.u32 %v1393, 2147483648
    %v1406 = vor.u32 1.1754944e-38, %v1405
    %v1407 = vsel %vm1404, %v1406, %v1402
    %v1408 = vmul.f32 1.0, %v1407
    %v1409 = vxor.u32 %v1308, 2147483648
    %v1410 = vmul.f32 %v1409, 1.442695
    %v1411 = vpow.pop %v1410
    %v1412 = vadd.f32 %v1411, 1.0
    %v1413 = vrcp.pop %v1412
    %v1414 = vmul.f32 %v1412, %v1413
    %v1415 = vsub.f32 1.0, %v1414
    %v1416 = vmul.f32 %v1413, %v1415
    %v1417 = vadd.f32 %v1413, %v1416
    %vm1418 = vweird.f32 %v1412
    %vm1419 = vweird.f32 %v1413
    %vm1420 = vmor %vm1418, %vm1419
    %v1421 = vsel %vm1420, %v1413, %v1417
    %v1422 = vand.u32 2147483647, %v1412
    %vm1423 = vcmp.eq.f32.partialorder %v1422, 8.507059e+37
    %v1424 = vand.u32 %v1412, 2147483648
    %v1425 = vor.u32 1.1754944e-38, %v1424
    %v1426 = vsel %vm1423, %v1425, %v1421
    %v1427 = vmul.f32 1.0, %v1426
    %v1428 = vtanh.pop %v1348
    %v1429 = vxor.u32 %v1388, 2147483648
    %v1430 = vmul.f32 %v1429, 1.442695
    %v1431 = vpow.pop %v1430
    %v1432 = vadd.f32 %v1431, 1.0
    %v1433 = vrcp.pop %v1432
    %v1434 = vmul.f32 %v1432, %v1433
    %v1435 = vsub.f32 1.0, %v1434
    %v1436 = vmul.f32 %v1433, %v1435
    %v1437 = vadd.f32 %v1433, %v1436
    %vm1438 = vweird.f32 %v1432
    %vm1439 = vweird.f32 %v1433
    %vm1440 = vmor %vm1438, %vm1439
    %v1441 = vsel %vm1440, %v1433, %v1437
    %v1442 = vand.u32 2147483647, %v1432
    %vm1443 = vcmp.eq.f32.partialorder %v1442, 8.507059e+37
    %v1444 = vand.u32 %v1432, 2147483648
    %v1445 = vor.u32 1.1754944e-38, %v1444
    %v1446 = vsel %vm1443, %v1445, %v1441
    %v1447 = vmul.f32 1.0, %v1446
    %v1448 = vmul.f32 %v1427, %v1065
    %v1449 = vmul.f32 %v1408, %v1428
    %v1450 = vadd.f32 %v1448, %v1449
    %v1451 = vtanh.pop %v1450
    %v1452 = vmul.f32 %v1447, %v1451
    %s1453 = scalar_lea.vmem %s0, 24
    %v1454 = vld [vmem:[%s1453] sm:$0xff]
    %1456 = vset.pattern.permute.xlu0 0
    %1457 = vperm.xlu0 %1456, %v1454
    %v1458 = vpop.permute.xlu0 %1457
    %v1460 = vmul.f32 %v1458, %v297
    %v1461 = vmul.f32 %v1458, %v298
    %v1462 = vmul.f32 %v1458, %v299
    %v1463 = vmul.f32 %v1458, %v300
    %1464 = vmatpush.msra.mxu0 %v138
    %1465 = vmatpush.msra.mxu0 %v134
    %1466 = vmatpush.msra.mxu0 %v130
    %1467 = vmatpush.msra.mxu0 %v126
    %1468 = vmatpush.msra.mxu0 %v122
    %1469 = vmatpush.msra.mxu0 %v118
    %1470 = vmatpush.msra.mxu0 %v114
    %1471 = vmatpush.msra.mxu0 %v110
    %1472 = vmatpush.msra.mxu0 %v106
    %1473 = vmatpush.msra.mxu0 %v102
    %1474 = vmatpush.msra.mxu0 %v98
    %1475 = vmatpush.msra.mxu0 %v94
    %1476 = vmatpush.msra.mxu0 %v90
    %1477 = vmatpush.msra.mxu0 %v86
    %1478 = vmatpush.msra.mxu0 %v82
    %1479 = vmatpush.msra.mxu0 %v78
    %1480 = vmatmul.f32.gmra.mxu0 %v1229
    %v1481 = vpop.f32.mrf.mxu0
    %v1482 = vadd.f32 0.0, %v1481
    %1483 = vdwg.mxu0
    %1484 = vmatpush.msra.mxu0 %v139
    %1485 = vmatpush.msra.mxu0 %v135
    %1486 = vmatpush.msra.mxu0 %v131
    %1487 = vmatpush.msra.mxu0 %v127
    %1488 = vmatpush.msra.mxu0 %v123
    %1489 = vmatpush.msra.mxu0 %v119
    %1490 = vmatpush.msra.mxu0 %v115
    %1491 = vmatpush.msra.mxu0 %v111
    %1492 = vmatpush.msra.mxu0 %v107
    %1493 = vmatpush.msra.mxu0 %v103
    %1494 = vmatpush.msra.mxu0 %v99
    %1495 = vmatpush.msra.mxu0 %v95
    %1496 = vmatpush.msra.mxu0 %v91
    %1497 = vmatpush.msra.mxu0 %v87
    %1498 = vmatpush.msra.mxu0 %v83
    %1499 = vmatpush.msra.mxu0 %v79
    %1500 = vmatmul.f32.gmra.mxu0 %v1229
    %v1501 = vpop.f32.mrf.mxu0
    %v1502 = vadd.f32 0.0, %v1501
    %1503 = vdwg.mxu0
    %1504 = vmatpush.msra.mxu0 %v140
    %1505 = vmatpush.msra.mxu0 %v136
    %1506 = vmatpush.msra.mxu0 %v132
    %1507 = vmatpush.msra.mxu0 %v128
    %1508 = vmatpush.msra.mxu0 %v124
    %1509 = vmatpush.msra.mxu0 %v120
    %1510 = vmatpush.msra.mxu0 %v116
    %1511 = vmatpush.msra.mxu0 %v112
    %1512 = vmatpush.msra.mxu0 %v108
    %1513 = vmatpush.msra.mxu0 %v104
    %1514 = vmatpush.msra.mxu0 %v100
    %1515 = vmatpush.msra.mxu0 %v96
    %1516 = vmatpush.msra.mxu0 %v92
    %1517 = vmatpush.msra.mxu0 %v88
    %1518 = vmatpush.msra.mxu0 %v84
    %1519 = vmatpush.msra.mxu0 %v80
    %1520 = vmatmul.f32.gmra.mxu0 %v1229
    %v1521 = vpop.f32.mrf.mxu0
    %v1522 = vadd.f32 0.0, %v1521
    %1523 = vdwg.mxu0
    %1524 = vmatpush.msra.mxu0 %v141
    %1525 = vmatpush.msra.mxu0 %v137
    %1526 = vmatpush.msra.mxu0 %v133
    %1527 = vmatpush.msra.mxu0 %v129
    %1528 = vmatpush.msra.mxu0 %v125
    %1529 = vmatpush.msra.mxu0 %v121
    %1530 = vmatpush.msra.mxu0 %v117
    %1531 = vmatpush.msra.mxu0 %v113
    %1532 = vmatpush.msra.mxu0 %v109
    %1533 = vmatpush.msra.mxu0 %v105
    %1534 = vmatpush.msra.mxu0 %v101
    %1535 = vmatpush.msra.mxu0 %v97
    %1536 = vmatpush.msra.mxu0 %v93
    %1537 = vmatpush.msra.mxu0 %v89
    %1538 = vmatpush.msra.mxu0 %v85
    %1539 = vmatpush.msra.mxu0 %v81
    %1540 = vmatmul.f32.gmra.mxu0 %v1229
    %v1541 = vpop.f32.mrf.mxu0
    %v1542 = vadd.f32 0.0, %v1541
    %1543 = vdwg.mxu0
    %v1544 = vadd.f32 %v1460, %v1482
    %v1545 = vadd.f32 %v1461, %v1502
    %v1546 = vadd.f32 %v1462, %v1522
    %v1547 = vadd.f32 %v1463, %v1542
    %v1548 = vadd.f32 %v1544, %v272
    %v1549 = vadd.f32 %v1545, %v273
    %v1550 = vadd.f32 %v1546, %v274
    %v1551 = vadd.f32 %v1547, %v275
    %v1552 = vxor.u32 %v1548, 2147483648
    %v1553 = vmul.f32 %v1552, 1.442695
    %v1554 = vpow.pop %v1553
    %v1555 = vadd.f32 %v1554, 1.0
    %v1556 = vrcp.pop %v1555
    %v1557 = vmul.f32 %v1555, %v1556
    %v1558 = vsub.f32 1.0, %v1557
    %v1559 = vmul.f32 %v1556, %v1558
    %v1560 = vadd.f32 %v1556, %v1559
    %vm1561 = vweird.f32 %v1555
    %vm1562 = vweird.f32 %v1556
    %vm1563 = vmor %vm1561, %vm1562
    %v1564 = vsel %vm1563, %v1556, %v1560
    %v1565 = vand.u32 2147483647, %v1555
    %vm1566 = vcmp.eq.f32.partialorder %v1565, 8.507059e+37
    %v1567 = vand.u32 %v1555, 2147483648
    %v1568 = vor.u32 1.1754944e-38, %v1567
    %v1569 = vsel %vm1566, %v1568, %v1564
    %v1570 = vmul.f32 1.0, %v1569
    %v1571 = vxor.u32 %v1549, 2147483648
    %v1572 = vmul.f32 %v1571, 1.442695
    %v1573 = vpow.pop %v1572
    %v1574 = vadd.f32 %v1573, 1.0
    %v1575 = vrcp.pop %v1574
    %v1576 = vmul.f32 %v1574, %v1575
    %v1577 = vsub.f32 1.0, %v1576
    %v1578 = vmul.f32 %v1575, %v1577
    %v1579 = vadd.f32 %v1575, %v1578
    %vm1580 = vweird.f32 %v1574
    %vm1581 = vweird.f32 %v1575
    %vm1582 = vmor %vm1580, %vm1581
    %v1583 = vsel %vm1582, %v1575, %v1579
    %v1584 = vand.u32 2147483647, %v1574
    %vm1585 = vcmp.eq.f32.partialorder %v1584, 8.507059e+37
    %v1586 = vand.u32 %v1574, 2147483648
    %v1587 = vor.u32 1.1754944e-38, %v1586
    %v1588 = vsel %vm1585, %v1587, %v1583
    %v1589 = vmul.f32 1.0, %v1588
    %v1590 = vtanh.pop %v1550
    %v1591 = vxor.u32 %v1551, 2147483648
    %v1592 = vmul.f32 %v1591, 1.442695
    %v1593 = vpow.pop %v1592
    %v1594 = vadd.f32 %v1593, 1.0
    %v1595 = vrcp.pop %v1594
    %v1596 = vmul.f32 %v1594, %v1595
    %v1597 = vsub.f32 1.0, %v1596
    %v1598 = vmul.f32 %v1595, %v1597
    %v1599 = vadd.f32 %v1595, %v1598
    %vm1600 = vweird.f32 %v1594
    %vm1601 = vweird.f32 %v1595
    %vm1602 = vmor %vm1600, %vm1601
    %v1603 = vsel %vm1602, %v1595, %v1599
    %v1604 = vand.u32 2147483647, %v1594
    %vm1605 = vcmp.eq.f32.partialorder %v1604, 8.507059e+37
    %v1606 = vand.u32 %v1594, 2147483648
    %v1607 = vor.u32 1.1754944e-38, %v1606
    %v1608 = vsel %vm1605, %v1607, %v1603
    %v1609 = vmul.f32 1.0, %v1608
    %v1610 = vmul.f32 %v1589, %v1227
    %v1611 = vmul.f32 %v1570, %v1590
    %v1612 = vadd.f32 %v1610, %v1611
    %v1613 = vtanh.pop %v1612
    %v1614 = vmul.f32 %v1609, %v1613
    %1615 = vmatpush.msra.mxu0 %v202
    %1616 = vmatpush.msra.mxu0 %v198
    %1617 = vmatpush.msra.mxu0 %v194
    %1618 = vmatpush.msra.mxu0 %v190
    %1619 = vmatpush.msra.mxu0 %v186
    %1620 = vmatpush.msra.mxu0 %v182
    %1621 = vmatpush.msra.mxu0 %v178
    %1622 = vmatpush.msra.mxu0 %v174
    %1623 = vmatpush.msra.mxu0 %v170
    %1624 = vmatpush.msra.mxu0 %v166
    %1625 = vmatpush.msra.mxu0 %v162
    %1626 = vmatpush.msra.mxu0 %v158
    %1627 = vmatpush.msra.mxu0 %v154
    %1628 = vmatpush.msra.mxu0 %v150
    %1629 = vmatpush.msra.mxu0 %v146
    %1630 = vmatpush.msra.mxu0 %v142
    %1631 = vmatmul.f32.gmra.mxu0 %v1614
    %v1632 = vpop.f32.mrf.mxu0
    %v1633 = vadd.f32 %v282, %v1632
    %1634 = vdwg.mxu0
    %1635 = vmatpush.msra.mxu0 %v266
    %1636 = vmatpush.msra.mxu0 %v262
    %1637 = vmatpush.msra.mxu0 %v258
    %1638 = vmatpush.msra.mxu0 %v254
    %1639 = vmatpush.msra.mxu0 %v250
    %1640 = vmatpush.msra.mxu0 %v246
    %1641 = vmatpush.msra.mxu0 %v242
    %1642 = vmatpush.msra.mxu0 %v238
    %1643 = vmatpush.msra.mxu0 %v234
    %1644 = vmatpush.msra.mxu0 %v230
    %1645 = vmatpush.msra.mxu0 %v226
    %1646 = vmatpush.msra.mxu0 %v222
    %1647 = vmatpush.msra.mxu0 %v218
    %1648 = vmatpush.msra.mxu0 %v214
    %1649 = vmatpush.msra.mxu0 %v210
    %1650 = vmatpush.msra.mxu0 %v206
    %1651 = vmatmul.f32.gmra.mxu0 %v1452
    %v1652 = vpop.f32.mrf.mxu0
    %v1653 = vadd.f32 %v1633, %v1652
    %1654 = vdwg.mxu0
    %1655 = vmatpush.msra.mxu0 %v203
    %1656 = vmatpush.msra.mxu0 %v199
    %1657 = vmatpush.msra.mxu0 %v195
    %1658 = vmatpush.msra.mxu0 %v191
    %1659 = vmatpush.msra.mxu0 %v187
    %1660 = vmatpush.msra.mxu0 %v183
    %1661 = vmatpush.msra.mxu0 %v179
    %1662 = vmatpush.msra.mxu0 %v175
    %1663 = vmatpush.msra.mxu0 %v171
    %1664 = vmatpush.msra.mxu0 %v167
    %1665 = vmatpush.msra.mxu0 %v163
    %1666 = vmatpush.msra.mxu0 %v159
    %1667 = vmatpush.msra.mxu0 %v155
    %1668 = vmatpush.msra.mxu0 %v151
    %1669 = vmatpush.msra.mxu0 %v147
    %1670 = vmatpush.msra.mxu0 %v143
    %1671 = vmatmul.f32.gmra.mxu0 %v1614
    %v1672 = vpop.f32.mrf.mxu0
    %v1673 = vadd.f32 %v283, %v1672
    %1674 = vdwg.mxu0
    %1675 = vmatpush.msra.mxu0 %v267
    %1676 = vmatpush.msra.mxu0 %v263
    %1677 = vmatpush.msra.mxu0 %v259
    %1678 = vmatpush.msra.mxu0 %v255
    %1679 = vmatpush.msra.mxu0 %v251
    %1680 = vmatpush.msra.mxu0 %v247
    %1681 = vmatpush.msra.mxu0 %v243
    %1682 = vmatpush.msra.mxu0 %v239
    %1683 = vmatpush.msra.mxu0 %v235
    %1684 = vmatpush.msra.mxu0 %v231
    %1685 = vmatpush.msra.mxu0 %v227
    %1686 = vmatpush.msra.mxu0 %v223
    %1687 = vmatpush.msra.mxu0 %v219
    %1688 = vmatpush.msra.mxu0 %v215
    %1689 = vmatpush.msra.mxu0 %v211
    %1690 = vmatpush.msra.mxu0 %v207
    %1691 = vmatmul.f32.gmra.mxu0 %v1452
    %v1692 = vpop.f32.mrf.mxu0
    %v1693 = vadd.f32 %v1673, %v1692
    %1694 = vdwg.mxu0
    %1695 = vmatpush.msra.mxu0 %v204
    %1696 = vmatpush.msra.mxu0 %v200
    %1697 = vmatpush.msra.mxu0 %v196
    %1698 = vmatpush.msra.mxu0 %v192
    %1699 = vmatpush.msra.mxu0 %v188
    %1700 = vmatpush.msra.mxu0 %v184
    %1701 = vmatpush.msra.mxu0 %v180
    %1702 = vmatpush.msra.mxu0 %v176
    %1703 = vmatpush.msra.mxu0 %v172
    %1704 = vmatpush.msra.mxu0 %v168
    %1705 = vmatpush.msra.mxu0 %v164
    %1706 = vmatpush.msra.mxu0 %v160
    %1707 = vmatpush.msra.mxu0 %v156
    %1708 = vmatpush.msra.mxu0 %v152
    %1709 = vmatpush.msra.mxu0 %v148
    %1710 = vmatpush.msra.mxu0 %v144
    %1711 = vmatmul.f32.gmra.mxu0 %v1614
    %v1712 = vpop.f32.mrf.mxu0
    %v1713 = vadd.f32 %v284, %v1712
    %1714 = vdwg.mxu0
    %1715 = vmatpush.msra.mxu0 %v268
    %1716 = vmatpush.msra.mxu0 %v264
    %1717 = vmatpush.msra.mxu0 %v260
    %1718 = vmatpush.msra.mxu0 %v256
    %1719 = vmatpush.msra.mxu0 %v252
    %1720 = vmatpush.msra.mxu0 %v248
    %1721 = vmatpush.msra.mxu0 %v244
    %1722 = vmatpush.msra.mxu0 %v240
    %1723 = vmatpush.msra.mxu0 %v236
    %1724 = vmatpush.msra.mxu0 %v232
    %1725 = vmatpush.msra.mxu0 %v228
    %1726 = vmatpush.msra.mxu0 %v224
    %1727 = vmatpush.msra.mxu0 %v220
    %1728 = vmatpush.msra.mxu0 %v216
    %1729 = vmatpush.msra.mxu0 %v212
    %1730 = vmatpush.msra.mxu0 %v208
    %1731 = vmatmul.f32.gmra.mxu0 %v1452
    %v1732 = vpop.f32.mrf.mxu0
    %v1733 = vadd.f32 %v1713, %v1732
    %1734 = vdwg.mxu0
    %1735 = vmatpush.msra.mxu0 %v205
    %1736 = vmatpush.msra.mxu0 %v201
    %1737 = vmatpush.msra.mxu0 %v197
    %1738 = vmatpush.msra.mxu0 %v193
    %1739 = vmatpush.msra.mxu0 %v189
    %1740 = vmatpush.msra.mxu0 %v185
    %1741 = vmatpush.msra.mxu0 %v181
    %1742 = vmatpush.msra.mxu0 %v177
    %1743 = vmatpush.msra.mxu0 %v173
    %1744 = vmatpush.msra.mxu0 %v169
    %1745 = vmatpush.msra.mxu0 %v165
    %1746 = vmatpush.msra.mxu0 %v161
    %1747 = vmatpush.msra.mxu0 %v157
    %1748 = vmatpush.msra.mxu0 %v153
    %1749 = vmatpush.msra.mxu0 %v149
    %1750 = vmatpush.msra.mxu0 %v145
    %1751 = vmatmul.f32.gmra.mxu0 %v1614
    %v1752 = vpop.f32.mrf.mxu0
    %v1753 = vadd.f32 %v285, %v1752
    %1754 = vdwg.mxu0
    %1755 = vmatpush.msra.mxu0 %v269
    %1756 = vmatpush.msra.mxu0 %v265
    %1757 = vmatpush.msra.mxu0 %v261
    %1758 = vmatpush.msra.mxu0 %v257
    %1759 = vmatpush.msra.mxu0 %v253
    %1760 = vmatpush.msra.mxu0 %v249
    %1761 = vmatpush.msra.mxu0 %v245
    %1762 = vmatpush.msra.mxu0 %v241
    %1763 = vmatpush.msra.mxu0 %v237
    %1764 = vmatpush.msra.mxu0 %v233
    %1765 = vmatpush.msra.mxu0 %v229
    %1766 = vmatpush.msra.mxu0 %v225
    %1767 = vmatpush.msra.mxu0 %v221
    %1768 = vmatpush.msra.mxu0 %v217
    %1769 = vmatpush.msra.mxu0 %v213
    %1770 = vmatpush.msra.mxu0 %v209
    %1771 = vmatmul.f32.gmra.mxu0 %v1452
    %v1772 = vpop.f32.mrf.mxu0
    %v1773 = vadd.f32 %v1753, %v1772
    %1774 = vdwg.mxu0
    %v1775 = vxor.u32 %v1653, 2147483648
    %v1776 = vmul.f32 %v1775, 1.442695
    %v1777 = vpow.pop %v1776
    %v1778 = vadd.f32 %v1777, 1.0
    %v1779 = vrcp.pop %v1778
    %v1780 = vmul.f32 %v1778, %v1779
    %v1781 = vsub.f32 1.0, %v1780
    %v1782 = vmul.f32 %v1779, %v1781
    %v1783 = vadd.f32 %v1779, %v1782
    %vm1784 = vweird.f32 %v1778
    %vm1785 = vweird.f32 %v1779
    %vm1786 = vmor %vm1784, %vm1785
    %v1787 = vsel %vm1786, %v1779, %v1783
    %v1788 = vand.u32 2147483647, %v1778
    %vm1789 = vcmp.eq.f32.partialorder %v1788, 8.507059e+37
    %v1790 = vand.u32 %v1778, 2147483648
    %v1791 = vor.u32 1.1754944e-38, %v1790
    %v1792 = vsel %vm1789, %v1791, %v1787
    %v1793 = vmul.f32 1.0, %v1792
    %v1794 = vxor.u32 %v1693, 2147483648
    %v1795 = vmul.f32 %v1794, 1.442695
    %v1796 = vpow.pop %v1795
    %v1797 = vadd.f32 %v1796, 1.0
    %v1798 = vrcp.pop %v1797
    %v1799 = vmul.f32 %v1797, %v1798
    %v1800 = vsub.f32 1.0, %v1799
    %v1801 = vmul.f32 %v1798, %v1800
    %v1802 = vadd.f32 %v1798, %v1801
    %vm1803 = vweird.f32 %v1797
    %vm1804 = vweird.f32 %v1798
    %vm1805 = vmor %vm1803, %vm1804
    %v1806 = vsel %vm1805, %v1798, %v1802
    %v1807 = vand.u32 2147483647, %v1797
    %vm1808 = vcmp.eq.f32.partialorder %v1807, 8.507059e+37
    %v1809 = vand.u32 %v1797, 2147483648
    %v1810 = vor.u32 1.1754944e-38, %v1809
    %v1811 = vsel %vm1808, %v1810, %v1806
    %v1812 = vmul.f32 1.0, %v1811
    %v1813 = vtanh.pop %v1733
    %v1814 = vxor.u32 %v1773, 2147483648
    %v1815 = vmul.f32 %v1814, 1.442695
    %v1816 = vpow.pop %v1815
    %v1817 = vadd.f32 %v1816, 1.0
    %v1818 = vrcp.pop %v1817
    %v1819 = vmul.f32 %v1817, %v1818
    %v1820 = vsub.f32 1.0, %v1819
    %v1821 = vmul.f32 %v1818, %v1820
    %v1822 = vadd.f32 %v1818, %v1821
    %vm1823 = vweird.f32 %v1817
    %vm1824 = vweird.f32 %v1818
    %vm1825 = vmor %vm1823, %vm1824
    %v1826 = vsel %vm1825, %v1818, %v1822
    %v1827 = vand.u32 2147483647, %v1817
    %vm1828 = vcmp.eq.f32.partialorder %v1827, 8.507059e+37
    %v1829 = vand.u32 %v1817, 2147483648
    %v1830 = vor.u32 1.1754944e-38, %v1829
    %v1831 = vsel %vm1828, %v1830, %v1826
    %v1832 = vmul.f32 1.0, %v1831
    %v1833 = vmul.f32 %v1812, %v1450
    %v1834 = vmul.f32 %v1793, %v1813
    %v1835 = vadd.f32 %v1833, %v1834
    %v1836 = vtanh.pop %v1835
    %v1837 = vmul.f32 %v1832, %v1836
    %s1838 = scalar_lea.vmem %s0, 32
    %v1839 = vld [vmem:[%s1838] sm:$0xff]
    %1841 = vset.pattern.permute.xlu0 0
    %1842 = vperm.xlu0 %1841, %v1839
    %v1843 = vpop.permute.xlu0 %1842
    %v1845 = vmul.f32 %v1843, %v297
    %v1846 = vmul.f32 %v1843, %v298
    %v1847 = vmul.f32 %v1843, %v299
    %v1848 = vmul.f32 %v1843, %v300
    %1849 = vmatpush.msra.mxu0 %v138
    %1850 = vmatpush.msra.mxu0 %v134
    %1851 = vmatpush.msra.mxu0 %v130
    %1852 = vmatpush.msra.mxu0 %v126
    %1853 = vmatpush.msra.mxu0 %v122
    %1854 = vmatpush.msra.mxu0 %v118
    %1855 = vmatpush.msra.mxu0 %v114
    %1856 = vmatpush.msra.mxu0 %v110
    %1857 = vmatpush.msra.mxu0 %v106
    %1858 = vmatpush.msra.mxu0 %v102
    %1859 = vmatpush.msra.mxu0 %v98
    %1860 = vmatpush.msra.mxu0 %v94
    %1861 = vmatpush.msra.mxu0 %v90
    %1862 = vmatpush.msra.mxu0 %v86
    %1863 = vmatpush.msra.mxu0 %v82
    %1864 = vmatpush.msra.mxu0 %v78
    %1865 = vmatmul.f32.gmra.mxu0 %v1614
    %v1866 = vpop.f32.mrf.mxu0
    %v1867 = vadd.f32 0.0, %v1866
    %1868 = vdwg.mxu0
    %1869 = vmatpush.msra.mxu0 %v139
    %1870 = vmatpush.msra.mxu0 %v135
    %1871 = vmatpush.msra.mxu0 %v131
    %1872 = vmatpush.msra.mxu0 %v127
    %1873 = vmatpush.msra.mxu0 %v123
    %1874 = vmatpush.msra.mxu0 %v119
    %1875 = vmatpush.msra.mxu0 %v115
    %1876 = vmatpush.msra.mxu0 %v111
    %1877 = vmatpush.msra.mxu0 %v107
    %1878 = vmatpush.msra.mxu0 %v103
    %1879 = vmatpush.msra.mxu0 %v99
    %1880 = vmatpush.msra.mxu0 %v95
    %1881 = vmatpush.msra.mxu0 %v91
    %1882 = vmatpush.msra.mxu0 %v87
    %1883 = vmatpush.msra.mxu0 %v83
    %1884 = vmatpush.msra.mxu0 %v79
    %1885 = vmatmul.f32.gmra.mxu0 %v1614
    %v1886 = vpop.f32.mrf.mxu0
    %v1887 = vadd.f32 0.0, %v1886
    %1888 = vdwg.mxu0
    %1889 = vmatpush.msra.mxu0 %v140
    %1890 = vmatpush.msra.mxu0 %v136
    %1891 = vmatpush.msra.mxu0 %v132
    %1892 = vmatpush.msra.mxu0 %v128
    %1893 = vmatpush.msra.mxu0 %v124
    %1894 = vmatpush.msra.mxu0 %v120
    %1895 = vmatpush.msra.mxu0 %v116
    %1896 = vmatpush.msra.mxu0 %v112
    %1897 = vmatpush.msra.mxu0 %v108
    %1898 = vmatpush.msra.mxu0 %v104
    %1899 = vmatpush.msra.mxu0 %v100
    %1900 = vmatpush.msra.mxu0 %v96
    %1901 = vmatpush.msra.mxu0 %v92
    %1902 = vmatpush.msra.mxu0 %v88
    %1903 = vmatpush.msra.mxu0 %v84
    %1904 = vmatpush.msra.mxu0 %v80
    %1905 = vmatmul.f32.gmra.mxu0 %v1614
    %v1906 = vpop.f32.mrf.mxu0
    %v1907 = vadd.f32 0.0, %v1906
    %1908 = vdwg.mxu0
    %1909 = vmatpush.msra.mxu0 %v141
    %1910 = vmatpush.msra.mxu0 %v137
    %1911 = vmatpush.msra.mxu0 %v133
    %1912 = vmatpush.msra.mxu0 %v129
    %1913 = vmatpush.msra.mxu0 %v125
    %1914 = vmatpush.msra.mxu0 %v121
    %1915 = vmatpush.msra.mxu0 %v117
    %1916 = vmatpush.msra.mxu0 %v113
    %1917 = vmatpush.msra.mxu0 %v109
    %1918 = vmatpush.msra.mxu0 %v105
    %1919 = vmatpush.msra.mxu0 %v101
    %1920 = vmatpush.msra.mxu0 %v97
    %1921 = vmatpush.msra.mxu0 %v93
    %1922 = vmatpush.msra.mxu0 %v89
    %1923 = vmatpush.msra.mxu0 %v85
    %1924 = vmatpush.msra.mxu0 %v81
    %1925 = vmatmul.f32.gmra.mxu0 %v1614
    %v1926 = vpop.f32.mrf.mxu0
    %v1927 = vadd.f32 0.0, %v1926
    %1928 = vdwg.mxu0
    %v1929 = vadd.f32 %v1845, %v1867
    %v1930 = vadd.f32 %v1846, %v1887
    %v1931 = vadd.f32 %v1847, %v1907
    %v1932 = vadd.f32 %v1848, %v1927
    %v1933 = vadd.f32 %v1929, %v272
    %v1934 = vadd.f32 %v1930, %v273
    %v1935 = vadd.f32 %v1931, %v274
    %v1936 = vadd.f32 %v1932, %v275
    %v1937 = vxor.u32 %v1933, 2147483648
    %v1938 = vmul.f32 %v1937, 1.442695
    %v1939 = vpow.pop %v1938
    %v1940 = vadd.f32 %v1939, 1.0
    %v1941 = vrcp.pop %v1940
    %v1942 = vmul.f32 %v1940, %v1941
    %v1943 = vsub.f32 1.0, %v1942
    %v1944 = vmul.f32 %v1941, %v1943
    %v1945 = vadd.f32 %v1941, %v1944
    %vm1946 = vweird.f32 %v1940
    %vm1947 = vweird.f32 %v1941
    %vm1948 = vmor %vm1946, %vm1947
    %v1949 = vsel %vm1948, %v1941, %v1945
    %v1950 = vand.u32 2147483647, %v1940
    %vm1951 = vcmp.eq.f32.partialorder %v1950, 8.507059e+37
    %v1952 = vand.u32 %v1940, 2147483648
    %v1953 = vor.u32 1.1754944e-38, %v1952
    %v1954 = vsel %vm1951, %v1953, %v1949
    %v1955 = vmul.f32 1.0, %v1954
    %v1956 = vxor.u32 %v1934, 2147483648
    %v1957 = vmul.f32 %v1956, 1.442695
    %v1958 = vpow.pop %v1957
    %v1959 = vadd.f32 %v1958, 1.0
    %v1960 = vrcp.pop %v1959
    %v1961 = vmul.f32 %v1959, %v1960
    %v1962 = vsub.f32 1.0, %v1961
    %v1963 = vmul.f32 %v1960, %v1962
    %v1964 = vadd.f32 %v1960, %v1963
    %vm1965 = vweird.f32 %v1959
    %vm1966 = vweird.f32 %v1960
    %vm1967 = vmor %vm1965, %vm1966
    %v1968 = vsel %vm1967, %v1960, %v1964
    %v1969 = vand.u32 2147483647, %v1959
    %vm1970 = vcmp.eq.f32.partialorder %v1969, 8.507059e+37
    %v1971 = vand.u32 %v1959, 2147483648
    %v1972 = vor.u32 1.1754944e-38, %v1971
    %v1973 = vsel %vm1970, %v1972, %v1968
    %v1974 = vmul.f32 1.0, %v1973
    %v1975 = vtanh.pop %v1935
    %v1976 = vxor.u32 %v1936, 2147483648
    %v1977 = vmul.f32 %v1976, 1.442695
    %v1978 = vpow.pop %v1977
    %v1979 = vadd.f32 %v1978, 1.0
    %v1980 = vrcp.pop %v1979
    %v1981 = vmul.f32 %v1979, %v1980
    %v1982 = vsub.f32 1.0, %v1981
    %v1983 = vmul.f32 %v1980, %v1982
    %v1984 = vadd.f32 %v1980, %v1983
    %vm1985 = vweird.f32 %v1979
    %vm1986 = vweird.f32 %v1980
    %vm1987 = vmor %vm1985, %vm1986
    %v1988 = vsel %vm1987, %v1980, %v1984
    %v1989 = vand.u32 2147483647, %v1979
    %vm1990 = vcmp.eq.f32.partialorder %v1989, 8.507059e+37
    %v1991 = vand.u32 %v1979, 2147483648
    %v1992 = vor.u32 1.1754944e-38, %v1991
    %v1993 = vsel %vm1990, %v1992, %v1988
    %v1994 = vmul.f32 1.0, %v1993
    %v1995 = vmul.f32 %v1974, %v1612
    %v1996 = vmul.f32 %v1955, %v1975
    %v1997 = vadd.f32 %v1995, %v1996
    %v1998 = vtanh.pop %v1997
    %v1999 = vmul.f32 %v1994, %v1998
    %2000 = vmatpush.msra.mxu0 %v202
    %2001 = vmatpush.msra.mxu0 %v198
    %2002 = vmatpush.msra.mxu0 %v194
    %2003 = vmatpush.msra.mxu0 %v190
    %2004 = vmatpush.msra.mxu0 %v186
    %2005 = vmatpush.msra.mxu0 %v182
    %2006 = vmatpush.msra.mxu0 %v178
    %2007 = vmatpush.msra.mxu0 %v174
    %2008 = vmatpush.msra.mxu0 %v170
    %2009 = vmatpush.msra.mxu0 %v166
    %2010 = vmatpush.msra.mxu0 %v162
    %2011 = vmatpush.msra.mxu0 %v158
    %2012 = vmatpush.msra.mxu0 %v154
    %2013 = vmatpush.msra.mxu0 %v150
    %2014 = vmatpush.msra.mxu0 %v146
    %2015 = vmatpush.msra.mxu0 %v142
    %2016 = vmatmul.f32.gmra.mxu0 %v1999
    %v2017 = vpop.f32.mrf.mxu0
    %v2018 = vadd.f32 %v282, %v2017
    %2019 = vdwg.mxu0
    %2020 = vmatpush.msra.mxu0 %v266
    %2021 = vmatpush.msra.mxu0 %v262
    %2022 = vmatpush.msra.mxu0 %v258
    %2023 = vmatpush.msra.mxu0 %v254
    %2024 = vmatpush.msra.mxu0 %v250
    %2025 = vmatpush.msra.mxu0 %v246
    %2026 = vmatpush.msra.mxu0 %v242
    %2027 = vmatpush.msra.mxu0 %v238
    %2028 = vmatpush.msra.mxu0 %v234
    %2029 = vmatpush.msra.mxu0 %v230
    %2030 = vmatpush.msra.mxu0 %v226
    %2031 = vmatpush.msra.mxu0 %v222
    %2032 = vmatpush.msra.mxu0 %v218
    %2033 = vmatpush.msra.mxu0 %v214
    %2034 = vmatpush.msra.mxu0 %v210
    %2035 = vmatpush.msra.mxu0 %v206
    %2036 = vmatmul.f32.gmra.mxu0 %v1837
    %v2037 = vpop.f32.mrf.mxu0
    %v2038 = vadd.f32 %v2018, %v2037
    %2039 = vdwg.mxu0
    %2040 = vmatpush.msra.mxu0 %v203
    %2041 = vmatpush.msra.mxu0 %v199
    %2042 = vmatpush.msra.mxu0 %v195
    %2043 = vmatpush.msra.mxu0 %v191
    %2044 = vmatpush.msra.mxu0 %v187
    %2045 = vmatpush.msra.mxu0 %v183
    %2046 = vmatpush.msra.mxu0 %v179
    %2047 = vmatpush.msra.mxu0 %v175
    %2048 = vmatpush.msra.mxu0 %v171
    %2049 = vmatpush.msra.mxu0 %v167
    %2050 = vmatpush.msra.mxu0 %v163
    %2051 = vmatpush.msra.mxu0 %v159
    %2052 = vmatpush.msra.mxu0 %v155
    %2053 = vmatpush.msra.mxu0 %v151
    %2054 = vmatpush.msra.mxu0 %v147
    %2055 = vmatpush.msra.mxu0 %v143
    %2056 = vmatmul.f32.gmra.mxu0 %v1999
    %v2057 = vpop.f32.mrf.mxu0
    %v2058 = vadd.f32 %v283, %v2057
    %2059 = vdwg.mxu0
    %2060 = vmatpush.msra.mxu0 %v267
    %2061 = vmatpush.msra.mxu0 %v263
    %2062 = vmatpush.msra.mxu0 %v259
    %2063 = vmatpush.msra.mxu0 %v255
    %2064 = vmatpush.msra.mxu0 %v251
    %2065 = vmatpush.msra.mxu0 %v247
    %2066 = vmatpush.msra.mxu0 %v243
    %2067 = vmatpush.msra.mxu0 %v239
    %2068 = vmatpush.msra.mxu0 %v235
    %2069 = vmatpush.msra.mxu0 %v231
    %2070 = vmatpush.msra.mxu0 %v227
    %2071 = vmatpush.msra.mxu0 %v223
    %2072 = vmatpush.msra.mxu0 %v219
    %2073 = vmatpush.msra.mxu0 %v215
    %2074 = vmatpush.msra.mxu0 %v211
    %2075 = vmatpush.msra.mxu0 %v207
    %2076 = vmatmul.f32.gmra.mxu0 %v1837
    %v2077 = vpop.f32.mrf.mxu0
    %v2078 = vadd.f32 %v2058, %v2077
    %2079 = vdwg.mxu0
    %2080 = vmatpush.msra.mxu0 %v204
    %2081 = vmatpush.msra.mxu0 %v200
    %2082 = vmatpush.msra.mxu0 %v196
    %2083 = vmatpush.msra.mxu0 %v192
    %2084 = vmatpush.msra.mxu0 %v188
    %2085 = vmatpush.msra.mxu0 %v184
    %2086 = vmatpush.msra.mxu0 %v180
    %2087 = vmatpush.msra.mxu0 %v176
    %2088 = vmatpush.msra.mxu0 %v172
    %2089 = vmatpush.msra.mxu0 %v168
    %2090 = vmatpush.msra.mxu0 %v164
    %2091 = vmatpush.msra.mxu0 %v160
    %2092 = vmatpush.msra.mxu0 %v156
    %2093 = vmatpush.msra.mxu0 %v152
    %2094 = vmatpush.msra.mxu0 %v148
    %2095 = vmatpush.msra.mxu0 %v144
    %2096 = vmatmul.f32.gmra.mxu0 %v1999
    %v2097 = vpop.f32.mrf.mxu0
    %v2098 = vadd.f32 %v284, %v2097
    %2099 = vdwg.mxu0
    %2100 = vmatpush.msra.mxu0 %v268
    %2101 = vmatpush.msra.mxu0 %v264
    %2102 = vmatpush.msra.mxu0 %v260
    %2103 = vmatpush.msra.mxu0 %v256
    %2104 = vmatpush.msra.mxu0 %v252
    %2105 = vmatpush.msra.mxu0 %v248
    %2106 = vmatpush.msra.mxu0 %v244
    %2107 = vmatpush.msra.mxu0 %v240
    %2108 = vmatpush.msra.mxu0 %v236
    %2109 = vmatpush.msra.mxu0 %v232
    %2110 = vmatpush.msra.mxu0 %v228
    %2111 = vmatpush.msra.mxu0 %v224
    %2112 = vmatpush.msra.mxu0 %v220
    %2113 = vmatpush.msra.mxu0 %v216
    %2114 = vmatpush.msra.mxu0 %v212
    %2115 = vmatpush.msra.mxu0 %v208
    %2116 = vmatmul.f32.gmra.mxu0 %v1837
    %v2117 = vpop.f32.mrf.mxu0
    %v2118 = vadd.f32 %v2098, %v2117
    %2119 = vdwg.mxu0
    %2120 = vmatpush.msra.mxu0 %v205
    %2121 = vmatpush.msra.mxu0 %v201
    %2122 = vmatpush.msra.mxu0 %v197
    %2123 = vmatpush.msra.mxu0 %v193
    %2124 = vmatpush.msra.mxu0 %v189
    %2125 = vmatpush.msra.mxu0 %v185
    %2126 = vmatpush.msra.mxu0 %v181
    %2127 = vmatpush.msra.mxu0 %v177
    %2128 = vmatpush.msra.mxu0 %v173
    %2129 = vmatpush.msra.mxu0 %v169
    %2130 = vmatpush.msra.mxu0 %v165
    %2131 = vmatpush.msra.mxu0 %v161
    %2132 = vmatpush.msra.mxu0 %v157
    %2133 = vmatpush.msra.mxu0 %v153
    %2134 = vmatpush.msra.mxu0 %v149
    %2135 = vmatpush.msra.mxu0 %v145
    %2136 = vmatmul.f32.gmra.mxu0 %v1999
    %v2137 = vpop.f32.mrf.mxu0
    %v2138 = vadd.f32 %v285, %v2137
    %2139 = vdwg.mxu0
    %2140 = vmatpush.msra.mxu0 %v269
    %2141 = vmatpush.msra.mxu0 %v265
    %2142 = vmatpush.msra.mxu0 %v261
    %2143 = vmatpush.msra.mxu0 %v257
    %2144 = vmatpush.msra.mxu0 %v253
    %2145 = vmatpush.msra.mxu0 %v249
    %2146 = vmatpush.msra.mxu0 %v245
    %2147 = vmatpush.msra.mxu0 %v241
    %2148 = vmatpush.msra.mxu0 %v237
    %2149 = vmatpush.msra.mxu0 %v233
    %2150 = vmatpush.msra.mxu0 %v229
    %2151 = vmatpush.msra.mxu0 %v225
    %2152 = vmatpush.msra.mxu0 %v221
    %2153 = vmatpush.msra.mxu0 %v217
    %2154 = vmatpush.msra.mxu0 %v213
    %2155 = vmatpush.msra.mxu0 %v209
    %2156 = vmatmul.f32.gmra.mxu0 %v1837
    %v2157 = vpop.f32.mrf.mxu0
    %v2158 = vadd.f32 %v2138, %v2157
    %2159 = vdwg.mxu0
    %v2160 = vxor.u32 %v2038, 2147483648
    %v2161 = vmul.f32 %v2160, 1.442695
    %v2162 = vpow.pop %v2161
    %v2163 = vadd.f32 %v2162, 1.0
    %v2164 = vrcp.pop %v2163
    %v2165 = vmul.f32 %v2163, %v2164
    %v2166 = vsub.f32 1.0, %v2165
    %v2167 = vmul.f32 %v2164, %v2166
    %v2168 = vadd.f32 %v2164, %v2167
    %vm2169 = vweird.f32 %v2163
    %vm2170 = vweird.f32 %v2164
    %vm2171 = vmor %vm2169, %vm2170
    %v2172 = vsel %vm2171, %v2164, %v2168
    %v2173 = vand.u32 2147483647, %v2163
    %vm2174 = vcmp.eq.f32.partialorder %v2173, 8.507059e+37
    %v2175 = vand.u32 %v2163, 2147483648
    %v2176 = vor.u32 1.1754944e-38, %v2175
    %v2177 = vsel %vm2174, %v2176, %v2172
    %v2178 = vmul.f32 1.0, %v2177
    %v2179 = vxor.u32 %v2078, 2147483648
    %v2180 = vmul.f32 %v2179, 1.442695
    %v2181 = vpow.pop %v2180
    %v2182 = vadd.f32 %v2181, 1.0
    %v2183 = vrcp.pop %v2182
    %v2184 = vmul.f32 %v2182, %v2183
    %v2185 = vsub.f32 1.0, %v2184
    %v2186 = vmul.f32 %v2183, %v2185
    %v2187 = vadd.f32 %v2183, %v2186
    %vm2188 = vweird.f32 %v2182
    %vm2189 = vweird.f32 %v2183
    %vm2190 = vmor %vm2188, %vm2189
    %v2191 = vsel %vm2190, %v2183, %v2187
    %v2192 = vand.u32 2147483647, %v2182
    %vm2193 = vcmp.eq.f32.partialorder %v2192, 8.507059e+37
    %v2194 = vand.u32 %v2182, 2147483648
    %v2195 = vor.u32 1.1754944e-38, %v2194
    %v2196 = vsel %vm2193, %v2195, %v2191
    %v2197 = vmul.f32 1.0, %v2196
    %v2198 = vtanh.pop %v2118
    %v2199 = vxor.u32 %v2158, 2147483648
    %v2200 = vmul.f32 %v2199, 1.442695
    %v2201 = vpow.pop %v2200
    %v2202 = vadd.f32 %v2201, 1.0
    %v2203 = vrcp.pop %v2202
    %v2204 = vmul.f32 %v2202, %v2203
    %v2205 = vsub.f32 1.0, %v2204
    %v2206 = vmul.f32 %v2203, %v2205
    %v2207 = vadd.f32 %v2203, %v2206
    %vm2208 = vweird.f32 %v2202
    %vm2209 = vweird.f32 %v2203
    %vm2210 = vmor %vm2208, %vm2209
    %v2211 = vsel %vm2210, %v2203, %v2207
    %v2212 = vand.u32 2147483647, %v2202
    %vm2213 = vcmp.eq.f32.partialorder %v2212, 8.507059e+37
    %v2214 = vand.u32 %v2202, 2147483648
    %v2215 = vor.u32 1.1754944e-38, %v2214
    %v2216 = vsel %vm2213, %v2215, %v2211
    %v2217 = vmul.f32 1.0, %v2216
    %v2218 = vmul.f32 %v2197, %v1835
    %v2219 = vmul.f32 %v2178, %v2198
    %v2220 = vadd.f32 %v2218, %v2219
    %v2221 = vtanh.pop %v2220
    %v2222 = vmul.f32 %v2217, %v2221
    %s2223 = scalar_lea.vmem %s0, 40
    %v2224 = vld [vmem:[%s2223] sm:$0xff]
    %2226 = vset.pattern.permute.xlu0 0
    %2227 = vperm.xlu0 %2226, %v2224
    %v2228 = vpop.permute.xlu0 %2227
    %v2230 = vmul.f32 %v2228, %v297
    %v2231 = vmul.f32 %v2228, %v298
    %v2232 = vmul.f32 %v2228, %v299
    %v2233 = vmul.f32 %v2228, %v300
    %2234 = vmatpush.msra.mxu0 %v138
    %2235 = vmatpush.msra.mxu0 %v134
    %2236 = vmatpush.msra.mxu0 %v130
    %2237 = vmatpush.msra.mxu0 %v126
    %2238 = vmatpush.msra.mxu0 %v122
    %2239 = vmatpush.msra.mxu0 %v118
    %2240 = vmatpush.msra.mxu0 %v114
    %2241 = vmatpush.msra.mxu0 %v110
    %2242 = vmatpush.msra.mxu0 %v106
    %2243 = vmatpush.msra.mxu0 %v102
    %2244 = vmatpush.msra.mxu0 %v98
    %2245 = vmatpush.msra.mxu0 %v94
    %2246 = vmatpush.msra.mxu0 %v90
    %2247 = vmatpush.msra.mxu0 %v86
    %2248 = vmatpush.msra.mxu0 %v82
    %2249 = vmatpush.msra.mxu0 %v78
    %2250 = vmatmul.f32.gmra.mxu0 %v1999
    %v2251 = vpop.f32.mrf.mxu0
    %v2252 = vadd.f32 0.0, %v2251
    %2253 = vdwg.mxu0
    %2254 = vmatpush.msra.mxu0 %v139
    %2255 = vmatpush.msra.mxu0 %v135
    %2256 = vmatpush.msra.mxu0 %v131
    %2257 = vmatpush.msra.mxu0 %v127
    %2258 = vmatpush.msra.mxu0 %v123
    %2259 = vmatpush.msra.mxu0 %v119
    %2260 = vmatpush.msra.mxu0 %v115
    %2261 = vmatpush.msra.mxu0 %v111
    %2262 = vmatpush.msra.mxu0 %v107
    %2263 = vmatpush.msra.mxu0 %v103
    %2264 = vmatpush.msra.mxu0 %v99
    %2265 = vmatpush.msra.mxu0 %v95
    %2266 = vmatpush.msra.mxu0 %v91
    %2267 = vmatpush.msra.mxu0 %v87
    %2268 = vmatpush.msra.mxu0 %v83
    %2269 = vmatpush.msra.mxu0 %v79
    %2270 = vmatmul.f32.gmra.mxu0 %v1999
    %v2271 = vpop.f32.mrf.mxu0
    %v2272 = vadd.f32 0.0, %v2271
    %2273 = vdwg.mxu0
    %2274 = vmatpush.msra.mxu0 %v140
    %2275 = vmatpush.msra.mxu0 %v136
    %2276 = vmatpush.msra.mxu0 %v132
    %2277 = vmatpush.msra.mxu0 %v128
    %2278 = vmatpush.msra.mxu0 %v124
    %2279 = vmatpush.msra.mxu0 %v120
    %2280 = vmatpush.msra.mxu0 %v116
    %2281 = vmatpush.msra.mxu0 %v112
    %2282 = vmatpush.msra.mxu0 %v108
    %2283 = vmatpush.msra.mxu0 %v104
    %2284 = vmatpush.msra.mxu0 %v100
    %2285 = vmatpush.msra.mxu0 %v96
    %2286 = vmatpush.msra.mxu0 %v92
    %2287 = vmatpush.msra.mxu0 %v88
    %2288 = vmatpush.msra.mxu0 %v84
    %2289 = vmatpush.msra.mxu0 %v80
    %2290 = vmatmul.f32.gmra.mxu0 %v1999
    %v2291 = vpop.f32.mrf.mxu0
    %v2292 = vadd.f32 0.0, %v2291
    %2293 = vdwg.mxu0
    %2294 = vmatpush.msra.mxu0 %v141
    %2295 = vmatpush.msra.mxu0 %v137
    %2296 = vmatpush.msra.mxu0 %v133
    %2297 = vmatpush.msra.mxu0 %v129
    %2298 = vmatpush.msra.mxu0 %v125
    %2299 = vmatpush.msra.mxu0 %v121
    %2300 = vmatpush.msra.mxu0 %v117
    %2301 = vmatpush.msra.mxu0 %v113
    %2302 = vmatpush.msra.mxu0 %v109
    %2303 = vmatpush.msra.mxu0 %v105
    %2304 = vmatpush.msra.mxu0 %v101
    %2305 = vmatpush.msra.mxu0 %v97
    %2306 = vmatpush.msra.mxu0 %v93
    %2307 = vmatpush.msra.mxu0 %v89
    %2308 = vmatpush.msra.mxu0 %v85
    %2309 = vmatpush.msra.mxu0 %v81
    %2310 = vmatmul.f32.gmra.mxu0 %v1999
    %v2311 = vpop.f32.mrf.mxu0
    %v2312 = vadd.f32 0.0, %v2311
    %2313 = vdwg.mxu0
    %v2314 = vadd.f32 %v2230, %v2252
    %v2315 = vadd.f32 %v2231, %v2272
    %v2316 = vadd.f32 %v2232, %v2292
    %v2317 = vadd.f32 %v2233, %v2312
    %v2318 = vadd.f32 %v2314, %v272
    %v2319 = vadd.f32 %v2315, %v273
    %v2320 = vadd.f32 %v2316, %v274
    %v2321 = vadd.f32 %v2317, %v275
    %v2322 = vxor.u32 %v2318, 2147483648
    %v2323 = vmul.f32 %v2322, 1.442695
    %v2324 = vpow.pop %v2323
    %v2325 = vadd.f32 %v2324, 1.0
    %v2326 = vrcp.pop %v2325
    %v2327 = vmul.f32 %v2325, %v2326
    %v2328 = vsub.f32 1.0, %v2327
    %v2329 = vmul.f32 %v2326, %v2328
    %v2330 = vadd.f32 %v2326, %v2329
    %vm2331 = vweird.f32 %v2325
    %vm2332 = vweird.f32 %v2326
    %vm2333 = vmor %vm2331, %vm2332
    %v2334 = vsel %vm2333, %v2326, %v2330
    %v2335 = vand.u32 2147483647, %v2325
    %vm2336 = vcmp.eq.f32.partialorder %v2335, 8.507059e+37
    %v2337 = vand.u32 %v2325, 2147483648
    %v2338 = vor.u32 1.1754944e-38, %v2337
    %v2339 = vsel %vm2336, %v2338, %v2334
    %v2340 = vmul.f32 1.0, %v2339
    %v2341 = vxor.u32 %v2319, 2147483648
    %v2342 = vmul.f32 %v2341, 1.442695
    %v2343 = vpow.pop %v2342
    %v2344 = vadd.f32 %v2343, 1.0
    %v2345 = vrcp.pop %v2344
    %v2346 = vmul.f32 %v2344, %v2345
    %v2347 = vsub.f32 1.0, %v2346
    %v2348 = vmul.f32 %v2345, %v2347
    %v2349 = vadd.f32 %v2345, %v2348
    %vm2350 = vweird.f32 %v2344
    %vm2351 = vweird.f32 %v2345
    %vm2352 = vmor %vm2350, %vm2351
    %v2353 = vsel %vm2352, %v2345, %v2349
    %v2354 = vand.u32 2147483647, %v2344
    %vm2355 = vcmp.eq.f32.partialorder %v2354, 8.507059e+37
    %v2356 = vand.u32 %v2344, 2147483648
    %v2357 = vor.u32 1.1754944e-38, %v2356
    %v2358 = vsel %vm2355, %v2357, %v2353
    %v2359 = vmul.f32 1.0, %v2358
    %v2360 = vtanh.pop %v2320
    %v2361 = vxor.u32 %v2321, 2147483648
    %v2362 = vmul.f32 %v2361, 1.442695
    %v2363 = vpow.pop %v2362
    %v2364 = vadd.f32 %v2363, 1.0
    %v2365 = vrcp.pop %v2364
    %v2366 = vmul.f32 %v2364, %v2365
    %v2367 = vsub.f32 1.0, %v2366
    %v2368 = vmul.f32 %v2365, %v2367
    %v2369 = vadd.f32 %v2365, %v2368
    %vm2370 = vweird.f32 %v2364
    %vm2371 = vweird.f32 %v2365
    %vm2372 = vmor %vm2370, %vm2371
    %v2373 = vsel %vm2372, %v2365, %v2369
    %v2374 = vand.u32 2147483647, %v2364
    %vm2375 = vcmp.eq.f32.partialorder %v2374, 8.507059e+37
    %v2376 = vand.u32 %v2364, 2147483648
    %v2377 = vor.u32 1.1754944e-38, %v2376
    %v2378 = vsel %vm2375, %v2377, %v2373
    %v2379 = vmul.f32 1.0, %v2378
    %v2380 = vmul.f32 %v2359, %v1997
    %v2381 = vmul.f32 %v2340, %v2360
    %v2382 = vadd.f32 %v2380, %v2381
    %v2383 = vtanh.pop %v2382
    %v2384 = vmul.f32 %v2379, %v2383
    %2385 = vmatpush.msra.mxu0 %v202
    %2386 = vmatpush.msra.mxu0 %v198
    %2387 = vmatpush.msra.mxu0 %v194
    %2388 = vmatpush.msra.mxu0 %v190
    %2389 = vmatpush.msra.mxu0 %v186
    %2390 = vmatpush.msra.mxu0 %v182
    %2391 = vmatpush.msra.mxu0 %v178
    %2392 = vmatpush.msra.mxu0 %v174
    %2393 = vmatpush.msra.mxu0 %v170
    %2394 = vmatpush.msra.mxu0 %v166
    %2395 = vmatpush.msra.mxu0 %v162
    %2396 = vmatpush.msra.mxu0 %v158
    %2397 = vmatpush.msra.mxu0 %v154
    %2398 = vmatpush.msra.mxu0 %v150
    %2399 = vmatpush.msra.mxu0 %v146
    %2400 = vmatpush.msra.mxu0 %v142
    %2401 = vmatmul.f32.gmra.mxu0 %v2384
    %v2402 = vpop.f32.mrf.mxu0
    %v2403 = vadd.f32 %v282, %v2402
    %2404 = vdwg.mxu0
    %2405 = vmatpush.msra.mxu0 %v266
    %2406 = vmatpush.msra.mxu0 %v262
    %2407 = vmatpush.msra.mxu0 %v258
    %2408 = vmatpush.msra.mxu0 %v254
    %2409 = vmatpush.msra.mxu0 %v250
    %2410 = vmatpush.msra.mxu0 %v246
    %2411 = vmatpush.msra.mxu0 %v242
    %2412 = vmatpush.msra.mxu0 %v238
    %2413 = vmatpush.msra.mxu0 %v234
    %2414 = vmatpush.msra.mxu0 %v230
    %2415 = vmatpush.msra.mxu0 %v226
    %2416 = vmatpush.msra.mxu0 %v222
    %2417 = vmatpush.msra.mxu0 %v218
    %2418 = vmatpush.msra.mxu0 %v214
    %2419 = vmatpush.msra.mxu0 %v210
    %2420 = vmatpush.msra.mxu0 %v206
    %2421 = vmatmul.f32.gmra.mxu0 %v2222
    %v2422 = vpop.f32.mrf.mxu0
    %v2423 = vadd.f32 %v2403, %v2422
    %2424 = vdwg.mxu0
    %2425 = vmatpush.msra.mxu0 %v203
    %2426 = vmatpush.msra.mxu0 %v199
    %2427 = vmatpush.msra.mxu0 %v195
    %2428 = vmatpush.msra.mxu0 %v191
    %2429 = vmatpush.msra.mxu0 %v187
    %2430 = vmatpush.msra.mxu0 %v183
    %2431 = vmatpush.msra.mxu0 %v179
    %2432 = vmatpush.msra.mxu0 %v175
    %2433 = vmatpush.msra.mxu0 %v171
    %2434 = vmatpush.msra.mxu0 %v167
    %2435 = vmatpush.msra.mxu0 %v163
    %2436 = vmatpush.msra.mxu0 %v159
    %2437 = vmatpush.msra.mxu0 %v155
    %2438 = vmatpush.msra.mxu0 %v151
    %2439 = vmatpush.msra.mxu0 %v147
    %2440 = vmatpush.msra.mxu0 %v143
    %2441 = vmatmul.f32.gmra.mxu0 %v2384
    %v2442 = vpop.f32.mrf.mxu0
    %v2443 = vadd.f32 %v283, %v2442
    %2444 = vdwg.mxu0
    %2445 = vmatpush.msra.mxu0 %v267
    %2446 = vmatpush.msra.mxu0 %v263
    %2447 = vmatpush.msra.mxu0 %v259
    %2448 = vmatpush.msra.mxu0 %v255
    %2449 = vmatpush.msra.mxu0 %v251
    %2450 = vmatpush.msra.mxu0 %v247
    %2451 = vmatpush.msra.mxu0 %v243
    %2452 = vmatpush.msra.mxu0 %v239
    %2453 = vmatpush.msra.mxu0 %v235
    %2454 = vmatpush.msra.mxu0 %v231
    %2455 = vmatpush.msra.mxu0 %v227
    %2456 = vmatpush.msra.mxu0 %v223
    %2457 = vmatpush.msra.mxu0 %v219
    %2458 = vmatpush.msra.mxu0 %v215
    %2459 = vmatpush.msra.mxu0 %v211
    %2460 = vmatpush.msra.mxu0 %v207
    %2461 = vmatmul.f32.gmra.mxu0 %v2222
    %v2462 = vpop.f32.mrf.mxu0
    %v2463 = vadd.f32 %v2443, %v2462
    %2464 = vdwg.mxu0
    %2465 = vmatpush.msra.mxu0 %v204
    %2466 = vmatpush.msra.mxu0 %v200
    %2467 = vmatpush.msra.mxu0 %v196
    %2468 = vmatpush.msra.mxu0 %v192
    %2469 = vmatpush.msra.mxu0 %v188
    %2470 = vmatpush.msra.mxu0 %v184
    %2471 = vmatpush.msra.mxu0 %v180
    %2472 = vmatpush.msra.mxu0 %v176
    %2473 = vmatpush.msra.mxu0 %v172
    %2474 = vmatpush.msra.mxu0 %v168
    %2475 = vmatpush.msra.mxu0 %v164
    %2476 = vmatpush.msra.mxu0 %v160
    %2477 = vmatpush.msra.mxu0 %v156
    %2478 = vmatpush.msra.mxu0 %v152
    %2479 = vmatpush.msra.mxu0 %v148
    %2480 = vmatpush.msra.mxu0 %v144
    %2481 = vmatmul.f32.gmra.mxu0 %v2384
    %v2482 = vpop.f32.mrf.mxu0
    %v2483 = vadd.f32 %v284, %v2482
    %2484 = vdwg.mxu0
    %2485 = vmatpush.msra.mxu0 %v268
    %2486 = vmatpush.msra.mxu0 %v264
    %2487 = vmatpush.msra.mxu0 %v260
    %2488 = vmatpush.msra.mxu0 %v256
    %2489 = vmatpush.msra.mxu0 %v252
    %2490 = vmatpush.msra.mxu0 %v248
    %2491 = vmatpush.msra.mxu0 %v244
    %2492 = vmatpush.msra.mxu0 %v240
    %2493 = vmatpush.msra.mxu0 %v236
    %2494 = vmatpush.msra.mxu0 %v232
    %2495 = vmatpush.msra.mxu0 %v228
    %2496 = vmatpush.msra.mxu0 %v224
    %2497 = vmatpush.msra.mxu0 %v220
    %2498 = vmatpush.msra.mxu0 %v216
    %2499 = vmatpush.msra.mxu0 %v212
    %2500 = vmatpush.msra.mxu0 %v208
    %2501 = vmatmul.f32.gmra.mxu0 %v2222
    %v2502 = vpop.f32.mrf.mxu0
    %v2503 = vadd.f32 %v2483, %v2502
    %2504 = vdwg.mxu0
    %2505 = vmatpush.msra.mxu0 %v205
    %2506 = vmatpush.msra.mxu0 %v201
    %2507 = vmatpush.msra.mxu0 %v197
    %2508 = vmatpush.msra.mxu0 %v193
    %2509 = vmatpush.msra.mxu0 %v189
    %2510 = vmatpush.msra.mxu0 %v185
    %2511 = vmatpush.msra.mxu0 %v181
    %2512 = vmatpush.msra.mxu0 %v177
    %2513 = vmatpush.msra.mxu0 %v173
    %2514 = vmatpush.msra.mxu0 %v169
    %2515 = vmatpush.msra.mxu0 %v165
    %2516 = vmatpush.msra.mxu0 %v161
    %2517 = vmatpush.msra.mxu0 %v157
    %2518 = vmatpush.msra.mxu0 %v153
    %2519 = vmatpush.msra.mxu0 %v149
    %2520 = vmatpush.msra.mxu0 %v145
    %2521 = vmatmul.f32.gmra.mxu0 %v2384
    %v2522 = vpop.f32.mrf.mxu0
    %v2523 = vadd.f32 %v285, %v2522
    %2524 = vdwg.mxu0
    %2525 = vmatpush.msra.mxu0 %v269
    %2526 = vmatpush.msra.mxu0 %v265
    %2527 = vmatpush.msra.mxu0 %v261
    %2528 = vmatpush.msra.mxu0 %v257
    %2529 = vmatpush.msra.mxu0 %v253
    %2530 = vmatpush.msra.mxu0 %v249
    %2531 = vmatpush.msra.mxu0 %v245
    %2532 = vmatpush.msra.mxu0 %v241
    %2533 = vmatpush.msra.mxu0 %v237
    %2534 = vmatpush.msra.mxu0 %v233
    %2535 = vmatpush.msra.mxu0 %v229
    %2536 = vmatpush.msra.mxu0 %v225
    %2537 = vmatpush.msra.mxu0 %v221
    %2538 = vmatpush.msra.mxu0 %v217
    %2539 = vmatpush.msra.mxu0 %v213
    %2540 = vmatpush.msra.mxu0 %v209
    %2541 = vmatmul.f32.gmra.mxu0 %v2222
    %v2542 = vpop.f32.mrf.mxu0
    %v2543 = vadd.f32 %v2523, %v2542
    %2544 = vdwg.mxu0
    %v2545 = vxor.u32 %v2423, 2147483648
    %v2546 = vmul.f32 %v2545, 1.442695
    %v2547 = vpow.pop %v2546
    %v2548 = vadd.f32 %v2547, 1.0
    %v2549 = vrcp.pop %v2548
    %v2550 = vmul.f32 %v2548, %v2549
    %v2551 = vsub.f32 1.0, %v2550
    %v2552 = vmul.f32 %v2549, %v2551
    %v2553 = vadd.f32 %v2549, %v2552
    %vm2554 = vweird.f32 %v2548
    %vm2555 = vweird.f32 %v2549
    %vm2556 = vmor %vm2554, %vm2555
    %v2557 = vsel %vm2556, %v2549, %v2553
    %v2558 = vand.u32 2147483647, %v2548
    %vm2559 = vcmp.eq.f32.partialorder %v2558, 8.507059e+37
    %v2560 = vand.u32 %v2548, 2147483648
    %v2561 = vor.u32 1.1754944e-38, %v2560
    %v2562 = vsel %vm2559, %v2561, %v2557
    %v2563 = vmul.f32 1.0, %v2562
    %v2564 = vxor.u32 %v2463, 2147483648
    %v2565 = vmul.f32 %v2564, 1.442695
    %v2566 = vpow.pop %v2565
    %v2567 = vadd.f32 %v2566, 1.0
    %v2568 = vrcp.pop %v2567
    %v2569 = vmul.f32 %v2567, %v2568
    %v2570 = vsub.f32 1.0, %v2569
    %v2571 = vmul.f32 %v2568, %v2570
    %v2572 = vadd.f32 %v2568, %v2571
    %vm2573 = vweird.f32 %v2567
    %vm2574 = vweird.f32 %v2568
    %vm2575 = vmor %vm2573, %vm2574
    %v2576 = vsel %vm2575, %v2568, %v2572
    %v2577 = vand.u32 2147483647, %v2567
    %vm2578 = vcmp.eq.f32.partialorder %v2577, 8.507059e+37
    %v2579 = vand.u32 %v2567, 2147483648
    %v2580 = vor.u32 1.1754944e-38, %v2579
    %v2581 = vsel %vm2578, %v2580, %v2576
    %v2582 = vmul.f32 1.0, %v2581
    %v2583 = vtanh.pop %v2503
    %v2584 = vxor.u32 %v2543, 2147483648
    %v2585 = vmul.f32 %v2584, 1.442695
    %v2586 = vpow.pop %v2585
    %v2587 = vadd.f32 %v2586, 1.0
    %v2588 = vrcp.pop %v2587
    %v2589 = vmul.f32 %v2587, %v2588
    %v2590 = vsub.f32 1.0, %v2589
    %v2591 = vmul.f32 %v2588, %v2590
    %v2592 = vadd.f32 %v2588, %v2591
    %vm2593 = vweird.f32 %v2587
    %vm2594 = vweird.f32 %v2588
    %vm2595 = vmor %vm2593, %vm2594
    %v2596 = vsel %vm2595, %v2588, %v2592
    %v2597 = vand.u32 2147483647, %v2587
    %vm2598 = vcmp.eq.f32.partialorder %v2597, 8.507059e+37
    %v2599 = vand.u32 %v2587, 2147483648
    %v2600 = vor.u32 1.1754944e-38, %v2599
    %v2601 = vsel %vm2598, %v2600, %v2596
    %v2602 = vmul.f32 1.0, %v2601
    %v2603 = vmul.f32 %v2582, %v2220
    %v2604 = vmul.f32 %v2563, %v2583
    %v2605 = vadd.f32 %v2603, %v2604
    %v2606 = vtanh.pop %v2605
    %v2607 = vmul.f32 %v2602, %v2606
    %s2608 = scalar_lea.vmem %s0, 48
    %v2609 = vld [vmem:[%s2608] sm:$0xff]
    %2611 = vset.pattern.permute.xlu0 0
    %2612 = vperm.xlu0 %2611, %v2609
    %v2613 = vpop.permute.xlu0 %2612
    %v2615 = vmul.f32 %v2613, %v297
    %v2616 = vmul.f32 %v2613, %v298
    %v2617 = vmul.f32 %v2613, %v299
    %v2618 = vmul.f32 %v2613, %v300
    %2619 = vmatpush.msra.mxu0 %v138
    %2620 = vmatpush.msra.mxu0 %v134
    %2621 = vmatpush.msra.mxu0 %v130
    %2622 = vmatpush.msra.mxu0 %v126
    %2623 = vmatpush.msra.mxu0 %v122
    %2624 = vmatpush.msra.mxu0 %v118
    %2625 = vmatpush.msra.mxu0 %v114
    %2626 = vmatpush.msra.mxu0 %v110
    %2627 = vmatpush.msra.mxu0 %v106
    %2628 = vmatpush.msra.mxu0 %v102
    %2629 = vmatpush.msra.mxu0 %v98
    %2630 = vmatpush.msra.mxu0 %v94
    %2631 = vmatpush.msra.mxu0 %v90
    %2632 = vmatpush.msra.mxu0 %v86
    %2633 = vmatpush.msra.mxu0 %v82
    %2634 = vmatpush.msra.mxu0 %v78
    %2635 = vmatmul.f32.gmra.mxu0 %v2384
    %v2636 = vpop.f32.mrf.mxu0
    %v2637 = vadd.f32 0.0, %v2636
    %2638 = vdwg.mxu0
    %2639 = vmatpush.msra.mxu0 %v139
    %2640 = vmatpush.msra.mxu0 %v135
    %2641 = vmatpush.msra.mxu0 %v131
    %2642 = vmatpush.msra.mxu0 %v127
    %2643 = vmatpush.msra.mxu0 %v123
    %2644 = vmatpush.msra.mxu0 %v119
    %2645 = vmatpush.msra.mxu0 %v115
    %2646 = vmatpush.msra.mxu0 %v111
    %2647 = vmatpush.msra.mxu0 %v107
    %2648 = vmatpush.msra.mxu0 %v103
    %2649 = vmatpush.msra.mxu0 %v99
    %2650 = vmatpush.msra.mxu0 %v95
    %2651 = vmatpush.msra.mxu0 %v91
    %2652 = vmatpush.msra.mxu0 %v87
    %2653 = vmatpush.msra.mxu0 %v83
    %2654 = vmatpush.msra.mxu0 %v79
    %2655 = vmatmul.f32.gmra.mxu0 %v2384
    %v2656 = vpop.f32.mrf.mxu0
    %v2657 = vadd.f32 0.0, %v2656
    %2658 = vdwg.mxu0
    %2659 = vmatpush.msra.mxu0 %v140
    %2660 = vmatpush.msra.mxu0 %v136
    %2661 = vmatpush.msra.mxu0 %v132
    %2662 = vmatpush.msra.mxu0 %v128
    %2663 = vmatpush.msra.mxu0 %v124
    %2664 = vmatpush.msra.mxu0 %v120
    %2665 = vmatpush.msra.mxu0 %v116
    %2666 = vmatpush.msra.mxu0 %v112
    %2667 = vmatpush.msra.mxu0 %v108
    %2668 = vmatpush.msra.mxu0 %v104
    %2669 = vmatpush.msra.mxu0 %v100
    %2670 = vmatpush.msra.mxu0 %v96
    %2671 = vmatpush.msra.mxu0 %v92
    %2672 = vmatpush.msra.mxu0 %v88
    %2673 = vmatpush.msra.mxu0 %v84
    %2674 = vmatpush.msra.mxu0 %v80
    %2675 = vmatmul.f32.gmra.mxu0 %v2384
    %v2676 = vpop.f32.mrf.mxu0
    %v2677 = vadd.f32 0.0, %v2676
    %2678 = vdwg.mxu0
    %2679 = vmatpush.msra.mxu0 %v141
    %2680 = vmatpush.msra.mxu0 %v137
    %2681 = vmatpush.msra.mxu0 %v133
    %2682 = vmatpush.msra.mxu0 %v129
    %2683 = vmatpush.msra.mxu0 %v125
    %2684 = vmatpush.msra.mxu0 %v121
    %2685 = vmatpush.msra.mxu0 %v117
    %2686 = vmatpush.msra.mxu0 %v113
    %2687 = vmatpush.msra.mxu0 %v109
    %2688 = vmatpush.msra.mxu0 %v105
    %2689 = vmatpush.msra.mxu0 %v101
    %2690 = vmatpush.msra.mxu0 %v97
    %2691 = vmatpush.msra.mxu0 %v93
    %2692 = vmatpush.msra.mxu0 %v89
    %2693 = vmatpush.msra.mxu0 %v85
    %2694 = vmatpush.msra.mxu0 %v81
    %2695 = vmatmul.f32.gmra.mxu0 %v2384
    %v2696 = vpop.f32.mrf.mxu0
    %v2697 = vadd.f32 0.0, %v2696
    %2698 = vdwg.mxu0
    %v2699 = vadd.f32 %v2615, %v2637
    %v2700 = vadd.f32 %v2616, %v2657
    %v2701 = vadd.f32 %v2617, %v2677
    %v2702 = vadd.f32 %v2618, %v2697
    %v2703 = vadd.f32 %v2699, %v272
    %v2704 = vadd.f32 %v2700, %v273
    %v2705 = vadd.f32 %v2701, %v274
    %v2706 = vadd.f32 %v2702, %v275
    %v2707 = vxor.u32 %v2703, 2147483648
    %v2708 = vmul.f32 %v2707, 1.442695
    %v2709 = vpow.pop %v2708
    %v2710 = vadd.f32 %v2709, 1.0
    %v2711 = vrcp.pop %v2710
    %v2712 = vmul.f32 %v2710, %v2711
    %v2713 = vsub.f32 1.0, %v2712
    %v2714 = vmul.f32 %v2711, %v2713
    %v2715 = vadd.f32 %v2711, %v2714
    %vm2716 = vweird.f32 %v2710
    %vm2717 = vweird.f32 %v2711
    %vm2718 = vmor %vm2716, %vm2717
    %v2719 = vsel %vm2718, %v2711, %v2715
    %v2720 = vand.u32 2147483647, %v2710
    %vm2721 = vcmp.eq.f32.partialorder %v2720, 8.507059e+37
    %v2722 = vand.u32 %v2710, 2147483648
    %v2723 = vor.u32 1.1754944e-38, %v2722
    %v2724 = vsel %vm2721, %v2723, %v2719
    %v2725 = vmul.f32 1.0, %v2724
    %v2726 = vxor.u32 %v2704, 2147483648
    %v2727 = vmul.f32 %v2726, 1.442695
    %v2728 = vpow.pop %v2727
    %v2729 = vadd.f32 %v2728, 1.0
    %v2730 = vrcp.pop %v2729
    %v2731 = vmul.f32 %v2729, %v2730
    %v2732 = vsub.f32 1.0, %v2731
    %v2733 = vmul.f32 %v2730, %v2732
    %v2734 = vadd.f32 %v2730, %v2733
    %vm2735 = vweird.f32 %v2729
    %vm2736 = vweird.f32 %v2730
    %vm2737 = vmor %vm2735, %vm2736
    %v2738 = vsel %vm2737, %v2730, %v2734
    %v2739 = vand.u32 2147483647, %v2729
    %vm2740 = vcmp.eq.f32.partialorder %v2739, 8.507059e+37
    %v2741 = vand.u32 %v2729, 2147483648
    %v2742 = vor.u32 1.1754944e-38, %v2741
    %v2743 = vsel %vm2740, %v2742, %v2738
    %v2744 = vmul.f32 1.0, %v2743
    %v2745 = vtanh.pop %v2705
    %v2746 = vxor.u32 %v2706, 2147483648
    %v2747 = vmul.f32 %v2746, 1.442695
    %v2748 = vpow.pop %v2747
    %v2749 = vadd.f32 %v2748, 1.0
    %v2750 = vrcp.pop %v2749
    %v2751 = vmul.f32 %v2749, %v2750
    %v2752 = vsub.f32 1.0, %v2751
    %v2753 = vmul.f32 %v2750, %v2752
    %v2754 = vadd.f32 %v2750, %v2753
    %vm2755 = vweird.f32 %v2749
    %vm2756 = vweird.f32 %v2750
    %vm2757 = vmor %vm2755, %vm2756
    %v2758 = vsel %vm2757, %v2750, %v2754
    %v2759 = vand.u32 2147483647, %v2749
    %vm2760 = vcmp.eq.f32.partialorder %v2759, 8.507059e+37
    %v2761 = vand.u32 %v2749, 2147483648
    %v2762 = vor.u32 1.1754944e-38, %v2761
    %v2763 = vsel %vm2760, %v2762, %v2758
    %v2764 = vmul.f32 1.0, %v2763
    %v2765 = vmul.f32 %v2744, %v2382
    %v2766 = vmul.f32 %v2725, %v2745
    %v2767 = vadd.f32 %v2765, %v2766
    %v2768 = vtanh.pop %v2767
    %v2769 = vmul.f32 %v2764, %v2768
    %2770 = vmatpush.msra.mxu0 %v202
    %2771 = vmatpush.msra.mxu0 %v198
    %2772 = vmatpush.msra.mxu0 %v194
    %2773 = vmatpush.msra.mxu0 %v190
    %2774 = vmatpush.msra.mxu0 %v186
    %2775 = vmatpush.msra.mxu0 %v182
    %2776 = vmatpush.msra.mxu0 %v178
    %2777 = vmatpush.msra.mxu0 %v174
    %2778 = vmatpush.msra.mxu0 %v170
    %2779 = vmatpush.msra.mxu0 %v166
    %2780 = vmatpush.msra.mxu0 %v162
    %2781 = vmatpush.msra.mxu0 %v158
    %2782 = vmatpush.msra.mxu0 %v154
    %2783 = vmatpush.msra.mxu0 %v150
    %2784 = vmatpush.msra.mxu0 %v146
    %2785 = vmatpush.msra.mxu0 %v142
    %2786 = vmatmul.f32.gmra.mxu0 %v2769
    %v2787 = vpop.f32.mrf.mxu0
    %v2788 = vadd.f32 %v282, %v2787
    %2789 = vdwg.mxu0
    %2790 = vmatpush.msra.mxu0 %v266
    %2791 = vmatpush.msra.mxu0 %v262
    %2792 = vmatpush.msra.mxu0 %v258
    %2793 = vmatpush.msra.mxu0 %v254
    %2794 = vmatpush.msra.mxu0 %v250
    %2795 = vmatpush.msra.mxu0 %v246
    %2796 = vmatpush.msra.mxu0 %v242
    %2797 = vmatpush.msra.mxu0 %v238
    %2798 = vmatpush.msra.mxu0 %v234
    %2799 = vmatpush.msra.mxu0 %v230
    %2800 = vmatpush.msra.mxu0 %v226
    %2801 = vmatpush.msra.mxu0 %v222
    %2802 = vmatpush.msra.mxu0 %v218
    %2803 = vmatpush.msra.mxu0 %v214
    %2804 = vmatpush.msra.mxu0 %v210
    %2805 = vmatpush.msra.mxu0 %v206
    %2806 = vmatmul.f32.gmra.mxu0 %v2607
    %v2807 = vpop.f32.mrf.mxu0
    %v2808 = vadd.f32 %v2788, %v2807
    %2809 = vdwg.mxu0
    %2810 = vmatpush.msra.mxu0 %v203
    %2811 = vmatpush.msra.mxu0 %v199
    %2812 = vmatpush.msra.mxu0 %v195
    %2813 = vmatpush.msra.mxu0 %v191
    %2814 = vmatpush.msra.mxu0 %v187
    %2815 = vmatpush.msra.mxu0 %v183
    %2816 = vmatpush.msra.mxu0 %v179
    %2817 = vmatpush.msra.mxu0 %v175
    %2818 = vmatpush.msra.mxu0 %v171
    %2819 = vmatpush.msra.mxu0 %v167
    %2820 = vmatpush.msra.mxu0 %v163
    %2821 = vmatpush.msra.mxu0 %v159
    %2822 = vmatpush.msra.mxu0 %v155
    %2823 = vmatpush.msra.mxu0 %v151
    %2824 = vmatpush.msra.mxu0 %v147
    %2825 = vmatpush.msra.mxu0 %v143
    %2826 = vmatmul.f32.gmra.mxu0 %v2769
    %v2827 = vpop.f32.mrf.mxu0
    %v2828 = vadd.f32 %v283, %v2827
    %2829 = vdwg.mxu0
    %2830 = vmatpush.msra.mxu0 %v267
    %2831 = vmatpush.msra.mxu0 %v263
    %2832 = vmatpush.msra.mxu0 %v259
    %2833 = vmatpush.msra.mxu0 %v255
    %2834 = vmatpush.msra.mxu0 %v251
    %2835 = vmatpush.msra.mxu0 %v247
    %2836 = vmatpush.msra.mxu0 %v243
    %2837 = vmatpush.msra.mxu0 %v239
    %2838 = vmatpush.msra.mxu0 %v235
    %2839 = vmatpush.msra.mxu0 %v231
    %2840 = vmatpush.msra.mxu0 %v227
    %2841 = vmatpush.msra.mxu0 %v223
    %2842 = vmatpush.msra.mxu0 %v219
    %2843 = vmatpush.msra.mxu0 %v215
    %2844 = vmatpush.msra.mxu0 %v211
    %2845 = vmatpush.msra.mxu0 %v207
    %2846 = vmatmul.f32.gmra.mxu0 %v2607
    %v2847 = vpop.f32.mrf.mxu0
    %v2848 = vadd.f32 %v2828, %v2847
    %2849 = vdwg.mxu0
    %2850 = vmatpush.msra.mxu0 %v204
    %2851 = vmatpush.msra.mxu0 %v200
    %2852 = vmatpush.msra.mxu0 %v196
    %2853 = vmatpush.msra.mxu0 %v192
    %2854 = vmatpush.msra.mxu0 %v188
    %2855 = vmatpush.msra.mxu0 %v184
    %2856 = vmatpush.msra.mxu0 %v180
    %2857 = vmatpush.msra.mxu0 %v176
    %2858 = vmatpush.msra.mxu0 %v172
    %2859 = vmatpush.msra.mxu0 %v168
    %2860 = vmatpush.msra.mxu0 %v164
    %2861 = vmatpush.msra.mxu0 %v160
    %2862 = vmatpush.msra.mxu0 %v156
    %2863 = vmatpush.msra.mxu0 %v152
    %2864 = vmatpush.msra.mxu0 %v148
    %2865 = vmatpush.msra.mxu0 %v144
    %2866 = vmatmul.f32.gmra.mxu0 %v2769
    %v2867 = vpop.f32.mrf.mxu0
    %v2868 = vadd.f32 %v284, %v2867
    %2869 = vdwg.mxu0
    %2870 = vmatpush.msra.mxu0 %v268
    %2871 = vmatpush.msra.mxu0 %v264
    %2872 = vmatpush.msra.mxu0 %v260
    %2873 = vmatpush.msra.mxu0 %v256
    %2874 = vmatpush.msra.mxu0 %v252
    %2875 = vmatpush.msra.mxu0 %v248
    %2876 = vmatpush.msra.mxu0 %v244
    %2877 = vmatpush.msra.mxu0 %v240
    %2878 = vmatpush.msra.mxu0 %v236
    %2879 = vmatpush.msra.mxu0 %v232
    %2880 = vmatpush.msra.mxu0 %v228
    %2881 = vmatpush.msra.mxu0 %v224
    %2882 = vmatpush.msra.mxu0 %v220
    %2883 = vmatpush.msra.mxu0 %v216
    %2884 = vmatpush.msra.mxu0 %v212
    %2885 = vmatpush.msra.mxu0 %v208
    %2886 = vmatmul.f32.gmra.mxu0 %v2607
    %v2887 = vpop.f32.mrf.mxu0
    %v2888 = vadd.f32 %v2868, %v2887
    %2889 = vdwg.mxu0
    %2890 = vmatpush.msra.mxu0 %v205
    %2891 = vmatpush.msra.mxu0 %v201
    %2892 = vmatpush.msra.mxu0 %v197
    %2893 = vmatpush.msra.mxu0 %v193
    %2894 = vmatpush.msra.mxu0 %v189
    %2895 = vmatpush.msra.mxu0 %v185
    %2896 = vmatpush.msra.mxu0 %v181
    %2897 = vmatpush.msra.mxu0 %v177
    %2898 = vmatpush.msra.mxu0 %v173
    %2899 = vmatpush.msra.mxu0 %v169
    %2900 = vmatpush.msra.mxu0 %v165
    %2901 = vmatpush.msra.mxu0 %v161
    %2902 = vmatpush.msra.mxu0 %v157
    %2903 = vmatpush.msra.mxu0 %v153
    %2904 = vmatpush.msra.mxu0 %v149
    %2905 = vmatpush.msra.mxu0 %v145
    %2906 = vmatmul.f32.gmra.mxu0 %v2769
    %v2907 = vpop.f32.mrf.mxu0
    %v2908 = vadd.f32 %v285, %v2907
    %2909 = vdwg.mxu0
    %2910 = vmatpush.msra.mxu0 %v269
    %2911 = vmatpush.msra.mxu0 %v265
    %2912 = vmatpush.msra.mxu0 %v261
    %2913 = vmatpush.msra.mxu0 %v257
    %2914 = vmatpush.msra.mxu0 %v253
    %2915 = vmatpush.msra.mxu0 %v249
    %2916 = vmatpush.msra.mxu0 %v245
    %2917 = vmatpush.msra.mxu0 %v241
    %2918 = vmatpush.msra.mxu0 %v237
    %2919 = vmatpush.msra.mxu0 %v233
    %2920 = vmatpush.msra.mxu0 %v229
    %2921 = vmatpush.msra.mxu0 %v225
    %2922 = vmatpush.msra.mxu0 %v221
    %2923 = vmatpush.msra.mxu0 %v217
    %2924 = vmatpush.msra.mxu0 %v213
    %2925 = vmatpush.msra.mxu0 %v209
    %2926 = vmatmul.f32.gmra.mxu0 %v2607
    %v2927 = vpop.f32.mrf.mxu0
    %v2928 = vadd.f32 %v2908, %v2927
    %2929 = vdwg.mxu0
    %v2930 = vxor.u32 %v2808, 2147483648
    %v2931 = vmul.f32 %v2930, 1.442695
    %v2932 = vpow.pop %v2931
    %v2933 = vadd.f32 %v2932, 1.0
    %v2934 = vrcp.pop %v2933
    %v2935 = vmul.f32 %v2933, %v2934
    %v2936 = vsub.f32 1.0, %v2935
    %v2937 = vmul.f32 %v2934, %v2936
    %v2938 = vadd.f32 %v2934, %v2937
    %vm2939 = vweird.f32 %v2933
    %vm2940 = vweird.f32 %v2934
    %vm2941 = vmor %vm2939, %vm2940
    %v2942 = vsel %vm2941, %v2934, %v2938
    %v2943 = vand.u32 2147483647, %v2933
    %vm2944 = vcmp.eq.f32.partialorder %v2943, 8.507059e+37
    %v2945 = vand.u32 %v2933, 2147483648
    %v2946 = vor.u32 1.1754944e-38, %v2945
    %v2947 = vsel %vm2944, %v2946, %v2942
    %v2948 = vmul.f32 1.0, %v2947
    %v2949 = vxor.u32 %v2848, 2147483648
    %v2950 = vmul.f32 %v2949, 1.442695
    %v2951 = vpow.pop %v2950
    %v2952 = vadd.f32 %v2951, 1.0
    %v2953 = vrcp.pop %v2952
    %v2954 = vmul.f32 %v2952, %v2953
    %v2955 = vsub.f32 1.0, %v2954
    %v2956 = vmul.f32 %v2953, %v2955
    %v2957 = vadd.f32 %v2953, %v2956
    %vm2958 = vweird.f32 %v2952
    %vm2959 = vweird.f32 %v2953
    %vm2960 = vmor %vm2958, %vm2959
    %v2961 = vsel %vm2960, %v2953, %v2957
    %v2962 = vand.u32 2147483647, %v2952
    %vm2963 = vcmp.eq.f32.partialorder %v2962, 8.507059e+37
    %v2964 = vand.u32 %v2952, 2147483648
    %v2965 = vor.u32 1.1754944e-38, %v2964
    %v2966 = vsel %vm2963, %v2965, %v2961
    %v2967 = vmul.f32 1.0, %v2966
    %v2968 = vtanh.pop %v2888
    %v2969 = vxor.u32 %v2928, 2147483648
    %v2970 = vmul.f32 %v2969, 1.442695
    %v2971 = vpow.pop %v2970
    %v2972 = vadd.f32 %v2971, 1.0
    %v2973 = vrcp.pop %v2972
    %v2974 = vmul.f32 %v2972, %v2973
    %v2975 = vsub.f32 1.0, %v2974
    %v2976 = vmul.f32 %v2973, %v2975
    %v2977 = vadd.f32 %v2973, %v2976
    %vm2978 = vweird.f32 %v2972
    %vm2979 = vweird.f32 %v2973
    %vm2980 = vmor %vm2978, %vm2979
    %v2981 = vsel %vm2980, %v2973, %v2977
    %v2982 = vand.u32 2147483647, %v2972
    %vm2983 = vcmp.eq.f32.partialorder %v2982, 8.507059e+37
    %v2984 = vand.u32 %v2972, 2147483648
    %v2985 = vor.u32 1.1754944e-38, %v2984
    %v2986 = vsel %vm2983, %v2985, %v2981
    %v2987 = vmul.f32 1.0, %v2986
    %v2988 = vmul.f32 %v2967, %v2605
    %v2989 = vmul.f32 %v2948, %v2968
    %v2990 = vadd.f32 %v2988, %v2989
    %v2991 = vtanh.pop %v2990
    %v2992 = vmul.f32 %v2987, %v2991
    %s2993 = scalar_lea.vmem %s0, 56
    %v2994 = vld [vmem:[%s2993] sm:$0xff]
    %2996 = vset.pattern.permute.xlu0 0
    %2997 = vperm.xlu0 %2996, %v2994
    %v2998 = vpop.permute.xlu0 %2997
    %v3000 = vmul.f32 %v2998, %v297
    %v3001 = vmul.f32 %v2998, %v298
    %v3002 = vmul.f32 %v2998, %v299
    %v3003 = vmul.f32 %v2998, %v300
    %3004 = vmatpush.msra.mxu0 %v138
    %3005 = vmatpush.msra.mxu0 %v134
    %3006 = vmatpush.msra.mxu0 %v130
    %3007 = vmatpush.msra.mxu0 %v126
    %3008 = vmatpush.msra.mxu0 %v122
    %3009 = vmatpush.msra.mxu0 %v118
    %3010 = vmatpush.msra.mxu0 %v114
    %3011 = vmatpush.msra.mxu0 %v110
    %3012 = vmatpush.msra.mxu0 %v106
    %3013 = vmatpush.msra.mxu0 %v102
    %3014 = vmatpush.msra.mxu0 %v98
    %3015 = vmatpush.msra.mxu0 %v94
    %3016 = vmatpush.msra.mxu0 %v90
    %3017 = vmatpush.msra.mxu0 %v86
    %3018 = vmatpush.msra.mxu0 %v82
    %3019 = vmatpush.msra.mxu0 %v78
    %3020 = vmatmul.f32.gmra.mxu0 %v2769
    %v3021 = vpop.f32.mrf.mxu0
    %v3022 = vadd.f32 0.0, %v3021
    %3023 = vdwg.mxu0
    %3024 = vmatpush.msra.mxu0 %v139
    %3025 = vmatpush.msra.mxu0 %v135
    %3026 = vmatpush.msra.mxu0 %v131
    %3027 = vmatpush.msra.mxu0 %v127
    %3028 = vmatpush.msra.mxu0 %v123
    %3029 = vmatpush.msra.mxu0 %v119
    %3030 = vmatpush.msra.mxu0 %v115
    %3031 = vmatpush.msra.mxu0 %v111
    %3032 = vmatpush.msra.mxu0 %v107
    %3033 = vmatpush.msra.mxu0 %v103
    %3034 = vmatpush.msra.mxu0 %v99
    %3035 = vmatpush.msra.mxu0 %v95
    %3036 = vmatpush.msra.mxu0 %v91
    %3037 = vmatpush.msra.mxu0 %v87
    %3038 = vmatpush.msra.mxu0 %v83
    %3039 = vmatpush.msra.mxu0 %v79
    %3040 = vmatmul.f32.gmra.mxu0 %v2769
    %v3041 = vpop.f32.mrf.mxu0
    %v3042 = vadd.f32 0.0, %v3041
    %3043 = vdwg.mxu0
    %3044 = vmatpush.msra.mxu0 %v140
    %3045 = vmatpush.msra.mxu0 %v136
    %3046 = vmatpush.msra.mxu0 %v132
    %3047 = vmatpush.msra.mxu0 %v128
    %3048 = vmatpush.msra.mxu0 %v124
    %3049 = vmatpush.msra.mxu0 %v120
    %3050 = vmatpush.msra.mxu0 %v116
    %3051 = vmatpush.msra.mxu0 %v112
    %3052 = vmatpush.msra.mxu0 %v108
    %3053 = vmatpush.msra.mxu0 %v104
    %3054 = vmatpush.msra.mxu0 %v100
    %3055 = vmatpush.msra.mxu0 %v96
    %3056 = vmatpush.msra.mxu0 %v92
    %3057 = vmatpush.msra.mxu0 %v88
    %3058 = vmatpush.msra.mxu0 %v84
    %3059 = vmatpush.msra.mxu0 %v80
    %3060 = vmatmul.f32.gmra.mxu0 %v2769
    %v3061 = vpop.f32.mrf.mxu0
    %v3062 = vadd.f32 0.0, %v3061
    %3063 = vdwg.mxu0
    %3064 = vmatpush.msra.mxu0 %v141
    %3065 = vmatpush.msra.mxu0 %v137
    %3066 = vmatpush.msra.mxu0 %v133
    %3067 = vmatpush.msra.mxu0 %v129
    %3068 = vmatpush.msra.mxu0 %v125
    %3069 = vmatpush.msra.mxu0 %v121
    %3070 = vmatpush.msra.mxu0 %v117
    %3071 = vmatpush.msra.mxu0 %v113
    %3072 = vmatpush.msra.mxu0 %v109
    %3073 = vmatpush.msra.mxu0 %v105
    %3074 = vmatpush.msra.mxu0 %v101
    %3075 = vmatpush.msra.mxu0 %v97
    %3076 = vmatpush.msra.mxu0 %v93
    %3077 = vmatpush.msra.mxu0 %v89
    %3078 = vmatpush.msra.mxu0 %v85
    %3079 = vmatpush.msra.mxu0 %v81
    %3080 = vmatmul.f32.gmra.mxu0 %v2769
    %v3081 = vpop.f32.mrf.mxu0
    %v3082 = vadd.f32 0.0, %v3081
    %3083 = vdwg.mxu0
    %v3084 = vadd.f32 %v3000, %v3022
    %v3085 = vadd.f32 %v3001, %v3042
    %v3086 = vadd.f32 %v3002, %v3062
    %v3087 = vadd.f32 %v3003, %v3082
    %v3088 = vadd.f32 %v3084, %v272
    %v3089 = vadd.f32 %v3085, %v273
    %v3090 = vadd.f32 %v3086, %v274
    %v3091 = vadd.f32 %v3087, %v275
    %v3092 = vxor.u32 %v3088, 2147483648
    %v3093 = vmul.f32 %v3092, 1.442695
    %v3094 = vpow.pop %v3093
    %v3095 = vadd.f32 %v3094, 1.0
    %v3096 = vrcp.pop %v3095
    %v3097 = vmul.f32 %v3095, %v3096
    %v3098 = vsub.f32 1.0, %v3097
    %v3099 = vmul.f32 %v3096, %v3098
    %v3100 = vadd.f32 %v3096, %v3099
    %vm3101 = vweird.f32 %v3095
    %vm3102 = vweird.f32 %v3096
    %vm3103 = vmor %vm3101, %vm3102
    %v3104 = vsel %vm3103, %v3096, %v3100
    %v3105 = vand.u32 2147483647, %v3095
    %vm3106 = vcmp.eq.f32.partialorder %v3105, 8.507059e+37
    %v3107 = vand.u32 %v3095, 2147483648
    %v3108 = vor.u32 1.1754944e-38, %v3107
    %v3109 = vsel %vm3106, %v3108, %v3104
    %v3110 = vmul.f32 1.0, %v3109
    %v3111 = vxor.u32 %v3089, 2147483648
    %v3112 = vmul.f32 %v3111, 1.442695
    %v3113 = vpow.pop %v3112
    %v3114 = vadd.f32 %v3113, 1.0
    %v3115 = vrcp.pop %v3114
    %v3116 = vmul.f32 %v3114, %v3115
    %v3117 = vsub.f32 1.0, %v3116
    %v3118 = vmul.f32 %v3115, %v3117
    %v3119 = vadd.f32 %v3115, %v3118
    %vm3120 = vweird.f32 %v3114
    %vm3121 = vweird.f32 %v3115
    %vm3122 = vmor %vm3120, %vm3121
    %v3123 = vsel %vm3122, %v3115, %v3119
    %v3124 = vand.u32 2147483647, %v3114
    %vm3125 = vcmp.eq.f32.partialorder %v3124, 8.507059e+37
    %v3126 = vand.u32 %v3114, 2147483648
    %v3127 = vor.u32 1.1754944e-38, %v3126
    %v3128 = vsel %vm3125, %v3127, %v3123
    %v3129 = vmul.f32 1.0, %v3128
    %v3130 = vtanh.pop %v3090
    %v3131 = vxor.u32 %v3091, 2147483648
    %v3132 = vmul.f32 %v3131, 1.442695
    %v3133 = vpow.pop %v3132
    %v3134 = vadd.f32 %v3133, 1.0
    %v3135 = vrcp.pop %v3134
    %v3136 = vmul.f32 %v3134, %v3135
    %v3137 = vsub.f32 1.0, %v3136
    %v3138 = vmul.f32 %v3135, %v3137
    %v3139 = vadd.f32 %v3135, %v3138
    %vm3140 = vweird.f32 %v3134
    %vm3141 = vweird.f32 %v3135
    %vm3142 = vmor %vm3140, %vm3141
    %v3143 = vsel %vm3142, %v3135, %v3139
    %v3144 = vand.u32 2147483647, %v3134
    %vm3145 = vcmp.eq.f32.partialorder %v3144, 8.507059e+37
    %v3146 = vand.u32 %v3134, 2147483648
    %v3147 = vor.u32 1.1754944e-38, %v3146
    %v3148 = vsel %vm3145, %v3147, %v3143
    %v3149 = vmul.f32 1.0, %v3148
    %v3150 = vmul.f32 %v3129, %v2767
    %v3151 = vmul.f32 %v3110, %v3130
    %v3152 = vadd.f32 %v3150, %v3151
    %v3153 = vtanh.pop %v3152
    %v3154 = vmul.f32 %v3149, %v3153
    %3155 = vmatpush.msra.mxu0 %v202
    %3156 = vmatpush.msra.mxu0 %v198
    %3157 = vmatpush.msra.mxu0 %v194
    %3158 = vmatpush.msra.mxu0 %v190
    %3159 = vmatpush.msra.mxu0 %v186
    %3160 = vmatpush.msra.mxu0 %v182
    %3161 = vmatpush.msra.mxu0 %v178
    %3162 = vmatpush.msra.mxu0 %v174
    %3163 = vmatpush.msra.mxu0 %v170
    %3164 = vmatpush.msra.mxu0 %v166
    %3165 = vmatpush.msra.mxu0 %v162
    %3166 = vmatpush.msra.mxu0 %v158
    %3167 = vmatpush.msra.mxu0 %v154
    %3168 = vmatpush.msra.mxu0 %v150
    %3169 = vmatpush.msra.mxu0 %v146
    %3170 = vmatpush.msra.mxu0 %v142
    %3171 = vmatmul.f32.gmra.mxu0 %v3154
    %v3172 = vpop.f32.mrf.mxu0
    %v3173 = vadd.f32 %v282, %v3172
    %3174 = vdwg.mxu0
    %3175 = vmatpush.msra.mxu0 %v266
    %3176 = vmatpush.msra.mxu0 %v262
    %3177 = vmatpush.msra.mxu0 %v258
    %3178 = vmatpush.msra.mxu0 %v254
    %3179 = vmatpush.msra.mxu0 %v250
    %3180 = vmatpush.msra.mxu0 %v246
    %3181 = vmatpush.msra.mxu0 %v242
    %3182 = vmatpush.msra.mxu0 %v238
    %3183 = vmatpush.msra.mxu0 %v234
    %3184 = vmatpush.msra.mxu0 %v230
    %3185 = vmatpush.msra.mxu0 %v226
    %3186 = vmatpush.msra.mxu0 %v222
    %3187 = vmatpush.msra.mxu0 %v218
    %3188 = vmatpush.msra.mxu0 %v214
    %3189 = vmatpush.msra.mxu0 %v210
    %3190 = vmatpush.msra.mxu0 %v206
    %3191 = vmatmul.f32.gmra.mxu0 %v2992
    %v3192 = vpop.f32.mrf.mxu0
    %v3193 = vadd.f32 %v3173, %v3192
    %3194 = vdwg.mxu0
    %3195 = vmatpush.msra.mxu0 %v203
    %3196 = vmatpush.msra.mxu0 %v199
    %3197 = vmatpush.msra.mxu0 %v195
    %3198 = vmatpush.msra.mxu0 %v191
    %3199 = vmatpush.msra.mxu0 %v187
    %3200 = vmatpush.msra.mxu0 %v183
    %3201 = vmatpush.msra.mxu0 %v179
    %3202 = vmatpush.msra.mxu0 %v175
    %3203 = vmatpush.msra.mxu0 %v171
    %3204 = vmatpush.msra.mxu0 %v167
    %3205 = vmatpush.msra.mxu0 %v163
    %3206 = vmatpush.msra.mxu0 %v159
    %3207 = vmatpush.msra.mxu0 %v155
    %3208 = vmatpush.msra.mxu0 %v151
    %3209 = vmatpush.msra.mxu0 %v147
    %3210 = vmatpush.msra.mxu0 %v143
    %3211 = vmatmul.f32.gmra.mxu0 %v3154
    %v3212 = vpop.f32.mrf.mxu0
    %v3213 = vadd.f32 %v283, %v3212
    %3214 = vdwg.mxu0
    %3215 = vmatpush.msra.mxu0 %v267
    %3216 = vmatpush.msra.mxu0 %v263
    %3217 = vmatpush.msra.mxu0 %v259
    %3218 = vmatpush.msra.mxu0 %v255
    %3219 = vmatpush.msra.mxu0 %v251
    %3220 = vmatpush.msra.mxu0 %v247
    %3221 = vmatpush.msra.mxu0 %v243
    %3222 = vmatpush.msra.mxu0 %v239
    %3223 = vmatpush.msra.mxu0 %v235
    %3224 = vmatpush.msra.mxu0 %v231
    %3225 = vmatpush.msra.mxu0 %v227
    %3226 = vmatpush.msra.mxu0 %v223
    %3227 = vmatpush.msra.mxu0 %v219
    %3228 = vmatpush.msra.mxu0 %v215
    %3229 = vmatpush.msra.mxu0 %v211
    %3230 = vmatpush.msra.mxu0 %v207
    %3231 = vmatmul.f32.gmra.mxu0 %v2992
    %v3232 = vpop.f32.mrf.mxu0
    %v3233 = vadd.f32 %v3213, %v3232
    %3234 = vdwg.mxu0
    %3235 = vmatpush.msra.mxu0 %v204
    %3236 = vmatpush.msra.mxu0 %v200
    %3237 = vmatpush.msra.mxu0 %v196
    %3238 = vmatpush.msra.mxu0 %v192
    %3239 = vmatpush.msra.mxu0 %v188
    %3240 = vmatpush.msra.mxu0 %v184
    %3241 = vmatpush.msra.mxu0 %v180
    %3242 = vmatpush.msra.mxu0 %v176
    %3243 = vmatpush.msra.mxu0 %v172
    %3244 = vmatpush.msra.mxu0 %v168
    %3245 = vmatpush.msra.mxu0 %v164
    %3246 = vmatpush.msra.mxu0 %v160
    %3247 = vmatpush.msra.mxu0 %v156
    %3248 = vmatpush.msra.mxu0 %v152
    %3249 = vmatpush.msra.mxu0 %v148
    %3250 = vmatpush.msra.mxu0 %v144
    %3251 = vmatmul.f32.gmra.mxu0 %v3154
    %v3252 = vpop.f32.mrf.mxu0
    %v3253 = vadd.f32 %v284, %v3252
    %3254 = vdwg.mxu0
    %3255 = vmatpush.msra.mxu0 %v268
    %3256 = vmatpush.msra.mxu0 %v264
    %3257 = vmatpush.msra.mxu0 %v260
    %3258 = vmatpush.msra.mxu0 %v256
    %3259 = vmatpush.msra.mxu0 %v252
    %3260 = vmatpush.msra.mxu0 %v248
    %3261 = vmatpush.msra.mxu0 %v244
    %3262 = vmatpush.msra.mxu0 %v240
    %3263 = vmatpush.msra.mxu0 %v236
    %3264 = vmatpush.msra.mxu0 %v232
    %3265 = vmatpush.msra.mxu0 %v228
    %3266 = vmatpush.msra.mxu0 %v224
    %3267 = vmatpush.msra.mxu0 %v220
    %3268 = vmatpush.msra.mxu0 %v216
    %3269 = vmatpush.msra.mxu0 %v212
    %3270 = vmatpush.msra.mxu0 %v208
    %3271 = vmatmul.f32.gmra.mxu0 %v2992
    %v3272 = vpop.f32.mrf.mxu0
    %v3273 = vadd.f32 %v3253, %v3272
    %3274 = vdwg.mxu0
    %3275 = vmatpush.msra.mxu0 %v205
    %3276 = vmatpush.msra.mxu0 %v201
    %3277 = vmatpush.msra.mxu0 %v197
    %3278 = vmatpush.msra.mxu0 %v193
    %3279 = vmatpush.msra.mxu0 %v189
    %3280 = vmatpush.msra.mxu0 %v185
    %3281 = vmatpush.msra.mxu0 %v181
    %3282 = vmatpush.msra.mxu0 %v177
    %3283 = vmatpush.msra.mxu0 %v173
    %3284 = vmatpush.msra.mxu0 %v169
    %3285 = vmatpush.msra.mxu0 %v165
    %3286 = vmatpush.msra.mxu0 %v161
    %3287 = vmatpush.msra.mxu0 %v157
    %3288 = vmatpush.msra.mxu0 %v153
    %3289 = vmatpush.msra.mxu0 %v149
    %3290 = vmatpush.msra.mxu0 %v145
    %3291 = vmatmul.f32.gmra.mxu0 %v3154
    %v3292 = vpop.f32.mrf.mxu0
    %v3293 = vadd.f32 %v285, %v3292
    %3294 = vdwg.mxu0
    %3295 = vmatpush.msra.mxu0 %v269
    %3296 = vmatpush.msra.mxu0 %v265
    %3297 = vmatpush.msra.mxu0 %v261
    %3298 = vmatpush.msra.mxu0 %v257
    %3299 = vmatpush.msra.mxu0 %v253
    %3300 = vmatpush.msra.mxu0 %v249
    %3301 = vmatpush.msra.mxu0 %v245
    %3302 = vmatpush.msra.mxu0 %v241
    %3303 = vmatpush.msra.mxu0 %v237
    %3304 = vmatpush.msra.mxu0 %v233
    %3305 = vmatpush.msra.mxu0 %v229
    %3306 = vmatpush.msra.mxu0 %v225
    %3307 = vmatpush.msra.mxu0 %v221
    %3308 = vmatpush.msra.mxu0 %v217
    %3309 = vmatpush.msra.mxu0 %v213
    %3310 = vmatpush.msra.mxu0 %v209
    %3311 = vmatmul.f32.gmra.mxu0 %v2992
    %v3312 = vpop.f32.mrf.mxu0
    %v3313 = vadd.f32 %v3293, %v3312
    %3314 = vdwg.mxu0
    %v3315 = vxor.u32 %v3193, 2147483648
    %v3316 = vmul.f32 %v3315, 1.442695
    %v3317 = vpow.pop %v3316
    %v3318 = vadd.f32 %v3317, 1.0
    %v3319 = vrcp.pop %v3318
    %v3320 = vmul.f32 %v3318, %v3319
    %v3321 = vsub.f32 1.0, %v3320
    %v3322 = vmul.f32 %v3319, %v3321
    %v3323 = vadd.f32 %v3319, %v3322
    %vm3324 = vweird.f32 %v3318
    %vm3325 = vweird.f32 %v3319
    %vm3326 = vmor %vm3324, %vm3325
    %v3327 = vsel %vm3326, %v3319, %v3323
    %v3328 = vand.u32 2147483647, %v3318
    %vm3329 = vcmp.eq.f32.partialorder %v3328, 8.507059e+37
    %v3330 = vand.u32 %v3318, 2147483648
    %v3331 = vor.u32 1.1754944e-38, %v3330
    %v3332 = vsel %vm3329, %v3331, %v3327
    %v3333 = vmul.f32 1.0, %v3332
    %v3334 = vxor.u32 %v3233, 2147483648
    %v3335 = vmul.f32 %v3334, 1.442695
    %v3336 = vpow.pop %v3335
    %v3337 = vadd.f32 %v3336, 1.0
    %v3338 = vrcp.pop %v3337
    %v3339 = vmul.f32 %v3337, %v3338
    %v3340 = vsub.f32 1.0, %v3339
    %v3341 = vmul.f32 %v3338, %v3340
    %v3342 = vadd.f32 %v3338, %v3341
    %vm3343 = vweird.f32 %v3337
    %vm3344 = vweird.f32 %v3338
    %vm3345 = vmor %vm3343, %vm3344
    %v3346 = vsel %vm3345, %v3338, %v3342
    %v3347 = vand.u32 2147483647, %v3337
    %vm3348 = vcmp.eq.f32.partialorder %v3347, 8.507059e+37
    %v3349 = vand.u32 %v3337, 2147483648
    %v3350 = vor.u32 1.1754944e-38, %v3349
    %v3351 = vsel %vm3348, %v3350, %v3346
    %v3352 = vmul.f32 1.0, %v3351
    %v3353 = vtanh.pop %v3273
    %v3354 = vxor.u32 %v3313, 2147483648
    %v3355 = vmul.f32 %v3354, 1.442695
    %v3356 = vpow.pop %v3355
    %v3357 = vadd.f32 %v3356, 1.0
    %v3358 = vrcp.pop %v3357
    %v3359 = vmul.f32 %v3357, %v3358
    %v3360 = vsub.f32 1.0, %v3359
    %v3361 = vmul.f32 %v3358, %v3360
    %v3362 = vadd.f32 %v3358, %v3361
    %vm3363 = vweird.f32 %v3357
    %vm3364 = vweird.f32 %v3358
    %vm3365 = vmor %vm3363, %vm3364
    %v3366 = vsel %vm3365, %v3358, %v3362
    %v3367 = vand.u32 2147483647, %v3357
    %vm3368 = vcmp.eq.f32.partialorder %v3367, 8.507059e+37
    %v3369 = vand.u32 %v3357, 2147483648
    %v3370 = vor.u32 1.1754944e-38, %v3369
    %v3371 = vsel %vm3368, %v3370, %v3366
    %v3372 = vmul.f32 1.0, %v3371
    %v3373 = vmul.f32 %v3352, %v2990
    %v3374 = vmul.f32 %v3333, %v3353
    %v3375 = vadd.f32 %v3373, %v3374
    %v3376 = vtanh.pop %v3375
    %v3377 = vmul.f32 %v3372, %v3376
    %v3378 = vld [vmem:[#allocation7] sm:$0xff]
    %v3379 = vld [vmem:[#allocation7 + $0x8] sm:$0xff]
    %v3380 = vld [vmem:[#allocation7 + $0x10] sm:$0xff]
    %v3381 = vld [vmem:[#allocation7 + $0x18] sm:$0xff]
    %v3382 = vld [vmem:[#allocation7 + $0x20] sm:$0xff]
    %v3383 = vld [vmem:[#allocation7 + $0x28] sm:$0xff]
    %v3384 = vld [vmem:[#allocation7 + $0x30] sm:$0xff]
    %v3385 = vld [vmem:[#allocation7 + $0x38] sm:$0xff]
    %v3386 = vld [vmem:[#allocation7 + $0x40] sm:$0xff]
    %v3387 = vld [vmem:[#allocation7 + $0x48] sm:$0xff]
    %v3388 = vld [vmem:[#allocation7 + $0x50] sm:$0xff]
    %v3389 = vld [vmem:[#allocation7 + $0x58] sm:$0xff]
    %v3390 = vld [vmem:[#allocation7 + $0x60] sm:$0xff]
    %v3391 = vld [vmem:[#allocation7 + $0x68] sm:$0xff]
    %v3392 = vld [vmem:[#allocation7 + $0x70] sm:$0xff]
    %v3393 = vld [vmem:[#allocation7 + $0x78] sm:$0xff]
    %v3394 = vld [vmem:[%s7] sm:$0x1]
    %v3396 = vperm.slane %v3394, 0
    %3398 = vmatpush.msra.mxu0 %v3393
    %3399 = vmatpush.msra.mxu0 %v3392
    %3400 = vmatpush.msra.mxu0 %v3391
    %3401 = vmatpush.msra.mxu0 %v3390
    %3402 = vmatpush.msra.mxu0 %v3389
    %3403 = vmatpush.msra.mxu0 %v3388
    %3404 = vmatpush.msra.mxu0 %v3387
    %3405 = vmatpush.msra.mxu0 %v3386
    %3406 = vmatpush.msra.mxu0 %v3385
    %3407 = vmatpush.msra.mxu0 %v3384
    %3408 = vmatpush.msra.mxu0 %v3383
    %3409 = vmatpush.msra.mxu0 %v3382
    %3410 = vmatpush.msra.mxu0 %v3381
    %3411 = vmatpush.msra.mxu0 %v3380
    %3412 = vmatpush.msra.mxu0 %v3379
    %3413 = vmatpush.msra.mxu0 %v3378
    %3414 = vmatmul.f32.gmra.mxu0 %v3377
    %v3415 = vpop.f32.mrf.mxu0
    %v3416 = vadd.f32 %v3396, %v3415
    %3417 = vdwg.mxu0
    %3418 = vst [vmem:[#allocation8] sm:$0xff] %v3416
    // Predicated region
    $region46: #{tpu_custom_call.1} parent=1 // pred_check
      _
    $region47: #{tpu_custom_call.1} parent=1 // pred_check_branch
      %3420 = sbr.rel (0) target = $region49
    $region48: #{tpu_custom_call.1} parent=1 // pred_region
      %3422 = vsyncadd [#allocation4], 0
      %s3424 = sshll.u32 [#allocation8], 4
      %s3425 = int_to_ptr.vmem [resolvable:$true] %s3424
      %s3426 = sshll.u32 %s8, 4
      %s3427 = int_to_ptr.hbm [resolvable:$true] %s3426
      %3429 = dma.vmem_to_hbm [thread:$0]  %s3425, 128, %s3427, [#allocation4]
    $region49: #{tpu_custom_call.1} parent=1 // pred_fallthru
      _
    // Predicated region
    $region50: #{tpu_custom_call.1} parent=1 // pred_check
      _
    $region51: #{tpu_custom_call.1} parent=1 // pred_check_branch
      %3431 = sbr.rel (0) target = $region53
    $region52: #{tpu_custom_call.1} parent=1 // pred_region
      %3433 = dma.done [#allocation4], 128
    $region53: #{tpu_custom_call.1} parent=1 // pred_fallthru
      _
    %3434 = vsyncpa [#allocation3], 1
    %3435 = vsyncpa [#allocation6], 1
    %3436 = vsyncpa [#allocation4], 1

</llo_original>
